<compile_context>
chip_gen: v5e
topology: v5e:2x2
jax: 0.10.0
libtpu: 0.0.40
codegen_flags: <defaults>
</compile_context>

<pallas_src>
from functools import partial

import numpy as np
import jax
import jax.numpy as jnp
from jax.experimental import pallas as pl
from jax.experimental.pallas import tpu as pltpu

VMEM_SPEC = pl.BlockSpec(memory_space=pltpu.MemorySpace.VMEM)
HEAD_PAD = 128   # lane-dense head matmul / kernel output width


# ----------------------------------------------------------------------------
# Single fused Pallas kernel: l1 -> l2 -> l3 -> l4 -> head
# ----------------------------------------------------------------------------
def _disc_kernel(p1_ref, w1_ref,
                 s2_ref, w2_ref, b2_ref, gm2_ref, bt2_ref,
                 s3_ref, w3_ref, b3_ref, gm3_ref, bt3_ref,
                 s4_ref, w4_ref, b4_ref, gm4_ref, bt4_ref,
                 gsum_ref, emb_ref, whead_ref, bhead_ref,
                 o_ref, *, n_classes, eps):
    def leaky(v, s):
        return jnp.where(v >= 0, v, s * v)

    # ---- l1: Conv(bias=False) + LeakyReLU(0.1) ------------------------------
    y = jnp.dot(p1_ref[...], w1_ref[...], preferred_element_type=jnp.float32)
    y = leaky(y, 0.1).astype(jnp.bfloat16)                       # (B*H1*W1, d)

    # ---- l2..l4: Conv(+bias) -> BatchNorm2d(batch stats, eps) -> LeakyReLU(0.1)
    def conv_bn(y_in, sel_ref, w_ref, b_ref, gm_ref, bt_ref):
        m_out = sel_ref.shape[1]
        c_out = w_ref.shape[2]
        acc = jnp.zeros((m_out, c_out), jnp.float32)
        for k in range(16):                       # unrolled 4x4 window
            # in-kernel im2col: shifted (kh, kw) rows of the previous layer's
            # activation, selected via a precomputed 0/1 matrix (padding rows
            # have no 1 and contribute zero).
            a_k = jnp.dot(sel_ref[k], y_in, preferred_element_type=jnp.float32)
            acc = acc + jnp.dot(a_k.astype(jnp.bfloat16), w_ref[k],
                                preferred_element_type=jnp.float32)
        acc = acc + b_ref[...]                                    # conv bias
        mean = jnp.mean(acc, axis=0, keepdims=True)               # train-mode stats
        cen = acc - mean
        var = jnp.mean(cen * cen, axis=0, keepdims=True)          # biased variance
        yn = cen * jax.lax.rsqrt(var + eps) * gm_ref[...] + bt_ref[...]
        return leaky(yn, 0.1)

    y = conv_bn(y, s2_ref, w2_ref, b2_ref, gm2_ref, bt2_ref).astype(jnp.bfloat16)
    y = conv_bn(y, s3_ref, w3_ref, b3_ref, gm3_ref, bt3_ref).astype(jnp.bfloat16)
    y4 = conv_bn(y, s4_ref, w4_ref, b4_ref, gm4_ref, bt4_ref)     # f32 (B*S4, 8d)

    # ---- head ---------------------------------------------------------------
    y4 = leaky(y4, 0.2)                                           # F.leaky_relu(out, 0.2)
    feat = jnp.dot(gsum_ref[...], y4,
                   preferred_element_type=jnp.float32)            # sum over (H, W) -> (B, 8d)

    # fused lane-dense head matmul: columns [0:nc) = aux logits, column nc = adv
    h = jnp.dot(feat.astype(jnp.bfloat16), whead_ref[...],
                preferred_element_type=jnp.float32) + bhead_ref[...]   # (B, 128)

    logits = h[:, :n_classes]
    m = jnp.max(logits, axis=1, keepdims=True)
    e = jnp.exp(logits - m)
    probs = e / jnp.sum(e, axis=1, keepdims=True)                 # Softmax(dim=1)

    # projection term: sum(embed(labels) * out, dim=1, keepdim=True)
    proj = jnp.sum(emb_ref[...] * feat, axis=1, keepdims=True)
    validity = h[:, n_classes:n_classes + 1] + proj

    b = feat.shape[0]
    o_ref[:, :n_classes] = probs
    o_ref[:, n_classes:n_classes + 1] = validity
    if n_classes + 1 < HEAD_PAD:
        o_ref[:, n_classes + 1:] = jnp.zeros((b, HEAD_PAD - n_classes - 1), jnp.float32)


# ----------------------------------------------------------------------------
# JAX / numpy glue: layer-1 im2col, selection matrices, parameter packing
# ----------------------------------------------------------------------------
def _im2col_l1(x, k=4, s=2, p=1):
    """NCHW image -> (B*OH*OW, C*k*k); rows ordered (b, oh, ow), features (c, kh, kw)."""
    B, C, H, W = x.shape
    OH = (H + 2 * p - k) // s + 1
    OW = (W + 2 * p - k) // s + 1
    xp = jnp.pad(x, ((0, 0), (0, 0), (p, p), (p, p)))
    cols = []
    for kh in range(k):
        for kw in range(k):
            cols.append(xp[:, :, kh:kh + s * OH:s, kw:kw + s * OW:s])   # (B,C,OH,OW)
    cols = jnp.stack(cols, axis=0).reshape(k, k, B, C, OH, OW)
    cols = cols.transpose(2, 4, 5, 3, 0, 1)                             # (B,OH,OW,C,kh,kw)
    return cols.reshape(B * OH * OW, C * k * k)


def _gather_mats(B, H, W):
    """0/1 selection matrices for a k=4, s=2, p=1 conv on an activation stored
    row-major as (B*H*W, C).  g[k, m, r] = 1 iff output row m reads input row r
    at window offset k = kh*4+kw (padding positions simply select nothing)."""
    OH, OW = H // 2, W // 2
    g = np.zeros((16, B * OH * OW, B * H * W), np.float32)
    for b in range(B):
        for oh in range(OH):
            for ow in range(OW):
                m = (b * OH + oh) * OW + ow
                for kh in range(4):
                    for kw in range(4):
                        ih, iw = 2 * oh + kh - 1, 2 * ow + kw - 1
                        if 0 <= ih < H and 0 <= iw < W:
                            g[kh * 4 + kw, m, (b * H + ih) * W + iw] = 1.0
    return g


def _wstack(w):
    """OIHW conv weight -> (16, Cin, Cout) matching the gather-matrix order."""
    o, i = w.shape[0], w.shape[1]
    return jnp.transpose(w, (2, 3, 1, 0)).reshape(16, i, o).astype(jnp.bfloat16)


def _row(v):
    return v.reshape(1, -1).astype(jnp.float32)


def discriminator_forward(params, x, labels):
    B, C, H, W = x.shape
    d = params["w1"].shape[0]                  # conv_dim
    nc = params["waux"].shape[0]               # n_classes
    c4 = params["wadv"].shape[1]               # 8 * conv_dim
    assert nc + 1 <= HEAD_PAD

    # Layer-1 im2col stays in XLA: the raw image must be read from HBM anyway
    # and its patch matrix is tiny; all later im2cols happen inside the kernel.
    p1 = _im2col_l1(x).astype(jnp.bfloat16)
    w1m = params["w1"].reshape(d, -1).T.astype(jnp.bfloat16)          # (C*16, d)

    # precomputed shifted-window selection matrices (fold im2col + zero padding)
    sel2 = jnp.asarray(_gather_mats(B, H // 2, W // 2), jnp.bfloat16)
    sel3 = jnp.asarray(_gather_mats(B, H // 4, W // 4), jnp.bfloat16)
    sel4 = jnp.asarray(_gather_mats(B, H // 8, W // 8), jnp.bfloat16)

    # spatial-sum operator for the head: feat[b] = sum of the S4 rows of batch b
    s4 = (H // 16) * (W // 16)
    gsum = jnp.asarray(np.kron(np.eye(B, dtype=np.float32),
                               np.ones((1, s4), np.float32)))

    # fused lane-dense head weights: [aux logits (nc) | adv (1) | zero pad]
    whead = jnp.zeros((c4, HEAD_PAD), jnp.float32)
    whead = whead.at[:, :nc].set(params["waux"].T).at[:, nc].set(params["wadv"][0])
    bhead = jnp.zeros((1, HEAD_PAD), jnp.float32)
    bhead = bhead.at[0, :nc].set(params["baux"]).at[0, nc].set(params["badv"][0])

    emb = jnp.take(params["embed"], labels, axis=0).astype(jnp.float32)   # (B, 8d)

    out = pl.pallas_call(
        partial(_disc_kernel, n_classes=nc, eps=0.8),
        out_shape=jax.ShapeDtypeStruct((B, HEAD_PAD), jnp.float32),
        in_specs=[VMEM_SPEC] * 21,
        out_specs=VMEM_SPEC,
    )(p1, w1m,
      sel2, _wstack(params["w2"]), _row(params["b2"]), _row(params["gamma2"]), _row(params["beta2"]),
      sel3, _wstack(params["w3"]), _row(params["b3"]), _row(params["gamma3"]), _row(params["beta3"]),
      sel4, _wstack(params["w4"]), _row(params["b4"]), _row(params["gamma4"]), _row(params["beta4"]),
      gsum, emb, whead.astype(jnp.bfloat16), bhead)

    validity = out[:, nc:nc + 1]
    label = out[:, :nc]
    return validity, label


# ----------------------------------------------------------------------------
# Deterministic parameter init (shapes follow Discriminator.__init__)
# ----------------------------------------------------------------------------
def init_params(key, conv_dim=8, channels=1, n_classes=10):
    # TODO(synk): self.label_embedding is defined in __init__ but never used in
    # forward; it is omitted here.
    ks = jax.random.split(key, 12)
    n = lambda k, s, sc=0.05: (sc * jax.random.normal(k, s)).astype(jnp.float32)
    d = conv_dim
    return {
        "w1": n(ks[0], (d, channels, 4, 4)),                     # l1 conv, bias=False
        "w2": n(ks[1], (2 * d, d, 4, 4)),     "b2": n(ks[2], (2 * d,)),
        "gamma2": jnp.ones((2 * d,), jnp.float32), "beta2": jnp.zeros((2 * d,), jnp.float32),
        "w3": n(ks[3], (4 * d, 2 * d, 4, 4)), "b3": n(ks[4], (4 * d,)),
        "gamma3": jnp.ones((4 * d,), jnp.float32), "beta3": jnp.zeros((4 * d,), jnp.float32),
        "w4": n(ks[5], (8 * d, 4 * d, 4, 4)), "b4": n(ks[6], (8 * d,)),
        "gamma4": jnp.ones((8 * d,), jnp.float32), "beta4": jnp.zeros((8 * d,), jnp.float32),
        "wadv": n(ks[7], (1, 8 * d)),         "badv": n(ks[8], (1,)),
        "embed": n(ks[9], (n_classes, 8 * d)),
        "waux": n(ks[10], (n_classes, 8 * d)), "baux": n(ks[11], (n_classes,)),
    }


if __name__ == "__main__":
    key = jax.random.PRNGKey(0)
    k_param, k_x, k_lbl = jax.random.split(key, 3)

    # Small config consistent with the module: batch=2, channels=1, image_size=16,
    # conv_dim=8, n_classes=10.  Spatial path: 16 -> 8 -> 4 -> 2 -> 1.
    params = init_params(k_param, conv_dim=8, channels=1, n_classes=10)
    x = jax.random.normal(k_x, (2, 1, 16, 16), dtype=jnp.float32)
    labels = jax.random.randint(k_lbl, (2,), 0, 10)

    validity, label = jax.jit(discriminator_forward)(params, x, labels)
    jax.block_until_ready((validity, label))

    assert validity.shape == (2, 1) and label.shape == (2, 10)
    print("KERNEL_OK")
</pallas_src>

<mosaic_0001>
module attributes {stable_mosaic.version = 11 : i64} {
  func.func @_disc_kernel(%arg0: memref<128x16xbf16, #tpu.memory_space<vmem>>, %arg1: memref<16x8xbf16, #tpu.memory_space<vmem>>, %arg2: memref<16x32x128xbf16, #tpu.memory_space<vmem>>, %arg3: memref<16x8x16xbf16, #tpu.memory_space<vmem>>, %arg4: memref<1x16xf32, #tpu.memory_space<vmem>>, %arg5: memref<1x16xf32, #tpu.memory_space<vmem>>, %arg6: memref<1x16xf32, #tpu.memory_space<vmem>>, %arg7: memref<16x8x32xbf16, #tpu.memory_space<vmem>>, %arg8: memref<16x16x32xbf16, #tpu.memory_space<vmem>>, %arg9: memref<1x32xf32, #tpu.memory_space<vmem>>, %arg10: memref<1x32xf32, #tpu.memory_space<vmem>>, %arg11: memref<1x32xf32, #tpu.memory_space<vmem>>, %arg12: memref<16x2x8xbf16, #tpu.memory_space<vmem>>, %arg13: memref<16x32x64xbf16, #tpu.memory_space<vmem>>, %arg14: memref<1x64xf32, #tpu.memory_space<vmem>>, %arg15: memref<1x64xf32, #tpu.memory_space<vmem>>, %arg16: memref<1x64xf32, #tpu.memory_space<vmem>>, %arg17: memref<2x2xf32, #tpu.memory_space<vmem>>, %arg18: memref<2x64xf32, #tpu.memory_space<vmem>>, %arg19: memref<64x128xbf16, #tpu.memory_space<vmem>>, %arg20: memref<1x128xf32, #tpu.memory_space<vmem>>, %arg21: memref<2x128xf32, #tpu.memory_space<vmem>>) attributes {dimension_semantics = [], scalar_prefetch = 0 : i64, scratch_operands = 0 : i64, tpu.core_type = #tpu.core_type<tc>} {
    %c0 = arith.constant 0 : index
    %c0_0 = arith.constant 0 : index
    %0 = vector.load %arg0[%c0, %c0_0] : memref<128x16xbf16, #tpu.memory_space<vmem>>, vector<128x16xbf16>
    %c0_1 = arith.constant 0 : index
    %c0_2 = arith.constant 0 : index
    %1 = vector.load %arg1[%c0_1, %c0_2] : memref<16x8xbf16, #tpu.memory_space<vmem>>, vector<16x8xbf16>
    %cst = arith.constant dense<0.000000e+00> : vector<128x8xf32>
    %2 = tpu.matmul %0, %1, %cst {dimension_numbers = #tpu.dot_dimension_numbers<[1], [0], [0], [1], [0, 0, 1, 1], [], []>} : vector<128x16xbf16>, vector<16x8xbf16>, vector<128x8xf32> -> vector<128x8xf32>
    %cst_3 = arith.constant 0.000000e+00 : f32
    %3 = vector.broadcast %cst_3 : f32 to vector<128x8xf32>
    %4 = arith.cmpf oge, %2, %3 : vector<128x8xf32>
    %cst_4 = arith.constant 1.000000e-01 : f32
    %5 = vector.broadcast %cst_4 : f32 to vector<128x8xf32>
    %6 = arith.mulf %5, %2 : vector<128x8xf32>
    %7 = arith.select %4, %2, %6 : vector<128x8xi1>, vector<128x8xf32>
    %8 = arith.truncf %7 : vector<128x8xf32> to vector<128x8xbf16>
    %cst_5 = arith.constant 0.000000e+00 : f32
    %9 = vector.broadcast %cst_5 : f32 to vector<32x16xf32>
    %c0_6 = arith.constant 0 : index
    %c0_7 = arith.constant 0 : index
    %c0_8 = arith.constant 0 : index
    %10 = vector.load %arg2[%c0_6, %c0_7, %c0_8] : memref<16x32x128xbf16, #tpu.memory_space<vmem>>, vector<1x32x128xbf16>
    %11 = vector.shape_cast %10 : vector<1x32x128xbf16> to vector<32x128xbf16>
    %cst_9 = arith.constant dense<0.000000e+00> : vector<32x8xf32>
    %12 = tpu.matmul %11, %8, %cst_9 {dimension_numbers = #tpu.dot_dimension_numbers<[1], [0], [0], [1], [0, 0, 1, 1], [], []>} : vector<32x128xbf16>, vector<128x8xbf16>, vector<32x8xf32> -> vector<32x8xf32>
    %13 = arith.truncf %12 : vector<32x8xf32> to vector<32x8xbf16>
    %c0_10 = arith.constant 0 : index
    %c0_11 = arith.constant 0 : index
    %c0_12 = arith.constant 0 : index
    %14 = vector.load %arg3[%c0_10, %c0_11, %c0_12] : memref<16x8x16xbf16, #tpu.memory_space<vmem>>, vector<1x8x16xbf16>
    %15 = vector.shape_cast %14 : vector<1x8x16xbf16> to vector<8x16xbf16>
    %cst_13 = arith.constant dense<0.000000e+00> : vector<32x16xf32>
    %16 = tpu.matmul %13, %15, %cst_13 {dimension_numbers = #tpu.dot_dimension_numbers<[1], [0], [0], [1], [0, 0, 1, 1], [], []>} : vector<32x8xbf16>, vector<8x16xbf16>, vector<32x16xf32> -> vector<32x16xf32>
    %17 = arith.addf %9, %16 : vector<32x16xf32>
    %c1 = arith.constant 1 : index
    %c0_14 = arith.constant 0 : index
    %c0_15 = arith.constant 0 : index
    %18 = vector.load %arg2[%c1, %c0_14, %c0_15] : memref<16x32x128xbf16, #tpu.memory_space<vmem>>, vector<1x32x128xbf16>
    %19 = vector.shape_cast %18 : vector<1x32x128xbf16> to vector<32x128xbf16>
    %cst_16 = arith.constant dense<0.000000e+00> : vector<32x8xf32>
    %20 = tpu.matmul %19, %8, %cst_16 {dimension_numbers = #tpu.dot_dimension_numbers<[1], [0], [0], [1], [0, 0, 1, 1], [], []>} : vector<32x128xbf16>, vector<128x8xbf16>, vector<32x8xf32> -> vector<32x8xf32>
    %21 = arith.truncf %20 : vector<32x8xf32> to vector<32x8xbf16>
    %c1_17 = arith.constant 1 : index
    %c0_18 = arith.constant 0 : index
    %c0_19 = arith.constant 0 : index
    %22 = vector.load %arg3[%c1_17, %c0_18, %c0_19] : memref<16x8x16xbf16, #tpu.memory_space<vmem>>, vector<1x8x16xbf16>
    %23 = vector.shape_cast %22 : vector<1x8x16xbf16> to vector<8x16xbf16>
    %cst_20 = arith.constant dense<0.000000e+00> : vector<32x16xf32>
    %24 = tpu.matmul %21, %23, %cst_20 {dimension_numbers = #tpu.dot_dimension_numbers<[1], [0], [0], [1], [0, 0, 1, 1], [], []>} : vector<32x8xbf16>, vector<8x16xbf16>, vector<32x16xf32> -> vector<32x16xf32>
    %25 = arith.addf %17, %24 : vector<32x16xf32>
    %c2 = arith.constant 2 : index
    %c0_21 = arith.constant 0 : index
    %c0_22 = arith.constant 0 : index
    %26 = vector.load %arg2[%c2, %c0_21, %c0_22] : memref<16x32x128xbf16, #tpu.memory_space<vmem>>, vector<1x32x128xbf16>
    %27 = vector.shape_cast %26 : vector<1x32x128xbf16> to vector<32x128xbf16>
    %cst_23 = arith.constant dense<0.000000e+00> : vector<32x8xf32>
    %28 = tpu.matmul %27, %8, %cst_23 {dimension_numbers = #tpu.dot_dimension_numbers<[1], [0], [0], [1], [0, 0, 1, 1], [], []>} : vector<32x128xbf16>, vector<128x8xbf16>, vector<32x8xf32> -> vector<32x8xf32>
    %29 = arith.truncf %28 : vector<32x8xf32> to vector<32x8xbf16>
    %c2_24 = arith.constant 2 : index
    %c0_25 = arith.constant 0 : index
    %c0_26 = arith.constant 0 : index
    %30 = vector.load %arg3[%c2_24, %c0_25, %c0_26] : memref<16x8x16xbf16, #tpu.memory_space<vmem>>, vector<1x8x16xbf16>
    %31 = vector.shape_cast %30 : vector<1x8x16xbf16> to vector<8x16xbf16>
    %cst_27 = arith.constant dense<0.000000e+00> : vector<32x16xf32>
    %32 = tpu.matmul %29, %31, %cst_27 {dimension_numbers = #tpu.dot_dimension_numbers<[1], [0], [0], [1], [0, 0, 1, 1], [], []>} : vector<32x8xbf16>, vector<8x16xbf16>, vector<32x16xf32> -> vector<32x16xf32>
    %33 = arith.addf %25, %32 : vector<32x16xf32>
    %c3 = arith.constant 3 : index
    %c0_28 = arith.constant 0 : index
    %c0_29 = arith.constant 0 : index
    %34 = vector.load %arg2[%c3, %c0_28, %c0_29] : memref<16x32x128xbf16, #tpu.memory_space<vmem>>, vector<1x32x128xbf16>
    %35 = vector.shape_cast %34 : vector<1x32x128xbf16> to vector<32x128xbf16>
    %cst_30 = arith.constant dense<0.000000e+00> : vector<32x8xf32>
    %36 = tpu.matmul %35, %8, %cst_30 {dimension_numbers = #tpu.dot_dimension_numbers<[1], [0], [0], [1], [0, 0, 1, 1], [], []>} : vector<32x128xbf16>, vector<128x8xbf16>, vector<32x8xf32> -> vector<32x8xf32>
    %37 = arith.truncf %36 : vector<32x8xf32> to vector<32x8xbf16>
    %c3_31 = arith.constant 3 : index
    %c0_32 = arith.constant 0 : index
    %c0_33 = arith.constant 0 : index
    %38 = vector.load %arg3[%c3_31, %c0_32, %c0_33] : memref<16x8x16xbf16, #tpu.memory_space<vmem>>, vector<1x8x16xbf16>
    %39 = vector.shape_cast %38 : vector<1x8x16xbf16> to vector<8x16xbf16>
    %cst_34 = arith.constant dense<0.000000e+00> : vector<32x16xf32>
    %40 = tpu.matmul %37, %39, %cst_34 {dimension_numbers = #tpu.dot_dimension_numbers<[1], [0], [0], [1], [0, 0, 1, 1], [], []>} : vector<32x8xbf16>, vector<8x16xbf16>, vector<32x16xf32> -> vector<32x16xf32>
    %41 = arith.addf %33, %40 : vector<32x16xf32>
    %c4 = arith.constant 4 : index
    %c0_35 = arith.constant 0 : index
    %c0_36 = arith.constant 0 : index
    %42 = vector.load %arg2[%c4, %c0_35, %c0_36] : memref<16x32x128xbf16, #tpu.memory_space<vmem>>, vector<1x32x128xbf16>
    %43 = vector.shape_cast %42 : vector<1x32x128xbf16> to vector<32x128xbf16>
    %cst_37 = arith.constant dense<0.000000e+00> : vector<32x8xf32>
    %44 = tpu.matmul %43, %8, %cst_37 {dimension_numbers = #tpu.dot_dimension_numbers<[1], [0], [0], [1], [0, 0, 1, 1], [], []>} : vector<32x128xbf16>, vector<128x8xbf16>, vector<32x8xf32> -> vector<32x8xf32>
    %45 = arith.truncf %44 : vector<32x8xf32> to vector<32x8xbf16>
    %c4_38 = arith.constant 4 : index
    %c0_39 = arith.constant 0 : index
    %c0_40 = arith.constant 0 : index
    %46 = vector.load %arg3[%c4_38, %c0_39, %c0_40] : memref<16x8x16xbf16, #tpu.memory_space<vmem>>, vector<1x8x16xbf16>
    %47 = vector.shape_cast %46 : vector<1x8x16xbf16> to vector<8x16xbf16>
    %cst_41 = arith.constant dense<0.000000e+00> : vector<32x16xf32>
    %48 = tpu.matmul %45, %47, %cst_41 {dimension_numbers = #tpu.dot_dimension_numbers<[1], [0], [0], [1], [0, 0, 1, 1], [], []>} : vector<32x8xbf16>, vector<8x16xbf16>, vector<32x16xf32> -> vector<32x16xf32>
    %49 = arith.addf %41, %48 : vector<32x16xf32>
    %c5 = arith.constant 5 : index
    %c0_42 = arith.constant 0 : index
    %c0_43 = arith.constant 0 : index
    %50 = vector.load %arg2[%c5, %c0_42, %c0_43] : memref<16x32x128xbf16, #tpu.memory_space<vmem>>, vector<1x32x128xbf16>
    %51 = vector.shape_cast %50 : vector<1x32x128xbf16> to vector<32x128xbf16>
    %cst_44 = arith.constant dense<0.000000e+00> : vector<32x8xf32>
    %52 = tpu.matmul %51, %8, %cst_44 {dimension_numbers = #tpu.dot_dimension_numbers<[1], [0], [0], [1], [0, 0, 1, 1], [], []>} : vector<32x128xbf16>, vector<128x8xbf16>, vector<32x8xf32> -> vector<32x8xf32>
    %53 = arith.truncf %52 : vector<32x8xf32> to vector<32x8xbf16>
    %c5_45 = arith.constant 5 : index
    %c0_46 = arith.constant 0 : index
    %c0_47 = arith.constant 0 : index
    %54 = vector.load %arg3[%c5_45, %c0_46, %c0_47] : memref<16x8x16xbf16, #tpu.memory_space<vmem>>, vector<1x8x16xbf16>
    %55 = vector.shape_cast %54 : vector<1x8x16xbf16> to vector<8x16xbf16>
    %cst_48 = arith.constant dense<0.000000e+00> : vector<32x16xf32>
    %56 = tpu.matmul %53, %55, %cst_48 {dimension_numbers = #tpu.dot_dimension_numbers<[1], [0], [0], [1], [0, 0, 1, 1], [], []>} : vector<32x8xbf16>, vector<8x16xbf16>, vector<32x16xf32> -> vector<32x16xf32>
    %57 = arith.addf %49, %56 : vector<32x16xf32>
    %c6 = arith.constant 6 : index
    %c0_49 = arith.constant 0 : index
    %c0_50 = arith.constant 0 : index
    %58 = vector.load %arg2[%c6, %c0_49, %c0_50] : memref<16x32x128xbf16, #tpu.memory_space<vmem>>, vector<1x32x128xbf16>
    %59 = vector.shape_cast %58 : vector<1x32x128xbf16> to vector<32x128xbf16>
    %cst_51 = arith.constant dense<0.000000e+00> : vector<32x8xf32>
    %60 = tpu.matmul %59, %8, %cst_51 {dimension_numbers = #tpu.dot_dimension_numbers<[1], [0], [0], [1], [0, 0, 1, 1], [], []>} : vector<32x128xbf16>, vector<128x8xbf16>, vector<32x8xf32> -> vector<32x8xf32>
    %61 = arith.truncf %60 : vector<32x8xf32> to vector<32x8xbf16>
    %c6_52 = arith.constant 6 : index
    %c0_53 = arith.constant 0 : index
    %c0_54 = arith.constant 0 : index
    %62 = vector.load %arg3[%c6_52, %c0_53, %c0_54] : memref<16x8x16xbf16, #tpu.memory_space<vmem>>, vector<1x8x16xbf16>
    %63 = vector.shape_cast %62 : vector<1x8x16xbf16> to vector<8x16xbf16>
    %cst_55 = arith.constant dense<0.000000e+00> : vector<32x16xf32>
    %64 = tpu.matmul %61, %63, %cst_55 {dimension_numbers = #tpu.dot_dimension_numbers<[1], [0], [0], [1], [0, 0, 1, 1], [], []>} : vector<32x8xbf16>, vector<8x16xbf16>, vector<32x16xf32> -> vector<32x16xf32>
    %65 = arith.addf %57, %64 : vector<32x16xf32>
    %c7 = arith.constant 7 : index
    %c0_56 = arith.constant 0 : index
    %c0_57 = arith.constant 0 : index
    %66 = vector.load %arg2[%c7, %c0_56, %c0_57] : memref<16x32x128xbf16, #tpu.memory_space<vmem>>, vector<1x32x128xbf16>
    %67 = vector.shape_cast %66 : vector<1x32x128xbf16> to vector<32x128xbf16>
    %cst_58 = arith.constant dense<0.000000e+00> : vector<32x8xf32>
    %68 = tpu.matmul %67, %8, %cst_58 {dimension_numbers = #tpu.dot_dimension_numbers<[1], [0], [0], [1], [0, 0, 1, 1], [], []>} : vector<32x128xbf16>, vector<128x8xbf16>, vector<32x8xf32> -> vector<32x8xf32>
    %69 = arith.truncf %68 : vector<32x8xf32> to vector<32x8xbf16>
    %c7_59 = arith.constant 7 : index
    %c0_60 = arith.constant 0 : index
    %c0_61 = arith.constant 0 : index
    %70 = vector.load %arg3[%c7_59, %c0_60, %c0_61] : memref<16x8x16xbf16, #tpu.memory_space<vmem>>, vector<1x8x16xbf16>
    %71 = vector.shape_cast %70 : vector<1x8x16xbf16> to vector<8x16xbf16>
    %cst_62 = arith.constant dense<0.000000e+00> : vector<32x16xf32>
    %72 = tpu.matmul %69, %71, %cst_62 {dimension_numbers = #tpu.dot_dimension_numbers<[1], [0], [0], [1], [0, 0, 1, 1], [], []>} : vector<32x8xbf16>, vector<8x16xbf16>, vector<32x16xf32> -> vector<32x16xf32>
    %73 = arith.addf %65, %72 : vector<32x16xf32>
    %c8 = arith.constant 8 : index
    %c0_63 = arith.constant 0 : index
    %c0_64 = arith.constant 0 : index
    %74 = vector.load %arg2[%c8, %c0_63, %c0_64] : memref<16x32x128xbf16, #tpu.memory_space<vmem>>, vector<1x32x128xbf16>
    %75 = vector.shape_cast %74 : vector<1x32x128xbf16> to vector<32x128xbf16>
    %cst_65 = arith.constant dense<0.000000e+00> : vector<32x8xf32>
    %76 = tpu.matmul %75, %8, %cst_65 {dimension_numbers = #tpu.dot_dimension_numbers<[1], [0], [0], [1], [0, 0, 1, 1], [], []>} : vector<32x128xbf16>, vector<128x8xbf16>, vector<32x8xf32> -> vector<32x8xf32>
    %77 = arith.truncf %76 : vector<32x8xf32> to vector<32x8xbf16>
    %c8_66 = arith.constant 8 : index
    %c0_67 = arith.constant 0 : index
    %c0_68 = arith.constant 0 : index
    %78 = vector.load %arg3[%c8_66, %c0_67, %c0_68] : memref<16x8x16xbf16, #tpu.memory_space<vmem>>, vector<1x8x16xbf16>
    %79 = vector.shape_cast %78 : vector<1x8x16xbf16> to vector<8x16xbf16>
    %cst_69 = arith.constant dense<0.000000e+00> : vector<32x16xf32>
    %80 = tpu.matmul %77, %79, %cst_69 {dimension_numbers = #tpu.dot_dimension_numbers<[1], [0], [0], [1], [0, 0, 1, 1], [], []>} : vector<32x8xbf16>, vector<8x16xbf16>, vector<32x16xf32> -> vector<32x16xf32>
    %81 = arith.addf %73, %80 : vector<32x16xf32>
    %c9 = arith.constant 9 : index
    %c0_70 = arith.constant 0 : index
    %c0_71 = arith.constant 0 : index
    %82 = vector.load %arg2[%c9, %c0_70, %c0_71] : memref<16x32x128xbf16, #tpu.memory_space<vmem>>, vector<1x32x128xbf16>
    %83 = vector.shape_cast %82 : vector<1x32x128xbf16> to vector<32x128xbf16>
    %cst_72 = arith.constant dense<0.000000e+00> : vector<32x8xf32>
    %84 = tpu.matmul %83, %8, %cst_72 {dimension_numbers = #tpu.dot_dimension_numbers<[1], [0], [0], [1], [0, 0, 1, 1], [], []>} : vector<32x128xbf16>, vector<128x8xbf16>, vector<32x8xf32> -> vector<32x8xf32>
    %85 = arith.truncf %84 : vector<32x8xf32> to vector<32x8xbf16>
    %c9_73 = arith.constant 9 : index
    %c0_74 = arith.constant 0 : index
    %c0_75 = arith.constant 0 : index
    %86 = vector.load %arg3[%c9_73, %c0_74, %c0_75] : memref<16x8x16xbf16, #tpu.memory_space<vmem>>, vector<1x8x16xbf16>
    %87 = vector.shape_cast %86 : vector<1x8x16xbf16> to vector<8x16xbf16>
    %cst_76 = arith.constant dense<0.000000e+00> : vector<32x16xf32>
    %88 = tpu.matmul %85, %87, %cst_76 {dimension_numbers = #tpu.dot_dimension_numbers<[1], [0], [0], [1], [0, 0, 1, 1], [], []>} : vector<32x8xbf16>, vector<8x16xbf16>, vector<32x16xf32> -> vector<32x16xf32>
    %89 = arith.addf %81, %88 : vector<32x16xf32>
    %c10 = arith.constant 10 : index
    %c0_77 = arith.constant 0 : index
    %c0_78 = arith.constant 0 : index
    %90 = vector.load %arg2[%c10, %c0_77, %c0_78] : memref<16x32x128xbf16, #tpu.memory_space<vmem>>, vector<1x32x128xbf16>
    %91 = vector.shape_cast %90 : vector<1x32x128xbf16> to vector<32x128xbf16>
    %cst_79 = arith.constant dense<0.000000e+00> : vector<32x8xf32>
    %92 = tpu.matmul %91, %8, %cst_79 {dimension_numbers = #tpu.dot_dimension_numbers<[1], [0], [0], [1], [0, 0, 1, 1], [], []>} : vector<32x128xbf16>, vector<128x8xbf16>, vector<32x8xf32> -> vector<32x8xf32>
    %93 = arith.truncf %92 : vector<32x8xf32> to vector<32x8xbf16>
    %c10_80 = arith.constant 10 : index
    %c0_81 = arith.constant 0 : index
    %c0_82 = arith.constant 0 : index
    %94 = vector.load %arg3[%c10_80, %c0_81, %c0_82] : memref<16x8x16xbf16, #tpu.memory_space<vmem>>, vector<1x8x16xbf16>
    %95 = vector.shape_cast %94 : vector<1x8x16xbf16> to vector<8x16xbf16>
    %cst_83 = arith.constant dense<0.000000e+00> : vector<32x16xf32>
    %96 = tpu.matmul %93, %95, %cst_83 {dimension_numbers = #tpu.dot_dimension_numbers<[1], [0], [0], [1], [0, 0, 1, 1], [], []>} : vector<32x8xbf16>, vector<8x16xbf16>, vector<32x16xf32> -> vector<32x16xf32>
    %97 = arith.addf %89, %96 : vector<32x16xf32>
    %c11 = arith.constant 11 : index
    %c0_84 = arith.constant 0 : index
    %c0_85 = arith.constant 0 : index
    %98 = vector.load %arg2[%c11, %c0_84, %c0_85] : memref<16x32x128xbf16, #tpu.memory_space<vmem>>, vector<1x32x128xbf16>
    %99 = vector.shape_cast %98 : vector<1x32x128xbf16> to vector<32x128xbf16>
    %cst_86 = arith.constant dense<0.000000e+00> : vector<32x8xf32>
    %100 = tpu.matmul %99, %8, %cst_86 {dimension_numbers = #tpu.dot_dimension_numbers<[1], [0], [0], [1], [0, 0, 1, 1], [], []>} : vector<32x128xbf16>, vector<128x8xbf16>, vector<32x8xf32> -> vector<32x8xf32>
    %101 = arith.truncf %100 : vector<32x8xf32> to vector<32x8xbf16>
    %c11_87 = arith.constant 11 : index
    %c0_88 = arith.constant 0 : index
    %c0_89 = arith.constant 0 : index
    %102 = vector.load %arg3[%c11_87, %c0_88, %c0_89] : memref<16x8x16xbf16, #tpu.memory_space<vmem>>, vector<1x8x16xbf16>
    %103 = vector.shape_cast %102 : vector<1x8x16xbf16> to vector<8x16xbf16>
    %cst_90 = arith.constant dense<0.000000e+00> : vector<32x16xf32>
    %104 = tpu.matmul %101, %103, %cst_90 {dimension_numbers = #tpu.dot_dimension_numbers<[1], [0], [0], [1], [0, 0, 1, 1], [], []>} : vector<32x8xbf16>, vector<8x16xbf16>, vector<32x16xf32> -> vector<32x16xf32>
    %105 = arith.addf %97, %104 : vector<32x16xf32>
    %c12 = arith.constant 12 : index
    %c0_91 = arith.constant 0 : index
    %c0_92 = arith.constant 0 : index
    %106 = vector.load %arg2[%c12, %c0_91, %c0_92] : memref<16x32x128xbf16, #tpu.memory_space<vmem>>, vector<1x32x128xbf16>
    %107 = vector.shape_cast %106 : vector<1x32x128xbf16> to vector<32x128xbf16>
    %cst_93 = arith.constant dense<0.000000e+00> : vector<32x8xf32>
    %108 = tpu.matmul %107, %8, %cst_93 {dimension_numbers = #tpu.dot_dimension_numbers<[1], [0], [0], [1], [0, 0, 1, 1], [], []>} : vector<32x128xbf16>, vector<128x8xbf16>, vector<32x8xf32> -> vector<32x8xf32>
    %109 = arith.truncf %108 : vector<32x8xf32> to vector<32x8xbf16>
    %c12_94 = arith.constant 12 : index
    %c0_95 = arith.constant 0 : index
    %c0_96 = arith.constant 0 : index
    %110 = vector.load %arg3[%c12_94, %c0_95, %c0_96] : memref<16x8x16xbf16, #tpu.memory_space<vmem>>, vector<1x8x16xbf16>
    %111 = vector.shape_cast %110 : vector<1x8x16xbf16> to vector<8x16xbf16>
    %cst_97 = arith.constant dense<0.000000e+00> : vector<32x16xf32>
    %112 = tpu.matmul %109, %111, %cst_97 {dimension_numbers = #tpu.dot_dimension_numbers<[1], [0], [0], [1], [0, 0, 1, 1], [], []>} : vector<32x8xbf16>, vector<8x16xbf16>, vector<32x16xf32> -> vector<32x16xf32>
    %113 = arith.addf %105, %112 : vector<32x16xf32>
    %c13 = arith.constant 13 : index
    %c0_98 = arith.constant 0 : index
    %c0_99 = arith.constant 0 : index
    %114 = vector.load %arg2[%c13, %c0_98, %c0_99] : memref<16x32x128xbf16, #tpu.memory_space<vmem>>, vector<1x32x128xbf16>
    %115 = vector.shape_cast %114 : vector<1x32x128xbf16> to vector<32x128xbf16>
    %cst_100 = arith.constant dense<0.000000e+00> : vector<32x8xf32>
    %116 = tpu.matmul %115, %8, %cst_100 {dimension_numbers = #tpu.dot_dimension_numbers<[1], [0], [0], [1], [0, 0, 1, 1], [], []>} : vector<32x128xbf16>, vector<128x8xbf16>, vector<32x8xf32> -> vector<32x8xf32>
    %117 = arith.truncf %116 : vector<32x8xf32> to vector<32x8xbf16>
    %c13_101 = arith.constant 13 : index
    %c0_102 = arith.constant 0 : index
    %c0_103 = arith.constant 0 : index
    %118 = vector.load %arg3[%c13_101, %c0_102, %c0_103] : memref<16x8x16xbf16, #tpu.memory_space<vmem>>, vector<1x8x16xbf16>
    %119 = vector.shape_cast %118 : vector<1x8x16xbf16> to vector<8x16xbf16>
    %cst_104 = arith.constant dense<0.000000e+00> : vector<32x16xf32>
    %120 = tpu.matmul %117, %119, %cst_104 {dimension_numbers = #tpu.dot_dimension_numbers<[1], [0], [0], [1], [0, 0, 1, 1], [], []>} : vector<32x8xbf16>, vector<8x16xbf16>, vector<32x16xf32> -> vector<32x16xf32>
    %121 = arith.addf %113, %120 : vector<32x16xf32>
    %c14 = arith.constant 14 : index
    %c0_105 = arith.constant 0 : index
    %c0_106 = arith.constant 0 : index
    %122 = vector.load %arg2[%c14, %c0_105, %c0_106] : memref<16x32x128xbf16, #tpu.memory_space<vmem>>, vector<1x32x128xbf16>
    %123 = vector.shape_cast %122 : vector<1x32x128xbf16> to vector<32x128xbf16>
    %cst_107 = arith.constant dense<0.000000e+00> : vector<32x8xf32>
    %124 = tpu.matmul %123, %8, %cst_107 {dimension_numbers = #tpu.dot_dimension_numbers<[1], [0], [0], [1], [0, 0, 1, 1], [], []>} : vector<32x128xbf16>, vector<128x8xbf16>, vector<32x8xf32> -> vector<32x8xf32>
    %125 = arith.truncf %124 : vector<32x8xf32> to vector<32x8xbf16>
    %c14_108 = arith.constant 14 : index
    %c0_109 = arith.constant 0 : index
    %c0_110 = arith.constant 0 : index
    %126 = vector.load %arg3[%c14_108, %c0_109, %c0_110] : memref<16x8x16xbf16, #tpu.memory_space<vmem>>, vector<1x8x16xbf16>
    %127 = vector.shape_cast %126 : vector<1x8x16xbf16> to vector<8x16xbf16>
    %cst_111 = arith.constant dense<0.000000e+00> : vector<32x16xf32>
    %128 = tpu.matmul %125, %127, %cst_111 {dimension_numbers = #tpu.dot_dimension_numbers<[1], [0], [0], [1], [0, 0, 1, 1], [], []>} : vector<32x8xbf16>, vector<8x16xbf16>, vector<32x16xf32> -> vector<32x16xf32>
    %129 = arith.addf %121, %128 : vector<32x16xf32>
    %c15 = arith.constant 15 : index
    %c0_112 = arith.constant 0 : index
    %c0_113 = arith.constant 0 : index
    %130 = vector.load %arg2[%c15, %c0_112, %c0_113] : memref<16x32x128xbf16, #tpu.memory_space<vmem>>, vector<1x32x128xbf16>
    %131 = vector.shape_cast %130 : vector<1x32x128xbf16> to vector<32x128xbf16>
    %cst_114 = arith.constant dense<0.000000e+00> : vector<32x8xf32>
    %132 = tpu.matmul %131, %8, %cst_114 {dimension_numbers = #tpu.dot_dimension_numbers<[1], [0], [0], [1], [0, 0, 1, 1], [], []>} : vector<32x128xbf16>, vector<128x8xbf16>, vector<32x8xf32> -> vector<32x8xf32>
    %133 = arith.truncf %132 : vector<32x8xf32> to vector<32x8xbf16>
    %c15_115 = arith.constant 15 : index
    %c0_116 = arith.constant 0 : index
    %c0_117 = arith.constant 0 : index
    %134 = vector.load %arg3[%c15_115, %c0_116, %c0_117] : memref<16x8x16xbf16, #tpu.memory_space<vmem>>, vector<1x8x16xbf16>
    %135 = vector.shape_cast %134 : vector<1x8x16xbf16> to vector<8x16xbf16>
    %cst_118 = arith.constant dense<0.000000e+00> : vector<32x16xf32>
    %136 = tpu.matmul %133, %135, %cst_118 {dimension_numbers = #tpu.dot_dimension_numbers<[1], [0], [0], [1], [0, 0, 1, 1], [], []>} : vector<32x8xbf16>, vector<8x16xbf16>, vector<32x16xf32> -> vector<32x16xf32>
    %137 = arith.addf %129, %136 : vector<32x16xf32>
    %c0_119 = arith.constant 0 : index
    %c0_120 = arith.constant 0 : index
    %138 = vector.load %arg4[%c0_119, %c0_120] : memref<1x16xf32, #tpu.memory_space<vmem>>, vector<1x16xf32>
    %139 = vector.broadcast %138 : vector<1x16xf32> to vector<32x16xf32>
    %140 = arith.addf %137, %139 : vector<32x16xf32>
    %cst_121 = arith.constant dense<0.000000e+00> : vector<16xf32>
    %141 = vector.multi_reduction <add>, %140, %cst_121 [0] : vector<32x16xf32> to vector<16xf32>
    %142 = vector.shape_cast %141 : vector<16xf32> to vector<1x16xf32>
    %cst_122 = arith.constant 3.200000e+01 : f32
    %143 = vector.broadcast %cst_122 : f32 to vector<1x16xf32>
    %144 = arith.divf %142, %143 : vector<1x16xf32>
    %145 = vector.broadcast %144 : vector<1x16xf32> to vector<32x16xf32>
    %146 = arith.subf %140, %145 : vector<32x16xf32>
    %147 = arith.mulf %146, %146 : vector<32x16xf32>
    %cst_123 = arith.constant dense<0.000000e+00> : vector<16xf32>
    %148 = vector.multi_reduction <add>, %147, %cst_123 [0] : vector<32x16xf32> to vector<16xf32>
    %149 = vector.shape_cast %148 : vector<16xf32> to vector<1x16xf32>
    %cst_124 = arith.constant 3.200000e+01 : f32
    %150 = vector.broadcast %cst_124 : f32 to vector<1x16xf32>
    %151 = arith.divf %149, %150 : vector<1x16xf32>
    %cst_125 = arith.constant 8.000000e-01 : f32
    %152 = vector.broadcast %cst_125 : f32 to vector<1x16xf32>
    %153 = arith.addf %151, %152 : vector<1x16xf32>
    %154 = math.rsqrt %153 : vector<1x16xf32>
    %155 = vector.broadcast %154 : vector<1x16xf32> to vector<32x16xf32>
    %156 = arith.mulf %146, %155 : vector<32x16xf32>
    %c0_126 = arith.constant 0 : index
    %c0_127 = arith.constant 0 : index
    %157 = vector.load %arg5[%c0_126, %c0_127] : memref<1x16xf32, #tpu.memory_space<vmem>>, vector<1x16xf32>
    %158 = vector.broadcast %157 : vector<1x16xf32> to vector<32x16xf32>
    %159 = arith.mulf %156, %158 : vector<32x16xf32>
    %c0_128 = arith.constant 0 : index
    %c0_129 = arith.constant 0 : index
    %160 = vector.load %arg6[%c0_128, %c0_129] : memref<1x16xf32, #tpu.memory_space<vmem>>, vector<1x16xf32>
    %161 = vector.broadcast %160 : vector<1x16xf32> to vector<32x16xf32>
    %162 = arith.addf %159, %161 : vector<32x16xf32>
    %cst_130 = arith.constant 0.000000e+00 : f32
    %163 = vector.broadcast %cst_130 : f32 to vector<32x16xf32>
    %164 = arith.cmpf oge, %162, %163 : vector<32x16xf32>
    %cst_131 = arith.constant 1.000000e-01 : f32
    %165 = vector.broadcast %cst_131 : f32 to vector<32x16xf32>
    %166 = arith.mulf %165, %162 : vector<32x16xf32>
    %167 = arith.select %164, %162, %166 : vector<32x16xi1>, vector<32x16xf32>
    %168 = arith.truncf %167 : vector<32x16xf32> to vector<32x16xbf16>
    %cst_132 = arith.constant 0.000000e+00 : f32
    %169 = vector.broadcast %cst_132 : f32 to vector<8x32xf32>
    %c0_133 = arith.constant 0 : index
    %c0_134 = arith.constant 0 : index
    %c0_135 = arith.constant 0 : index
    %170 = vector.load %arg7[%c0_133, %c0_134, %c0_135] : memref<16x8x32xbf16, #tpu.memory_space<vmem>>, vector<1x8x32xbf16>
    %171 = vector.shape_cast %170 : vector<1x8x32xbf16> to vector<8x32xbf16>
    %cst_136 = arith.constant dense<0.000000e+00> : vector<8x16xf32>
    %172 = tpu.matmul %171, %168, %cst_136 {dimension_numbers = #tpu.dot_dimension_numbers<[1], [0], [0], [1], [0, 0, 1, 1], [], []>} : vector<8x32xbf16>, vector<32x16xbf16>, vector<8x16xf32> -> vector<8x16xf32>
    %173 = arith.truncf %172 : vector<8x16xf32> to vector<8x16xbf16>
    %c0_137 = arith.constant 0 : index
    %c0_138 = arith.constant 0 : index
    %c0_139 = arith.constant 0 : index
    %174 = vector.load %arg8[%c0_137, %c0_138, %c0_139] : memref<16x16x32xbf16, #tpu.memory_space<vmem>>, vector<1x16x32xbf16>
    %175 = vector.shape_cast %174 : vector<1x16x32xbf16> to vector<16x32xbf16>
    %cst_140 = arith.constant dense<0.000000e+00> : vector<8x32xf32>
    %176 = tpu.matmul %173, %175, %cst_140 {dimension_numbers = #tpu.dot_dimension_numbers<[1], [0], [0], [1], [0, 0, 1, 1], [], []>} : vector<8x16xbf16>, vector<16x32xbf16>, vector<8x32xf32> -> vector<8x32xf32>
    %177 = arith.addf %169, %176 : vector<8x32xf32>
    %c1_141 = arith.constant 1 : index
    %c0_142 = arith.constant 0 : index
    %c0_143 = arith.constant 0 : index
    %178 = vector.load %arg7[%c1_141, %c0_142, %c0_143] : memref<16x8x32xbf16, #tpu.memory_space<vmem>>, vector<1x8x32xbf16>
    %179 = vector.shape_cast %178 : vector<1x8x32xbf16> to vector<8x32xbf16>
    %cst_144 = arith.constant dense<0.000000e+00> : vector<8x16xf32>
    %180 = tpu.matmul %179, %168, %cst_144 {dimension_numbers = #tpu.dot_dimension_numbers<[1], [0], [0], [1], [0, 0, 1, 1], [], []>} : vector<8x32xbf16>, vector<32x16xbf16>, vector<8x16xf32> -> vector<8x16xf32>
    %181 = arith.truncf %180 : vector<8x16xf32> to vector<8x16xbf16>
    %c1_145 = arith.constant 1 : index
    %c0_146 = arith.constant 0 : index
    %c0_147 = arith.constant 0 : index
    %182 = vector.load %arg8[%c1_145, %c0_146, %c0_147] : memref<16x16x32xbf16, #tpu.memory_space<vmem>>, vector<1x16x32xbf16>
    %183 = vector.shape_cast %182 : vector<1x16x32xbf16> to vector<16x32xbf16>
    %cst_148 = arith.constant dense<0.000000e+00> : vector<8x32xf32>
    %184 = tpu.matmul %181, %183, %cst_148 {dimension_numbers = #tpu.dot_dimension_numbers<[1], [0], [0], [1], [0, 0, 1, 1], [], []>} : vector<8x16xbf16>, vector<16x32xbf16>, vector<8x32xf32> -> vector<8x32xf32>
    %185 = arith.addf %177, %184 : vector<8x32xf32>
    %c2_149 = arith.constant 2 : index
    %c0_150 = arith.constant 0 : index
    %c0_151 = arith.constant 0 : index
    %186 = vector.load %arg7[%c2_149, %c0_150, %c0_151] : memref<16x8x32xbf16, #tpu.memory_space<vmem>>, vector<1x8x32xbf16>
    %187 = vector.shape_cast %186 : vector<1x8x32xbf16> to vector<8x32xbf16>
    %cst_152 = arith.constant dense<0.000000e+00> : vector<8x16xf32>
    %188 = tpu.matmul %187, %168, %cst_152 {dimension_numbers = #tpu.dot_dimension_numbers<[1], [0], [0], [1], [0, 0, 1, 1], [], []>} : vector<8x32xbf16>, vector<32x16xbf16>, vector<8x16xf32> -> vector<8x16xf32>
    %189 = arith.truncf %188 : vector<8x16xf32> to vector<8x16xbf16>
    %c2_153 = arith.constant 2 : index
    %c0_154 = arith.constant 0 : index
    %c0_155 = arith.constant 0 : index
    %190 = vector.load %arg8[%c2_153, %c0_154, %c0_155] : memref<16x16x32xbf16, #tpu.memory_space<vmem>>, vector<1x16x32xbf16>
    %191 = vector.shape_cast %190 : vector<1x16x32xbf16> to vector<16x32xbf16>
    %cst_156 = arith.constant dense<0.000000e+00> : vector<8x32xf32>
    %192 = tpu.matmul %189, %191, %cst_156 {dimension_numbers = #tpu.dot_dimension_numbers<[1], [0], [0], [1], [0, 0, 1, 1], [], []>} : vector<8x16xbf16>, vector<16x32xbf16>, vector<8x32xf32> -> vector<8x32xf32>
    %193 = arith.addf %185, %192 : vector<8x32xf32>
    %c3_157 = arith.constant 3 : index
    %c0_158 = arith.constant 0 : index
    %c0_159 = arith.constant 0 : index
    %194 = vector.load %arg7[%c3_157, %c0_158, %c0_159] : memref<16x8x32xbf16, #tpu.memory_space<vmem>>, vector<1x8x32xbf16>
    %195 = vector.shape_cast %194 : vector<1x8x32xbf16> to vector<8x32xbf16>
    %cst_160 = arith.constant dense<0.000000e+00> : vector<8x16xf32>
    %196 = tpu.matmul %195, %168, %cst_160 {dimension_numbers = #tpu.dot_dimension_numbers<[1], [0], [0], [1], [0, 0, 1, 1], [], []>} : vector<8x32xbf16>, vector<32x16xbf16>, vector<8x16xf32> -> vector<8x16xf32>
    %197 = arith.truncf %196 : vector<8x16xf32> to vector<8x16xbf16>
    %c3_161 = arith.constant 3 : index
    %c0_162 = arith.constant 0 : index
    %c0_163 = arith.constant 0 : index
    %198 = vector.load %arg8[%c3_161, %c0_162, %c0_163] : memref<16x16x32xbf16, #tpu.memory_space<vmem>>, vector<1x16x32xbf16>
    %199 = vector.shape_cast %198 : vector<1x16x32xbf16> to vector<16x32xbf16>
    %cst_164 = arith.constant dense<0.000000e+00> : vector<8x32xf32>
    %200 = tpu.matmul %197, %199, %cst_164 {dimension_numbers = #tpu.dot_dimension_numbers<[1], [0], [0], [1], [0, 0, 1, 1], [], []>} : vector<8x16xbf16>, vector<16x32xbf16>, vector<8x32xf32> -> vector<8x32xf32>
    %201 = arith.addf %193, %200 : vector<8x32xf32>
    %c4_165 = arith.constant 4 : index
    %c0_166 = arith.constant 0 : index
    %c0_167 = arith.constant 0 : index
    %202 = vector.load %arg7[%c4_165, %c0_166, %c0_167] : memref<16x8x32xbf16, #tpu.memory_space<vmem>>, vector<1x8x32xbf16>
    %203 = vector.shape_cast %202 : vector<1x8x32xbf16> to vector<8x32xbf16>
    %cst_168 = arith.constant dense<0.000000e+00> : vector<8x16xf32>
    %204 = tpu.matmul %203, %168, %cst_168 {dimension_numbers = #tpu.dot_dimension_numbers<[1], [0], [0], [1], [0, 0, 1, 1], [], []>} : vector<8x32xbf16>, vector<32x16xbf16>, vector<8x16xf32> -> vector<8x16xf32>
    %205 = arith.truncf %204 : vector<8x16xf32> to vector<8x16xbf16>
    %c4_169 = arith.constant 4 : index
    %c0_170 = arith.constant 0 : index
    %c0_171 = arith.constant 0 : index
    %206 = vector.load %arg8[%c4_169, %c0_170, %c0_171] : memref<16x16x32xbf16, #tpu.memory_space<vmem>>, vector<1x16x32xbf16>
    %207 = vector.shape_cast %206 : vector<1x16x32xbf16> to vector<16x32xbf16>
    %cst_172 = arith.constant dense<0.000000e+00> : vector<8x32xf32>
    %208 = tpu.matmul %205, %207, %cst_172 {dimension_numbers = #tpu.dot_dimension_numbers<[1], [0], [0], [1], [0, 0, 1, 1], [], []>} : vector<8x16xbf16>, vector<16x32xbf16>, vector<8x32xf32> -> vector<8x32xf32>
    %209 = arith.addf %201, %208 : vector<8x32xf32>
    %c5_173 = arith.constant 5 : index
    %c0_174 = arith.constant 0 : index
    %c0_175 = arith.constant 0 : index
    %210 = vector.load %arg7[%c5_173, %c0_174, %c0_175] : memref<16x8x32xbf16, #tpu.memory_space<vmem>>, vector<1x8x32xbf16>
    %211 = vector.shape_cast %210 : vector<1x8x32xbf16> to vector<8x32xbf16>
    %cst_176 = arith.constant dense<0.000000e+00> : vector<8x16xf32>
    %212 = tpu.matmul %211, %168, %cst_176 {dimension_numbers = #tpu.dot_dimension_numbers<[1], [0], [0], [1], [0, 0, 1, 1], [], []>} : vector<8x32xbf16>, vector<32x16xbf16>, vector<8x16xf32> -> vector<8x16xf32>
    %213 = arith.truncf %212 : vector<8x16xf32> to vector<8x16xbf16>
    %c5_177 = arith.constant 5 : index
    %c0_178 = arith.constant 0 : index
    %c0_179 = arith.constant 0 : index
    %214 = vector.load %arg8[%c5_177, %c0_178, %c0_179] : memref<16x16x32xbf16, #tpu.memory_space<vmem>>, vector<1x16x32xbf16>
    %215 = vector.shape_cast %214 : vector<1x16x32xbf16> to vector<16x32xbf16>
    %cst_180 = arith.constant dense<0.000000e+00> : vector<8x32xf32>
    %216 = tpu.matmul %213, %215, %cst_180 {dimension_numbers = #tpu.dot_dimension_numbers<[1], [0], [0], [1], [0, 0, 1, 1], [], []>} : vector<8x16xbf16>, vector<16x32xbf16>, vector<8x32xf32> -> vector<8x32xf32>
    %217 = arith.addf %209, %216 : vector<8x32xf32>
    %c6_181 = arith.constant 6 : index
    %c0_182 = arith.constant 0 : index
    %c0_183 = arith.constant 0 : index
    %218 = vector.load %arg7[%c6_181, %c0_182, %c0_183] : memref<16x8x32xbf16, #tpu.memory_space<vmem>>, vector<1x8x32xbf16>
    %219 = vector.shape_cast %218 : vector<1x8x32xbf16> to vector<8x32xbf16>
    %cst_184 = arith.constant dense<0.000000e+00> : vector<8x16xf32>
    %220 = tpu.matmul %219, %168, %cst_184 {dimension_numbers = #tpu.dot_dimension_numbers<[1], [0], [0], [1], [0, 0, 1, 1], [], []>} : vector<8x32xbf16>, vector<32x16xbf16>, vector<8x16xf32> -> vector<8x16xf32>
    %221 = arith.truncf %220 : vector<8x16xf32> to vector<8x16xbf16>
    %c6_185 = arith.constant 6 : index
    %c0_186 = arith.constant 0 : index
    %c0_187 = arith.constant 0 : index
    %222 = vector.load %arg8[%c6_185, %c0_186, %c0_187] : memref<16x16x32xbf16, #tpu.memory_space<vmem>>, vector<1x16x32xbf16>
    %223 = vector.shape_cast %222 : vector<1x16x32xbf16> to vector<16x32xbf16>
    %cst_188 = arith.constant dense<0.000000e+00> : vector<8x32xf32>
    %224 = tpu.matmul %221, %223, %cst_188 {dimension_numbers = #tpu.dot_dimension_numbers<[1], [0], [0], [1], [0, 0, 1, 1], [], []>} : vector<8x16xbf16>, vector<16x32xbf16>, vector<8x32xf32> -> vector<8x32xf32>
    %225 = arith.addf %217, %224 : vector<8x32xf32>
    %c7_189 = arith.constant 7 : index
    %c0_190 = arith.constant 0 : index
    %c0_191 = arith.constant 0 : index
    %226 = vector.load %arg7[%c7_189, %c0_190, %c0_191] : memref<16x8x32xbf16, #tpu.memory_space<vmem>>, vector<1x8x32xbf16>
    %227 = vector.shape_cast %226 : vector<1x8x32xbf16> to vector<8x32xbf16>
    %cst_192 = arith.constant dense<0.000000e+00> : vector<8x16xf32>
    %228 = tpu.matmul %227, %168, %cst_192 {dimension_numbers = #tpu.dot_dimension_numbers<[1], [0], [0], [1], [0, 0, 1, 1], [], []>} : vector<8x32xbf16>, vector<32x16xbf16>, vector<8x16xf32> -> vector<8x16xf32>
    %229 = arith.truncf %228 : vector<8x16xf32> to vector<8x16xbf16>
    %c7_193 = arith.constant 7 : index
    %c0_194 = arith.constant 0 : index
    %c0_195 = arith.constant 0 : index
    %230 = vector.load %arg8[%c7_193, %c0_194, %c0_195] : memref<16x16x32xbf16, #tpu.memory_space<vmem>>, vector<1x16x32xbf16>
    %231 = vector.shape_cast %230 : vector<1x16x32xbf16> to vector<16x32xbf16>
    %cst_196 = arith.constant dense<0.000000e+00> : vector<8x32xf32>
    %232 = tpu.matmul %229, %231, %cst_196 {dimension_numbers = #tpu.dot_dimension_numbers<[1], [0], [0], [1], [0, 0, 1, 1], [], []>} : vector<8x16xbf16>, vector<16x32xbf16>, vector<8x32xf32> -> vector<8x32xf32>
    %233 = arith.addf %225, %232 : vector<8x32xf32>
    %c8_197 = arith.constant 8 : index
    %c0_198 = arith.constant 0 : index
    %c0_199 = arith.constant 0 : index
    %234 = vector.load %arg7[%c8_197, %c0_198, %c0_199] : memref<16x8x32xbf16, #tpu.memory_space<vmem>>, vector<1x8x32xbf16>
    %235 = vector.shape_cast %234 : vector<1x8x32xbf16> to vector<8x32xbf16>
    %cst_200 = arith.constant dense<0.000000e+00> : vector<8x16xf32>
    %236 = tpu.matmul %235, %168, %cst_200 {dimension_numbers = #tpu.dot_dimension_numbers<[1], [0], [0], [1], [0, 0, 1, 1], [], []>} : vector<8x32xbf16>, vector<32x16xbf16>, vector<8x16xf32> -> vector<8x16xf32>
    %237 = arith.truncf %236 : vector<8x16xf32> to vector<8x16xbf16>
    %c8_201 = arith.constant 8 : index
    %c0_202 = arith.constant 0 : index
    %c0_203 = arith.constant 0 : index
    %238 = vector.load %arg8[%c8_201, %c0_202, %c0_203] : memref<16x16x32xbf16, #tpu.memory_space<vmem>>, vector<1x16x32xbf16>
    %239 = vector.shape_cast %238 : vector<1x16x32xbf16> to vector<16x32xbf16>
    %cst_204 = arith.constant dense<0.000000e+00> : vector<8x32xf32>
    %240 = tpu.matmul %237, %239, %cst_204 {dimension_numbers = #tpu.dot_dimension_numbers<[1], [0], [0], [1], [0, 0, 1, 1], [], []>} : vector<8x16xbf16>, vector<16x32xbf16>, vector<8x32xf32> -> vector<8x32xf32>
    %241 = arith.addf %233, %240 : vector<8x32xf32>
    %c9_205 = arith.constant 9 : index
    %c0_206 = arith.constant 0 : index
    %c0_207 = arith.constant 0 : index
    %242 = vector.load %arg7[%c9_205, %c0_206, %c0_207] : memref<16x8x32xbf16, #tpu.memory_space<vmem>>, vector<1x8x32xbf16>
    %243 = vector.shape_cast %242 : vector<1x8x32xbf16> to vector<8x32xbf16>
    %cst_208 = arith.constant dense<0.000000e+00> : vector<8x16xf32>
    %244 = tpu.matmul %243, %168, %cst_208 {dimension_numbers = #tpu.dot_dimension_numbers<[1], [0], [0], [1], [0, 0, 1, 1], [], []>} : vector<8x32xbf16>, vector<32x16xbf16>, vector<8x16xf32> -> vector<8x16xf32>
    %245 = arith.truncf %244 : vector<8x16xf32> to vector<8x16xbf16>
    %c9_209 = arith.constant 9 : index
    %c0_210 = arith.constant 0 : index
    %c0_211 = arith.constant 0 : index
    %246 = vector.load %arg8[%c9_209, %c0_210, %c0_211] : memref<16x16x32xbf16, #tpu.memory_space<vmem>>, vector<1x16x32xbf16>
    %247 = vector.shape_cast %246 : vector<1x16x32xbf16> to vector<16x32xbf16>
    %cst_212 = arith.constant dense<0.000000e+00> : vector<8x32xf32>
    %248 = tpu.matmul %245, %247, %cst_212 {dimension_numbers = #tpu.dot_dimension_numbers<[1], [0], [0], [1], [0, 0, 1, 1], [], []>} : vector<8x16xbf16>, vector<16x32xbf16>, vector<8x32xf32> -> vector<8x32xf32>
    %249 = arith.addf %241, %248 : vector<8x32xf32>
    %c10_213 = arith.constant 10 : index
    %c0_214 = arith.constant 0 : index
    %c0_215 = arith.constant 0 : index
    %250 = vector.load %arg7[%c10_213, %c0_214, %c0_215] : memref<16x8x32xbf16, #tpu.memory_space<vmem>>, vector<1x8x32xbf16>
    %251 = vector.shape_cast %250 : vector<1x8x32xbf16> to vector<8x32xbf16>
    %cst_216 = arith.constant dense<0.000000e+00> : vector<8x16xf32>
    %252 = tpu.matmul %251, %168, %cst_216 {dimension_numbers = #tpu.dot_dimension_numbers<[1], [0], [0], [1], [0, 0, 1, 1], [], []>} : vector<8x32xbf16>, vector<32x16xbf16>, vector<8x16xf32> -> vector<8x16xf32>
    %253 = arith.truncf %252 : vector<8x16xf32> to vector<8x16xbf16>
    %c10_217 = arith.constant 10 : index
    %c0_218 = arith.constant 0 : index
    %c0_219 = arith.constant 0 : index
    %254 = vector.load %arg8[%c10_217, %c0_218, %c0_219] : memref<16x16x32xbf16, #tpu.memory_space<vmem>>, vector<1x16x32xbf16>
    %255 = vector.shape_cast %254 : vector<1x16x32xbf16> to vector<16x32xbf16>
    %cst_220 = arith.constant dense<0.000000e+00> : vector<8x32xf32>
    %256 = tpu.matmul %253, %255, %cst_220 {dimension_numbers = #tpu.dot_dimension_numbers<[1], [0], [0], [1], [0, 0, 1, 1], [], []>} : vector<8x16xbf16>, vector<16x32xbf16>, vector<8x32xf32> -> vector<8x32xf32>
    %257 = arith.addf %249, %256 : vector<8x32xf32>
    %c11_221 = arith.constant 11 : index
    %c0_222 = arith.constant 0 : index
    %c0_223 = arith.constant 0 : index
    %258 = vector.load %arg7[%c11_221, %c0_222, %c0_223] : memref<16x8x32xbf16, #tpu.memory_space<vmem>>, vector<1x8x32xbf16>
    %259 = vector.shape_cast %258 : vector<1x8x32xbf16> to vector<8x32xbf16>
    %cst_224 = arith.constant dense<0.000000e+00> : vector<8x16xf32>
    %260 = tpu.matmul %259, %168, %cst_224 {dimension_numbers = #tpu.dot_dimension_numbers<[1], [0], [0], [1], [0, 0, 1, 1], [], []>} : vector<8x32xbf16>, vector<32x16xbf16>, vector<8x16xf32> -> vector<8x16xf32>
    %261 = arith.truncf %260 : vector<8x16xf32> to vector<8x16xbf16>
    %c11_225 = arith.constant 11 : index
    %c0_226 = arith.constant 0 : index
    %c0_227 = arith.constant 0 : index
    %262 = vector.load %arg8[%c11_225, %c0_226, %c0_227] : memref<16x16x32xbf16, #tpu.memory_space<vmem>>, vector<1x16x32xbf16>
    %263 = vector.shape_cast %262 : vector<1x16x32xbf16> to vector<16x32xbf16>
    %cst_228 = arith.constant dense<0.000000e+00> : vector<8x32xf32>
    %264 = tpu.matmul %261, %263, %cst_228 {dimension_numbers = #tpu.dot_dimension_numbers<[1], [0], [0], [1], [0, 0, 1, 1], [], []>} : vector<8x16xbf16>, vector<16x32xbf16>, vector<8x32xf32> -> vector<8x32xf32>
    %265 = arith.addf %257, %264 : vector<8x32xf32>
    %c12_229 = arith.constant 12 : index
    %c0_230 = arith.constant 0 : index
    %c0_231 = arith.constant 0 : index
    %266 = vector.load %arg7[%c12_229, %c0_230, %c0_231] : memref<16x8x32xbf16, #tpu.memory_space<vmem>>, vector<1x8x32xbf16>
    %267 = vector.shape_cast %266 : vector<1x8x32xbf16> to vector<8x32xbf16>
    %cst_232 = arith.constant dense<0.000000e+00> : vector<8x16xf32>
    %268 = tpu.matmul %267, %168, %cst_232 {dimension_numbers = #tpu.dot_dimension_numbers<[1], [0], [0], [1], [0, 0, 1, 1], [], []>} : vector<8x32xbf16>, vector<32x16xbf16>, vector<8x16xf32> -> vector<8x16xf32>
    %269 = arith.truncf %268 : vector<8x16xf32> to vector<8x16xbf16>
    %c12_233 = arith.constant 12 : index
    %c0_234 = arith.constant 0 : index
    %c0_235 = arith.constant 0 : index
    %270 = vector.load %arg8[%c12_233, %c0_234, %c0_235] : memref<16x16x32xbf16, #tpu.memory_space<vmem>>, vector<1x16x32xbf16>
    %271 = vector.shape_cast %270 : vector<1x16x32xbf16> to vector<16x32xbf16>
    %cst_236 = arith.constant dense<0.000000e+00> : vector<8x32xf32>
    %272 = tpu.matmul %269, %271, %cst_236 {dimension_numbers = #tpu.dot_dimension_numbers<[1], [0], [0], [1], [0, 0, 1, 1], [], []>} : vector<8x16xbf16>, vector<16x32xbf16>, vector<8x32xf32> -> vector<8x32xf32>
    %273 = arith.addf %265, %272 : vector<8x32xf32>
    %c13_237 = arith.constant 13 : index
    %c0_238 = arith.constant 0 : index
    %c0_239 = arith.constant 0 : index
    %274 = vector.load %arg7[%c13_237, %c0_238, %c0_239] : memref<16x8x32xbf16, #tpu.memory_space<vmem>>, vector<1x8x32xbf16>
    %275 = vector.shape_cast %274 : vector<1x8x32xbf16> to vector<8x32xbf16>
    %cst_240 = arith.constant dense<0.000000e+00> : vector<8x16xf32>
    %276 = tpu.matmul %275, %168, %cst_240 {dimension_numbers = #tpu.dot_dimension_numbers<[1], [0], [0], [1], [0, 0, 1, 1], [], []>} : vector<8x32xbf16>, vector<32x16xbf16>, vector<8x16xf32> -> vector<8x16xf32>
    %277 = arith.truncf %276 : vector<8x16xf32> to vector<8x16xbf16>
    %c13_241 = arith.constant 13 : index
    %c0_242 = arith.constant 0 : index
    %c0_243 = arith.constant 0 : index
    %278 = vector.load %arg8[%c13_241, %c0_242, %c0_243] : memref<16x16x32xbf16, #tpu.memory_space<vmem>>, vector<1x16x32xbf16>
    %279 = vector.shape_cast %278 : vector<1x16x32xbf16> to vector<16x32xbf16>
    %cst_244 = arith.constant dense<0.000000e+00> : vector<8x32xf32>
    %280 = tpu.matmul %277, %279, %cst_244 {dimension_numbers = #tpu.dot_dimension_numbers<[1], [0], [0], [1], [0, 0, 1, 1], [], []>} : vector<8x16xbf16>, vector<16x32xbf16>, vector<8x32xf32> -> vector<8x32xf32>
    %281 = arith.addf %273, %280 : vector<8x32xf32>
    %c14_245 = arith.constant 14 : index
    %c0_246 = arith.constant 0 : index
    %c0_247 = arith.constant 0 : index
    %282 = vector.load %arg7[%c14_245, %c0_246, %c0_247] : memref<16x8x32xbf16, #tpu.memory_space<vmem>>, vector<1x8x32xbf16>
    %283 = vector.shape_cast %282 : vector<1x8x32xbf16> to vector<8x32xbf16>
    %cst_248 = arith.constant dense<0.000000e+00> : vector<8x16xf32>
    %284 = tpu.matmul %283, %168, %cst_248 {dimension_numbers = #tpu.dot_dimension_numbers<[1], [0], [0], [1], [0, 0, 1, 1], [], []>} : vector<8x32xbf16>, vector<32x16xbf16>, vector<8x16xf32> -> vector<8x16xf32>
    %285 = arith.truncf %284 : vector<8x16xf32> to vector<8x16xbf16>
    %c14_249 = arith.constant 14 : index
    %c0_250 = arith.constant 0 : index
    %c0_251 = arith.constant 0 : index
    %286 = vector.load %arg8[%c14_249, %c0_250, %c0_251] : memref<16x16x32xbf16, #tpu.memory_space<vmem>>, vector<1x16x32xbf16>
    %287 = vector.shape_cast %286 : vector<1x16x32xbf16> to vector<16x32xbf16>
    %cst_252 = arith.constant dense<0.000000e+00> : vector<8x32xf32>
    %288 = tpu.matmul %285, %287, %cst_252 {dimension_numbers = #tpu.dot_dimension_numbers<[1], [0], [0], [1], [0, 0, 1, 1], [], []>} : vector<8x16xbf16>, vector<16x32xbf16>, vector<8x32xf32> -> vector<8x32xf32>
    %289 = arith.addf %281, %288 : vector<8x32xf32>
    %c15_253 = arith.constant 15 : index
    %c0_254 = arith.constant 0 : index
    %c0_255 = arith.constant 0 : index
    %290 = vector.load %arg7[%c15_253, %c0_254, %c0_255] : memref<16x8x32xbf16, #tpu.memory_space<vmem>>, vector<1x8x32xbf16>
    %291 = vector.shape_cast %290 : vector<1x8x32xbf16> to vector<8x32xbf16>
    %cst_256 = arith.constant dense<0.000000e+00> : vector<8x16xf32>
    %292 = tpu.matmul %291, %168, %cst_256 {dimension_numbers = #tpu.dot_dimension_numbers<[1], [0], [0], [1], [0, 0, 1, 1], [], []>} : vector<8x32xbf16>, vector<32x16xbf16>, vector<8x16xf32> -> vector<8x16xf32>
    %293 = arith.truncf %292 : vector<8x16xf32> to vector<8x16xbf16>
    %c15_257 = arith.constant 15 : index
    %c0_258 = arith.constant 0 : index
    %c0_259 = arith.constant 0 : index
    %294 = vector.load %arg8[%c15_257, %c0_258, %c0_259] : memref<16x16x32xbf16, #tpu.memory_space<vmem>>, vector<1x16x32xbf16>
    %295 = vector.shape_cast %294 : vector<1x16x32xbf16> to vector<16x32xbf16>
    %cst_260 = arith.constant dense<0.000000e+00> : vector<8x32xf32>
    %296 = tpu.matmul %293, %295, %cst_260 {dimension_numbers = #tpu.dot_dimension_numbers<[1], [0], [0], [1], [0, 0, 1, 1], [], []>} : vector<8x16xbf16>, vector<16x32xbf16>, vector<8x32xf32> -> vector<8x32xf32>
    %297 = arith.addf %289, %296 : vector<8x32xf32>
    %c0_261 = arith.constant 0 : index
    %c0_262 = arith.constant 0 : index
    %298 = vector.load %arg9[%c0_261, %c0_262] : memref<1x32xf32, #tpu.memory_space<vmem>>, vector<1x32xf32>
    %299 = vector.broadcast %298 : vector<1x32xf32> to vector<8x32xf32>
    %300 = arith.addf %297, %299 : vector<8x32xf32>
    %cst_263 = arith.constant dense<0.000000e+00> : vector<32xf32>
    %301 = vector.multi_reduction <add>, %300, %cst_263 [0] : vector<8x32xf32> to vector<32xf32>
    %302 = vector.shape_cast %301 : vector<32xf32> to vector<1x32xf32>
    %cst_264 = arith.constant 8.000000e+00 : f32
    %303 = vector.broadcast %cst_264 : f32 to vector<1x32xf32>
    %304 = arith.divf %302, %303 : vector<1x32xf32>
    %305 = vector.broadcast %304 : vector<1x32xf32> to vector<8x32xf32>
    %306 = arith.subf %300, %305 : vector<8x32xf32>
    %307 = arith.mulf %306, %306 : vector<8x32xf32>
    %cst_265 = arith.constant dense<0.000000e+00> : vector<32xf32>
    %308 = vector.multi_reduction <add>, %307, %cst_265 [0] : vector<8x32xf32> to vector<32xf32>
    %309 = vector.shape_cast %308 : vector<32xf32> to vector<1x32xf32>
    %cst_266 = arith.constant 8.000000e+00 : f32
    %310 = vector.broadcast %cst_266 : f32 to vector<1x32xf32>
    %311 = arith.divf %309, %310 : vector<1x32xf32>
    %cst_267 = arith.constant 8.000000e-01 : f32
    %312 = vector.broadcast %cst_267 : f32 to vector<1x32xf32>
    %313 = arith.addf %311, %312 : vector<1x32xf32>
    %314 = math.rsqrt %313 : vector<1x32xf32>
    %315 = vector.broadcast %314 : vector<1x32xf32> to vector<8x32xf32>
    %316 = arith.mulf %306, %315 : vector<8x32xf32>
    %c0_268 = arith.constant 0 : index
    %c0_269 = arith.constant 0 : index
    %317 = vector.load %arg10[%c0_268, %c0_269] : memref<1x32xf32, #tpu.memory_space<vmem>>, vector<1x32xf32>
    %318 = vector.broadcast %317 : vector<1x32xf32> to vector<8x32xf32>
    %319 = arith.mulf %316, %318 : vector<8x32xf32>
    %c0_270 = arith.constant 0 : index
    %c0_271 = arith.constant 0 : index
    %320 = vector.load %arg11[%c0_270, %c0_271] : memref<1x32xf32, #tpu.memory_space<vmem>>, vector<1x32xf32>
    %321 = vector.broadcast %320 : vector<1x32xf32> to vector<8x32xf32>
    %322 = arith.addf %319, %321 : vector<8x32xf32>
    %cst_272 = arith.constant 0.000000e+00 : f32
    %323 = vector.broadcast %cst_272 : f32 to vector<8x32xf32>
    %324 = arith.cmpf oge, %322, %323 : vector<8x32xf32>
    %cst_273 = arith.constant 1.000000e-01 : f32
    %325 = vector.broadcast %cst_273 : f32 to vector<8x32xf32>
    %326 = arith.mulf %325, %322 : vector<8x32xf32>
    %327 = arith.select %324, %322, %326 : vector<8x32xi1>, vector<8x32xf32>
    %328 = arith.truncf %327 : vector<8x32xf32> to vector<8x32xbf16>
    %cst_274 = arith.constant 0.000000e+00 : f32
    %329 = vector.broadcast %cst_274 : f32 to vector<2x64xf32>
    %c0_275 = arith.constant 0 : index
    %c0_276 = arith.constant 0 : index
    %c0_277 = arith.constant 0 : index
    %330 = vector.load %arg12[%c0_275, %c0_276, %c0_277] : memref<16x2x8xbf16, #tpu.memory_space<vmem>>, vector<1x2x8xbf16>
    %331 = vector.shape_cast %330 : vector<1x2x8xbf16> to vector<2x8xbf16>
    %cst_278 = arith.constant dense<0.000000e+00> : vector<2x32xf32>
    %332 = tpu.matmul %331, %328, %cst_278 {dimension_numbers = #tpu.dot_dimension_numbers<[1], [0], [0], [1], [0, 0, 1, 1], [], []>} : vector<2x8xbf16>, vector<8x32xbf16>, vector<2x32xf32> -> vector<2x32xf32>
    %333 = arith.truncf %332 : vector<2x32xf32> to vector<2x32xbf16>
    %c0_279 = arith.constant 0 : index
    %c0_280 = arith.constant 0 : index
    %c0_281 = arith.constant 0 : index
    %334 = vector.load %arg13[%c0_279, %c0_280, %c0_281] : memref<16x32x64xbf16, #tpu.memory_space<vmem>>, vector<1x32x64xbf16>
    %335 = vector.shape_cast %334 : vector<1x32x64xbf16> to vector<32x64xbf16>
    %cst_282 = arith.constant dense<0.000000e+00> : vector<2x64xf32>
    %336 = tpu.matmul %333, %335, %cst_282 {dimension_numbers = #tpu.dot_dimension_numbers<[1], [0], [0], [1], [0, 0, 1, 1], [], []>} : vector<2x32xbf16>, vector<32x64xbf16>, vector<2x64xf32> -> vector<2x64xf32>
    %337 = arith.addf %329, %336 : vector<2x64xf32>
    %c1_283 = arith.constant 1 : index
    %c0_284 = arith.constant 0 : index
    %c0_285 = arith.constant 0 : index
    %338 = vector.load %arg12[%c1_283, %c0_284, %c0_285] : memref<16x2x8xbf16, #tpu.memory_space<vmem>>, vector<1x2x8xbf16>
    %339 = vector.shape_cast %338 : vector<1x2x8xbf16> to vector<2x8xbf16>
    %cst_286 = arith.constant dense<0.000000e+00> : vector<2x32xf32>
    %340 = tpu.matmul %339, %328, %cst_286 {dimension_numbers = #tpu.dot_dimension_numbers<[1], [0], [0], [1], [0, 0, 1, 1], [], []>} : vector<2x8xbf16>, vector<8x32xbf16>, vector<2x32xf32> -> vector<2x32xf32>
    %341 = arith.truncf %340 : vector<2x32xf32> to vector<2x32xbf16>
    %c1_287 = arith.constant 1 : index
    %c0_288 = arith.constant 0 : index
    %c0_289 = arith.constant 0 : index
    %342 = vector.load %arg13[%c1_287, %c0_288, %c0_289] : memref<16x32x64xbf16, #tpu.memory_space<vmem>>, vector<1x32x64xbf16>
    %343 = vector.shape_cast %342 : vector<1x32x64xbf16> to vector<32x64xbf16>
    %cst_290 = arith.constant dense<0.000000e+00> : vector<2x64xf32>
    %344 = tpu.matmul %341, %343, %cst_290 {dimension_numbers = #tpu.dot_dimension_numbers<[1], [0], [0], [1], [0, 0, 1, 1], [], []>} : vector<2x32xbf16>, vector<32x64xbf16>, vector<2x64xf32> -> vector<2x64xf32>
    %345 = arith.addf %337, %344 : vector<2x64xf32>
    %c2_291 = arith.constant 2 : index
    %c0_292 = arith.constant 0 : index
    %c0_293 = arith.constant 0 : index
    %346 = vector.load %arg12[%c2_291, %c0_292, %c0_293] : memref<16x2x8xbf16, #tpu.memory_space<vmem>>, vector<1x2x8xbf16>
    %347 = vector.shape_cast %346 : vector<1x2x8xbf16> to vector<2x8xbf16>
    %cst_294 = arith.constant dense<0.000000e+00> : vector<2x32xf32>
    %348 = tpu.matmul %347, %328, %cst_294 {dimension_numbers = #tpu.dot_dimension_numbers<[1], [0], [0], [1], [0, 0, 1, 1], [], []>} : vector<2x8xbf16>, vector<8x32xbf16>, vector<2x32xf32> -> vector<2x32xf32>
    %349 = arith.truncf %348 : vector<2x32xf32> to vector<2x32xbf16>
    %c2_295 = arith.constant 2 : index
    %c0_296 = arith.constant 0 : index
    %c0_297 = arith.constant 0 : index
    %350 = vector.load %arg13[%c2_295, %c0_296, %c0_297] : memref<16x32x64xbf16, #tpu.memory_space<vmem>>, vector<1x32x64xbf16>
    %351 = vector.shape_cast %350 : vector<1x32x64xbf16> to vector<32x64xbf16>
    %cst_298 = arith.constant dense<0.000000e+00> : vector<2x64xf32>
    %352 = tpu.matmul %349, %351, %cst_298 {dimension_numbers = #tpu.dot_dimension_numbers<[1], [0], [0], [1], [0, 0, 1, 1], [], []>} : vector<2x32xbf16>, vector<32x64xbf16>, vector<2x64xf32> -> vector<2x64xf32>
    %353 = arith.addf %345, %352 : vector<2x64xf32>
    %c3_299 = arith.constant 3 : index
    %c0_300 = arith.constant 0 : index
    %c0_301 = arith.constant 0 : index
    %354 = vector.load %arg12[%c3_299, %c0_300, %c0_301] : memref<16x2x8xbf16, #tpu.memory_space<vmem>>, vector<1x2x8xbf16>
    %355 = vector.shape_cast %354 : vector<1x2x8xbf16> to vector<2x8xbf16>
    %cst_302 = arith.constant dense<0.000000e+00> : vector<2x32xf32>
    %356 = tpu.matmul %355, %328, %cst_302 {dimension_numbers = #tpu.dot_dimension_numbers<[1], [0], [0], [1], [0, 0, 1, 1], [], []>} : vector<2x8xbf16>, vector<8x32xbf16>, vector<2x32xf32> -> vector<2x32xf32>
    %357 = arith.truncf %356 : vector<2x32xf32> to vector<2x32xbf16>
    %c3_303 = arith.constant 3 : index
    %c0_304 = arith.constant 0 : index
    %c0_305 = arith.constant 0 : index
    %358 = vector.load %arg13[%c3_303, %c0_304, %c0_305] : memref<16x32x64xbf16, #tpu.memory_space<vmem>>, vector<1x32x64xbf16>
    %359 = vector.shape_cast %358 : vector<1x32x64xbf16> to vector<32x64xbf16>
    %cst_306 = arith.constant dense<0.000000e+00> : vector<2x64xf32>
    %360 = tpu.matmul %357, %359, %cst_306 {dimension_numbers = #tpu.dot_dimension_numbers<[1], [0], [0], [1], [0, 0, 1, 1], [], []>} : vector<2x32xbf16>, vector<32x64xbf16>, vector<2x64xf32> -> vector<2x64xf32>
    %361 = arith.addf %353, %360 : vector<2x64xf32>
    %c4_307 = arith.constant 4 : index
    %c0_308 = arith.constant 0 : index
    %c0_309 = arith.constant 0 : index
    %362 = vector.load %arg12[%c4_307, %c0_308, %c0_309] : memref<16x2x8xbf16, #tpu.memory_space<vmem>>, vector<1x2x8xbf16>
    %363 = vector.shape_cast %362 : vector<1x2x8xbf16> to vector<2x8xbf16>
    %cst_310 = arith.constant dense<0.000000e+00> : vector<2x32xf32>
    %364 = tpu.matmul %363, %328, %cst_310 {dimension_numbers = #tpu.dot_dimension_numbers<[1], [0], [0], [1], [0, 0, 1, 1], [], []>} : vector<2x8xbf16>, vector<8x32xbf16>, vector<2x32xf32> -> vector<2x32xf32>
    %365 = arith.truncf %364 : vector<2x32xf32> to vector<2x32xbf16>
    %c4_311 = arith.constant 4 : index
    %c0_312 = arith.constant 0 : index
    %c0_313 = arith.constant 0 : index
    %366 = vector.load %arg13[%c4_311, %c0_312, %c0_313] : memref<16x32x64xbf16, #tpu.memory_space<vmem>>, vector<1x32x64xbf16>
    %367 = vector.shape_cast %366 : vector<1x32x64xbf16> to vector<32x64xbf16>
    %cst_314 = arith.constant dense<0.000000e+00> : vector<2x64xf32>
    %368 = tpu.matmul %365, %367, %cst_314 {dimension_numbers = #tpu.dot_dimension_numbers<[1], [0], [0], [1], [0, 0, 1, 1], [], []>} : vector<2x32xbf16>, vector<32x64xbf16>, vector<2x64xf32> -> vector<2x64xf32>
    %369 = arith.addf %361, %368 : vector<2x64xf32>
    %c5_315 = arith.constant 5 : index
    %c0_316 = arith.constant 0 : index
    %c0_317 = arith.constant 0 : index
    %370 = vector.load %arg12[%c5_315, %c0_316, %c0_317] : memref<16x2x8xbf16, #tpu.memory_space<vmem>>, vector<1x2x8xbf16>
    %371 = vector.shape_cast %370 : vector<1x2x8xbf16> to vector<2x8xbf16>
    %cst_318 = arith.constant dense<0.000000e+00> : vector<2x32xf32>
    %372 = tpu.matmul %371, %328, %cst_318 {dimension_numbers = #tpu.dot_dimension_numbers<[1], [0], [0], [1], [0, 0, 1, 1], [], []>} : vector<2x8xbf16>, vector<8x32xbf16>, vector<2x32xf32> -> vector<2x32xf32>
    %373 = arith.truncf %372 : vector<2x32xf32> to vector<2x32xbf16>
    %c5_319 = arith.constant 5 : index
    %c0_320 = arith.constant 0 : index
    %c0_321 = arith.constant 0 : index
    %374 = vector.load %arg13[%c5_319, %c0_320, %c0_321] : memref<16x32x64xbf16, #tpu.memory_space<vmem>>, vector<1x32x64xbf16>
    %375 = vector.shape_cast %374 : vector<1x32x64xbf16> to vector<32x64xbf16>
    %cst_322 = arith.constant dense<0.000000e+00> : vector<2x64xf32>
    %376 = tpu.matmul %373, %375, %cst_322 {dimension_numbers = #tpu.dot_dimension_numbers<[1], [0], [0], [1], [0, 0, 1, 1], [], []>} : vector<2x32xbf16>, vector<32x64xbf16>, vector<2x64xf32> -> vector<2x64xf32>
    %377 = arith.addf %369, %376 : vector<2x64xf32>
    %c6_323 = arith.constant 6 : index
    %c0_324 = arith.constant 0 : index
    %c0_325 = arith.constant 0 : index
    %378 = vector.load %arg12[%c6_323, %c0_324, %c0_325] : memref<16x2x8xbf16, #tpu.memory_space<vmem>>, vector<1x2x8xbf16>
    %379 = vector.shape_cast %378 : vector<1x2x8xbf16> to vector<2x8xbf16>
    %cst_326 = arith.constant dense<0.000000e+00> : vector<2x32xf32>
    %380 = tpu.matmul %379, %328, %cst_326 {dimension_numbers = #tpu.dot_dimension_numbers<[1], [0], [0], [1], [0, 0, 1, 1], [], []>} : vector<2x8xbf16>, vector<8x32xbf16>, vector<2x32xf32> -> vector<2x32xf32>
    %381 = arith.truncf %380 : vector<2x32xf32> to vector<2x32xbf16>
    %c6_327 = arith.constant 6 : index
    %c0_328 = arith.constant 0 : index
    %c0_329 = arith.constant 0 : index
    %382 = vector.load %arg13[%c6_327, %c0_328, %c0_329] : memref<16x32x64xbf16, #tpu.memory_space<vmem>>, vector<1x32x64xbf16>
    %383 = vector.shape_cast %382 : vector<1x32x64xbf16> to vector<32x64xbf16>
    %cst_330 = arith.constant dense<0.000000e+00> : vector<2x64xf32>
    %384 = tpu.matmul %381, %383, %cst_330 {dimension_numbers = #tpu.dot_dimension_numbers<[1], [0], [0], [1], [0, 0, 1, 1], [], []>} : vector<2x32xbf16>, vector<32x64xbf16>, vector<2x64xf32> -> vector<2x64xf32>
    %385 = arith.addf %377, %384 : vector<2x64xf32>
    %c7_331 = arith.constant 7 : index
    %c0_332 = arith.constant 0 : index
    %c0_333 = arith.constant 0 : index
    %386 = vector.load %arg12[%c7_331, %c0_332, %c0_333] : memref<16x2x8xbf16, #tpu.memory_space<vmem>>, vector<1x2x8xbf16>
    %387 = vector.shape_cast %386 : vector<1x2x8xbf16> to vector<2x8xbf16>
    %cst_334 = arith.constant dense<0.000000e+00> : vector<2x32xf32>
    %388 = tpu.matmul %387, %328, %cst_334 {dimension_numbers = #tpu.dot_dimension_numbers<[1], [0], [0], [1], [0, 0, 1, 1], [], []>} : vector<2x8xbf16>, vector<8x32xbf16>, vector<2x32xf32> -> vector<2x32xf32>
    %389 = arith.truncf %388 : vector<2x32xf32> to vector<2x32xbf16>
    %c7_335 = arith.constant 7 : index
    %c0_336 = arith.constant 0 : index
    %c0_337 = arith.constant 0 : index
    %390 = vector.load %arg13[%c7_335, %c0_336, %c0_337] : memref<16x32x64xbf16, #tpu.memory_space<vmem>>, vector<1x32x64xbf16>
    %391 = vector.shape_cast %390 : vector<1x32x64xbf16> to vector<32x64xbf16>
    %cst_338 = arith.constant dense<0.000000e+00> : vector<2x64xf32>
    %392 = tpu.matmul %389, %391, %cst_338 {dimension_numbers = #tpu.dot_dimension_numbers<[1], [0], [0], [1], [0, 0, 1, 1], [], []>} : vector<2x32xbf16>, vector<32x64xbf16>, vector<2x64xf32> -> vector<2x64xf32>
    %393 = arith.addf %385, %392 : vector<2x64xf32>
    %c8_339 = arith.constant 8 : index
    %c0_340 = arith.constant 0 : index
    %c0_341 = arith.constant 0 : index
    %394 = vector.load %arg12[%c8_339, %c0_340, %c0_341] : memref<16x2x8xbf16, #tpu.memory_space<vmem>>, vector<1x2x8xbf16>
    %395 = vector.shape_cast %394 : vector<1x2x8xbf16> to vector<2x8xbf16>
    %cst_342 = arith.constant dense<0.000000e+00> : vector<2x32xf32>
    %396 = tpu.matmul %395, %328, %cst_342 {dimension_numbers = #tpu.dot_dimension_numbers<[1], [0], [0], [1], [0, 0, 1, 1], [], []>} : vector<2x8xbf16>, vector<8x32xbf16>, vector<2x32xf32> -> vector<2x32xf32>
    %397 = arith.truncf %396 : vector<2x32xf32> to vector<2x32xbf16>
    %c8_343 = arith.constant 8 : index
    %c0_344 = arith.constant 0 : index
    %c0_345 = arith.constant 0 : index
    %398 = vector.load %arg13[%c8_343, %c0_344, %c0_345] : memref<16x32x64xbf16, #tpu.memory_space<vmem>>, vector<1x32x64xbf16>
    %399 = vector.shape_cast %398 : vector<1x32x64xbf16> to vector<32x64xbf16>
    %cst_346 = arith.constant dense<0.000000e+00> : vector<2x64xf32>
    %400 = tpu.matmul %397, %399, %cst_346 {dimension_numbers = #tpu.dot_dimension_numbers<[1], [0], [0], [1], [0, 0, 1, 1], [], []>} : vector<2x32xbf16>, vector<32x64xbf16>, vector<2x64xf32> -> vector<2x64xf32>
    %401 = arith.addf %393, %400 : vector<2x64xf32>
    %c9_347 = arith.constant 9 : index
    %c0_348 = arith.constant 0 : index
    %c0_349 = arith.constant 0 : index
    %402 = vector.load %arg12[%c9_347, %c0_348, %c0_349] : memref<16x2x8xbf16, #tpu.memory_space<vmem>>, vector<1x2x8xbf16>
    %403 = vector.shape_cast %402 : vector<1x2x8xbf16> to vector<2x8xbf16>
    %cst_350 = arith.constant dense<0.000000e+00> : vector<2x32xf32>
    %404 = tpu.matmul %403, %328, %cst_350 {dimension_numbers = #tpu.dot_dimension_numbers<[1], [0], [0], [1], [0, 0, 1, 1], [], []>} : vector<2x8xbf16>, vector<8x32xbf16>, vector<2x32xf32> -> vector<2x32xf32>
    %405 = arith.truncf %404 : vector<2x32xf32> to vector<2x32xbf16>
    %c9_351 = arith.constant 9 : index
    %c0_352 = arith.constant 0 : index
    %c0_353 = arith.constant 0 : index
    %406 = vector.load %arg13[%c9_351, %c0_352, %c0_353] : memref<16x32x64xbf16, #tpu.memory_space<vmem>>, vector<1x32x64xbf16>
    %407 = vector.shape_cast %406 : vector<1x32x64xbf16> to vector<32x64xbf16>
    %cst_354 = arith.constant dense<0.000000e+00> : vector<2x64xf32>
    %408 = tpu.matmul %405, %407, %cst_354 {dimension_numbers = #tpu.dot_dimension_numbers<[1], [0], [0], [1], [0, 0, 1, 1], [], []>} : vector<2x32xbf16>, vector<32x64xbf16>, vector<2x64xf32> -> vector<2x64xf32>
    %409 = arith.addf %401, %408 : vector<2x64xf32>
    %c10_355 = arith.constant 10 : index
    %c0_356 = arith.constant 0 : index
    %c0_357 = arith.constant 0 : index
    %410 = vector.load %arg12[%c10_355, %c0_356, %c0_357] : memref<16x2x8xbf16, #tpu.memory_space<vmem>>, vector<1x2x8xbf16>
    %411 = vector.shape_cast %410 : vector<1x2x8xbf16> to vector<2x8xbf16>
    %cst_358 = arith.constant dense<0.000000e+00> : vector<2x32xf32>
    %412 = tpu.matmul %411, %328, %cst_358 {dimension_numbers = #tpu.dot_dimension_numbers<[1], [0], [0], [1], [0, 0, 1, 1], [], []>} : vector<2x8xbf16>, vector<8x32xbf16>, vector<2x32xf32> -> vector<2x32xf32>
    %413 = arith.truncf %412 : vector<2x32xf32> to vector<2x32xbf16>
    %c10_359 = arith.constant 10 : index
    %c0_360 = arith.constant 0 : index
    %c0_361 = arith.constant 0 : index
    %414 = vector.load %arg13[%c10_359, %c0_360, %c0_361] : memref<16x32x64xbf16, #tpu.memory_space<vmem>>, vector<1x32x64xbf16>
    %415 = vector.shape_cast %414 : vector<1x32x64xbf16> to vector<32x64xbf16>
    %cst_362 = arith.constant dense<0.000000e+00> : vector<2x64xf32>
    %416 = tpu.matmul %413, %415, %cst_362 {dimension_numbers = #tpu.dot_dimension_numbers<[1], [0], [0], [1], [0, 0, 1, 1], [], []>} : vector<2x32xbf16>, vector<32x64xbf16>, vector<2x64xf32> -> vector<2x64xf32>
    %417 = arith.addf %409, %416 : vector<2x64xf32>
    %c11_363 = arith.constant 11 : index
    %c0_364 = arith.constant 0 : index
    %c0_365 = arith.constant 0 : index
    %418 = vector.load %arg12[%c11_363, %c0_364, %c0_365] : memref<16x2x8xbf16, #tpu.memory_space<vmem>>, vector<1x2x8xbf16>
    %419 = vector.shape_cast %418 : vector<1x2x8xbf16> to vector<2x8xbf16>
    %cst_366 = arith.constant dense<0.000000e+00> : vector<2x32xf32>
    %420 = tpu.matmul %419, %328, %cst_366 {dimension_numbers = #tpu.dot_dimension_numbers<[1], [0], [0], [1], [0, 0, 1, 1], [], []>} : vector<2x8xbf16>, vector<8x32xbf16>, vector<2x32xf32> -> vector<2x32xf32>
    %421 = arith.truncf %420 : vector<2x32xf32> to vector<2x32xbf16>
    %c11_367 = arith.constant 11 : index
    %c0_368 = arith.constant 0 : index
    %c0_369 = arith.constant 0 : index
    %422 = vector.load %arg13[%c11_367, %c0_368, %c0_369] : memref<16x32x64xbf16, #tpu.memory_space<vmem>>, vector<1x32x64xbf16>
    %423 = vector.shape_cast %422 : vector<1x32x64xbf16> to vector<32x64xbf16>
    %cst_370 = arith.constant dense<0.000000e+00> : vector<2x64xf32>
    %424 = tpu.matmul %421, %423, %cst_370 {dimension_numbers = #tpu.dot_dimension_numbers<[1], [0], [0], [1], [0, 0, 1, 1], [], []>} : vector<2x32xbf16>, vector<32x64xbf16>, vector<2x64xf32> -> vector<2x64xf32>
    %425 = arith.addf %417, %424 : vector<2x64xf32>
    %c12_371 = arith.constant 12 : index
    %c0_372 = arith.constant 0 : index
    %c0_373 = arith.constant 0 : index
    %426 = vector.load %arg12[%c12_371, %c0_372, %c0_373] : memref<16x2x8xbf16, #tpu.memory_space<vmem>>, vector<1x2x8xbf16>
    %427 = vector.shape_cast %426 : vector<1x2x8xbf16> to vector<2x8xbf16>
    %cst_374 = arith.constant dense<0.000000e+00> : vector<2x32xf32>
    %428 = tpu.matmul %427, %328, %cst_374 {dimension_numbers = #tpu.dot_dimension_numbers<[1], [0], [0], [1], [0, 0, 1, 1], [], []>} : vector<2x8xbf16>, vector<8x32xbf16>, vector<2x32xf32> -> vector<2x32xf32>
    %429 = arith.truncf %428 : vector<2x32xf32> to vector<2x32xbf16>
    %c12_375 = arith.constant 12 : index
    %c0_376 = arith.constant 0 : index
    %c0_377 = arith.constant 0 : index
    %430 = vector.load %arg13[%c12_375, %c0_376, %c0_377] : memref<16x32x64xbf16, #tpu.memory_space<vmem>>, vector<1x32x64xbf16>
    %431 = vector.shape_cast %430 : vector<1x32x64xbf16> to vector<32x64xbf16>
    %cst_378 = arith.constant dense<0.000000e+00> : vector<2x64xf32>
    %432 = tpu.matmul %429, %431, %cst_378 {dimension_numbers = #tpu.dot_dimension_numbers<[1], [0], [0], [1], [0, 0, 1, 1], [], []>} : vector<2x32xbf16>, vector<32x64xbf16>, vector<2x64xf32> -> vector<2x64xf32>
    %433 = arith.addf %425, %432 : vector<2x64xf32>
    %c13_379 = arith.constant 13 : index
    %c0_380 = arith.constant 0 : index
    %c0_381 = arith.constant 0 : index
    %434 = vector.load %arg12[%c13_379, %c0_380, %c0_381] : memref<16x2x8xbf16, #tpu.memory_space<vmem>>, vector<1x2x8xbf16>
    %435 = vector.shape_cast %434 : vector<1x2x8xbf16> to vector<2x8xbf16>
    %cst_382 = arith.constant dense<0.000000e+00> : vector<2x32xf32>
    %436 = tpu.matmul %435, %328, %cst_382 {dimension_numbers = #tpu.dot_dimension_numbers<[1], [0], [0], [1], [0, 0, 1, 1], [], []>} : vector<2x8xbf16>, vector<8x32xbf16>, vector<2x32xf32> -> vector<2x32xf32>
    %437 = arith.truncf %436 : vector<2x32xf32> to vector<2x32xbf16>
    %c13_383 = arith.constant 13 : index
    %c0_384 = arith.constant 0 : index
    %c0_385 = arith.constant 0 : index
    %438 = vector.load %arg13[%c13_383, %c0_384, %c0_385] : memref<16x32x64xbf16, #tpu.memory_space<vmem>>, vector<1x32x64xbf16>
    %439 = vector.shape_cast %438 : vector<1x32x64xbf16> to vector<32x64xbf16>
    %cst_386 = arith.constant dense<0.000000e+00> : vector<2x64xf32>
    %440 = tpu.matmul %437, %439, %cst_386 {dimension_numbers = #tpu.dot_dimension_numbers<[1], [0], [0], [1], [0, 0, 1, 1], [], []>} : vector<2x32xbf16>, vector<32x64xbf16>, vector<2x64xf32> -> vector<2x64xf32>
    %441 = arith.addf %433, %440 : vector<2x64xf32>
    %c14_387 = arith.constant 14 : index
    %c0_388 = arith.constant 0 : index
    %c0_389 = arith.constant 0 : index
    %442 = vector.load %arg12[%c14_387, %c0_388, %c0_389] : memref<16x2x8xbf16, #tpu.memory_space<vmem>>, vector<1x2x8xbf16>
    %443 = vector.shape_cast %442 : vector<1x2x8xbf16> to vector<2x8xbf16>
    %cst_390 = arith.constant dense<0.000000e+00> : vector<2x32xf32>
    %444 = tpu.matmul %443, %328, %cst_390 {dimension_numbers = #tpu.dot_dimension_numbers<[1], [0], [0], [1], [0, 0, 1, 1], [], []>} : vector<2x8xbf16>, vector<8x32xbf16>, vector<2x32xf32> -> vector<2x32xf32>
    %445 = arith.truncf %444 : vector<2x32xf32> to vector<2x32xbf16>
    %c14_391 = arith.constant 14 : index
    %c0_392 = arith.constant 0 : index
    %c0_393 = arith.constant 0 : index
    %446 = vector.load %arg13[%c14_391, %c0_392, %c0_393] : memref<16x32x64xbf16, #tpu.memory_space<vmem>>, vector<1x32x64xbf16>
    %447 = vector.shape_cast %446 : vector<1x32x64xbf16> to vector<32x64xbf16>
    %cst_394 = arith.constant dense<0.000000e+00> : vector<2x64xf32>
    %448 = tpu.matmul %445, %447, %cst_394 {dimension_numbers = #tpu.dot_dimension_numbers<[1], [0], [0], [1], [0, 0, 1, 1], [], []>} : vector<2x32xbf16>, vector<32x64xbf16>, vector<2x64xf32> -> vector<2x64xf32>
    %449 = arith.addf %441, %448 : vector<2x64xf32>
    %c15_395 = arith.constant 15 : index
    %c0_396 = arith.constant 0 : index
    %c0_397 = arith.constant 0 : index
    %450 = vector.load %arg12[%c15_395, %c0_396, %c0_397] : memref<16x2x8xbf16, #tpu.memory_space<vmem>>, vector<1x2x8xbf16>
    %451 = vector.shape_cast %450 : vector<1x2x8xbf16> to vector<2x8xbf16>
    %cst_398 = arith.constant dense<0.000000e+00> : vector<2x32xf32>
    %452 = tpu.matmul %451, %328, %cst_398 {dimension_numbers = #tpu.dot_dimension_numbers<[1], [0], [0], [1], [0, 0, 1, 1], [], []>} : vector<2x8xbf16>, vector<8x32xbf16>, vector<2x32xf32> -> vector<2x32xf32>
    %453 = arith.truncf %452 : vector<2x32xf32> to vector<2x32xbf16>
    %c15_399 = arith.constant 15 : index
    %c0_400 = arith.constant 0 : index
    %c0_401 = arith.constant 0 : index
    %454 = vector.load %arg13[%c15_399, %c0_400, %c0_401] : memref<16x32x64xbf16, #tpu.memory_space<vmem>>, vector<1x32x64xbf16>
    %455 = vector.shape_cast %454 : vector<1x32x64xbf16> to vector<32x64xbf16>
    %cst_402 = arith.constant dense<0.000000e+00> : vector<2x64xf32>
    %456 = tpu.matmul %453, %455, %cst_402 {dimension_numbers = #tpu.dot_dimension_numbers<[1], [0], [0], [1], [0, 0, 1, 1], [], []>} : vector<2x32xbf16>, vector<32x64xbf16>, vector<2x64xf32> -> vector<2x64xf32>
    %457 = arith.addf %449, %456 : vector<2x64xf32>
    %c0_403 = arith.constant 0 : index
    %c0_404 = arith.constant 0 : index
    %458 = vector.load %arg14[%c0_403, %c0_404] : memref<1x64xf32, #tpu.memory_space<vmem>>, vector<1x64xf32>
    %459 = vector.broadcast %458 : vector<1x64xf32> to vector<2x64xf32>
    %460 = arith.addf %457, %459 : vector<2x64xf32>
    %cst_405 = arith.constant dense<0.000000e+00> : vector<64xf32>
    %461 = vector.multi_reduction <add>, %460, %cst_405 [0] : vector<2x64xf32> to vector<64xf32>
    %462 = vector.shape_cast %461 : vector<64xf32> to vector<1x64xf32>
    %cst_406 = arith.constant 2.000000e+00 : f32
    %463 = vector.broadcast %cst_406 : f32 to vector<1x64xf32>
    %464 = arith.divf %462, %463 : vector<1x64xf32>
    %465 = vector.broadcast %464 : vector<1x64xf32> to vector<2x64xf32>
    %466 = arith.subf %460, %465 : vector<2x64xf32>
    %467 = arith.mulf %466, %466 : vector<2x64xf32>
    %cst_407 = arith.constant dense<0.000000e+00> : vector<64xf32>
    %468 = vector.multi_reduction <add>, %467, %cst_407 [0] : vector<2x64xf32> to vector<64xf32>
    %469 = vector.shape_cast %468 : vector<64xf32> to vector<1x64xf32>
    %cst_408 = arith.constant 2.000000e+00 : f32
    %470 = vector.broadcast %cst_408 : f32 to vector<1x64xf32>
    %471 = arith.divf %469, %470 : vector<1x64xf32>
    %cst_409 = arith.constant 8.000000e-01 : f32
    %472 = vector.broadcast %cst_409 : f32 to vector<1x64xf32>
    %473 = arith.addf %471, %472 : vector<1x64xf32>
    %474 = math.rsqrt %473 : vector<1x64xf32>
    %475 = vector.broadcast %474 : vector<1x64xf32> to vector<2x64xf32>
    %476 = arith.mulf %466, %475 : vector<2x64xf32>
    %c0_410 = arith.constant 0 : index
    %c0_411 = arith.constant 0 : index
    %477 = vector.load %arg15[%c0_410, %c0_411] : memref<1x64xf32, #tpu.memory_space<vmem>>, vector<1x64xf32>
    %478 = vector.broadcast %477 : vector<1x64xf32> to vector<2x64xf32>
    %479 = arith.mulf %476, %478 : vector<2x64xf32>
    %c0_412 = arith.constant 0 : index
    %c0_413 = arith.constant 0 : index
    %480 = vector.load %arg16[%c0_412, %c0_413] : memref<1x64xf32, #tpu.memory_space<vmem>>, vector<1x64xf32>
    %481 = vector.broadcast %480 : vector<1x64xf32> to vector<2x64xf32>
    %482 = arith.addf %479, %481 : vector<2x64xf32>
    %cst_414 = arith.constant 0.000000e+00 : f32
    %483 = vector.broadcast %cst_414 : f32 to vector<2x64xf32>
    %484 = arith.cmpf oge, %482, %483 : vector<2x64xf32>
    %cst_415 = arith.constant 1.000000e-01 : f32
    %485 = vector.broadcast %cst_415 : f32 to vector<2x64xf32>
    %486 = arith.mulf %485, %482 : vector<2x64xf32>
    %487 = arith.select %484, %482, %486 : vector<2x64xi1>, vector<2x64xf32>
    %cst_416 = arith.constant 0.000000e+00 : f32
    %488 = vector.broadcast %cst_416 : f32 to vector<2x64xf32>
    %489 = arith.cmpf oge, %487, %488 : vector<2x64xf32>
    %cst_417 = arith.constant 2.000000e-01 : f32
    %490 = vector.broadcast %cst_417 : f32 to vector<2x64xf32>
    %491 = arith.mulf %490, %487 : vector<2x64xf32>
    %492 = arith.select %489, %487, %491 : vector<2x64xi1>, vector<2x64xf32>
    %c0_418 = arith.constant 0 : index
    %c0_419 = arith.constant 0 : index
    %493 = vector.load %arg17[%c0_418, %c0_419] : memref<2x2xf32, #tpu.memory_space<vmem>>, vector<2x2xf32>
    %cst_420 = arith.constant dense<0.000000e+00> : vector<2x64xf32>
    %494 = tpu.matmul %493, %492, %cst_420 {dimension_numbers = #tpu.dot_dimension_numbers<[1], [0], [0], [1], [0, 0, 1, 1], [], []>} : vector<2x2xf32>, vector<2x64xf32>, vector<2x64xf32> -> vector<2x64xf32>
    %495 = arith.truncf %494 : vector<2x64xf32> to vector<2x64xbf16>
    %c0_421 = arith.constant 0 : index
    %c0_422 = arith.constant 0 : index
    %496 = vector.load %arg19[%c0_421, %c0_422] : memref<64x128xbf16, #tpu.memory_space<vmem>>, vector<64x128xbf16>
    %cst_423 = arith.constant dense<0.000000e+00> : vector<2x128xf32>
    %497 = tpu.matmul %495, %496, %cst_423 {dimension_numbers = #tpu.dot_dimension_numbers<[1], [0], [0], [1], [0, 0, 1, 1], [], []>} : vector<2x64xbf16>, vector<64x128xbf16>, vector<2x128xf32> -> vector<2x128xf32>
    %c0_424 = arith.constant 0 : index
    %c0_425 = arith.constant 0 : index
    %498 = vector.load %arg20[%c0_424, %c0_425] : memref<1x128xf32, #tpu.memory_space<vmem>>, vector<1x128xf32>
    %499 = vector.broadcast %498 : vector<1x128xf32> to vector<2x128xf32>
    %500 = arith.addf %497, %499 : vector<2x128xf32>
    %501 = vector.extract_strided_slice %500 {offsets = [0, 0], sizes = [2, 10], strides = [1, 1]} : vector<2x128xf32> to vector<2x10xf32>
    %cst_426 = arith.constant dense<0xFF800000> : vector<2xf32>
    %502 = vector.multi_reduction <maximumf>, %501, %cst_426 [1] : vector<2x10xf32> to vector<2xf32>
    %503 = vector.shape_cast %502 : vector<2xf32> to vector<2x1xf32>
    %504 = vector.broadcast %503 : vector<2x1xf32> to vector<2x10xf32>
    %505 = arith.subf %501, %504 : vector<2x10xf32>
    %506 = math.exp %505 : vector<2x10xf32>
    %cst_427 = arith.constant dense<0.000000e+00> : vector<2xf32>
    %507 = vector.multi_reduction <add>, %506, %cst_427 [1] : vector<2x10xf32> to vector<2xf32>
    %508 = vector.shape_cast %507 : vector<2xf32> to vector<2x1xf32>
    %509 = vector.broadcast %508 : vector<2x1xf32> to vector<2x10xf32>
    %510 = arith.divf %506, %509 : vector<2x10xf32>
    %c0_428 = arith.constant 0 : index
    %c0_429 = arith.constant 0 : index
    %511 = vector.load %arg18[%c0_428, %c0_429] : memref<2x64xf32, #tpu.memory_space<vmem>>, vector<2x64xf32>
    %512 = arith.mulf %511, %494 : vector<2x64xf32>
    %cst_430 = arith.constant dense<0.000000e+00> : vector<2xf32>
    %513 = vector.multi_reduction <add>, %512, %cst_430 [1] : vector<2x64xf32> to vector<2xf32>
    %514 = vector.shape_cast %513 : vector<2xf32> to vector<2x1xf32>
    %515 = vector.extract_strided_slice %500 {offsets = [0, 10], sizes = [2, 1], strides = [1, 1]} : vector<2x128xf32> to vector<2x1xf32>
    %516 = arith.addf %515, %514 : vector<2x1xf32>
    %c0_431 = arith.constant 0 : index
    %c0_432 = arith.constant 0 : index
    %517 = vector.load %arg21[%c0_431, %c0_432] : memref<2x128xf32, #tpu.memory_space<vmem>>, vector<2x10xf32>
    tpu.vector_store %arg21[%c0_431, %c0_432], %510 {strides = array<i32>} : memref<2x128xf32, #tpu.memory_space<vmem>>, vector<2x10xf32>,
    %c0_433 = arith.constant 0 : index
    %c10_434 = arith.constant 10 : index
    %518 = vector.load %arg21[%c0_433, %c10_434] : memref<2x128xf32, #tpu.memory_space<vmem>>, vector<2x1xf32>
    tpu.vector_store %arg21[%c0_433, %c10_434], %516 {strides = array<i32>} : memref<2x128xf32, #tpu.memory_space<vmem>>, vector<2x1xf32>,
    %cst_435 = arith.constant 0.000000e+00 : f32
    %519 = vector.broadcast %cst_435 : f32 to vector<2x117xf32>
    %c0_436 = arith.constant 0 : index
    %c11_437 = arith.constant 11 : index
    %520 = vector.load %arg21[%c0_436, %c11_437] : memref<2x128xf32, #tpu.memory_space<vmem>>, vector<2x117xf32>
    tpu.vector_store %arg21[%c0_436, %c11_437], %519 {strides = array<i32>} : memref<2x128xf32, #tpu.memory_space<vmem>>, vector<2x117xf32>,
    return
  }
}

</mosaic_0001>

<llo_original>
// kernel: discriminator_forward.1
$region0: #{discriminator_forward.1}
  #allocation0 [shape = 'u32[]', space=smem, size = 0x4, offset = 0x4, fixed_abs, tag = 'smem constant byte address 0x4 - core index']
  #allocation1 [shape = 'u32[72,128]{1,0:T(1,128)}', space=vmem, size = 0x9000, scoped, tag = 'internal scratch']
  %s0 = inlined_call_operand.vmem [shape: bf16[128,16], index: 0, kind: input, shape index: {}]
  %s1 = inlined_call_operand.vmem [shape: bf16[16,8], index: 1, kind: input, shape index: {}]
  %s2 = inlined_call_operand.vmem [shape: bf16[16,32,128], index: 2, kind: input, shape index: {}]
  %s3 = inlined_call_operand.vmem [shape: bf16[16,8,16], index: 3, kind: input, shape index: {}]
  %s4 = inlined_call_operand.vmem [shape: f32[1,16], index: 4, kind: input, shape index: {}]
  %s5 = inlined_call_operand.vmem [shape: f32[1,16], index: 5, kind: input, shape index: {}]
  %s6 = inlined_call_operand.vmem [shape: f32[1,16], index: 6, kind: input, shape index: {}]
  %s7 = inlined_call_operand.vmem [shape: bf16[16,8,32], index: 7, kind: input, shape index: {}]
  %s8 = inlined_call_operand.vmem [shape: bf16[16,16,32], index: 8, kind: input, shape index: {}]
  %s9 = inlined_call_operand.vmem [shape: f32[1,32], index: 9, kind: input, shape index: {}]
  %s10 = inlined_call_operand.vmem [shape: f32[1,32], index: 10, kind: input, shape index: {}]
  %s11 = inlined_call_operand.vmem [shape: f32[1,32], index: 11, kind: input, shape index: {}]
  %s12 = inlined_call_operand.vmem [shape: bf16[16,2,8], index: 12, kind: input, shape index: {}]
  %s13 = inlined_call_operand.vmem [shape: bf16[16,32,64], index: 13, kind: input, shape index: {}]
  %s14 = inlined_call_operand.vmem [shape: f32[1,64], index: 14, kind: input, shape index: {}]
  %s15 = inlined_call_operand.vmem [shape: f32[1,64], index: 15, kind: input, shape index: {}]
  %s16 = inlined_call_operand.vmem [shape: f32[1,64], index: 16, kind: input, shape index: {}]
  %s17 = inlined_call_operand.vmem [shape: f32[2,2], index: 17, kind: input, shape index: {}]
  %s18 = inlined_call_operand.vmem [shape: f32[2,64], index: 18, kind: input, shape index: {}]
  %s19 = inlined_call_operand.vmem [shape: bf16[64,128], index: 19, kind: input, shape index: {}]
  %s20 = inlined_call_operand.vmem [shape: f32[1,128], index: 20, kind: input, shape index: {}]
  %s21 = inlined_call_operand.vmem [shape: f32[2,128], index: 21, kind: output, shape index: {}]
  %s22 = sld [smem:[#allocation0]]
  $region94: #{discriminator_forward.1} parent=0
    _
  %s24 = ssub.s32 1, %s22
  %s25 = scalar_select 0, %s24, %s22
  // Predicated region
  $region2: #{discriminator_forward.1} parent=0 // pred_check
    _
  $region3: #{discriminator_forward.1} parent=0 // pred_check_branch
    %27 = sbr.rel (0) target = $region5
  $region4: #{discriminator_forward.1} parent=0 // pred_region
    _
  $region5: #{discriminator_forward.1} parent=0 // pred_fallthru
    _
  // Predicated region
  $region6: #{discriminator_forward.1} parent=0 // pred_check
    _
  $region7: #{discriminator_forward.1} parent=0 // pred_check_branch
    %29 = sbr.rel (0) target = $region9
  $region8: #{discriminator_forward.1} parent=0 // pred_region
    _
  $region9: #{discriminator_forward.1} parent=0 // pred_fallthru
    _
  // Predicated region
  $region10: #{discriminator_forward.1} parent=0 // pred_check
    _
  $region11: #{discriminator_forward.1} parent=0 // pred_check_branch
    %31 = sbr.rel (0) target = $region13
  $region12: #{discriminator_forward.1} parent=0 // pred_region
    _
  $region13: #{discriminator_forward.1} parent=0 // pred_fallthru
    _
  // Predicated region
  $region14: #{discriminator_forward.1} parent=0 // pred_check
    _
  $region15: #{discriminator_forward.1} parent=0 // pred_check_branch
    %33 = sbr.rel (0) target = $region17
  $region16: #{discriminator_forward.1} parent=0 // pred_region
    _
  $region17: #{discriminator_forward.1} parent=0 // pred_fallthru
    _
  // Predicated region
  $region18: #{discriminator_forward.1} parent=0 // pred_check
    _
  $region19: #{discriminator_forward.1} parent=0 // pred_check_branch
    %35 = sbr.rel (0) target = $region21
  $region20: #{discriminator_forward.1} parent=0 // pred_region
    _
  $region21: #{discriminator_forward.1} parent=0 // pred_fallthru
    _
  // Predicated region
  $region22: #{discriminator_forward.1} parent=0 // pred_check
    _
  $region23: #{discriminator_forward.1} parent=0 // pred_check_branch
    %37 = sbr.rel (0) target = $region25
  $region24: #{discriminator_forward.1} parent=0 // pred_region
    _
  $region25: #{discriminator_forward.1} parent=0 // pred_fallthru
    _
  // Predicated region
  $region26: #{discriminator_forward.1} parent=0 // pred_check
    _
  $region27: #{discriminator_forward.1} parent=0 // pred_check_branch
    %39 = sbr.rel (0) target = $region29
  $region28: #{discriminator_forward.1} parent=0 // pred_region
    _
  $region29: #{discriminator_forward.1} parent=0 // pred_fallthru
    _
  // Predicated region
  $region30: #{discriminator_forward.1} parent=0 // pred_check
    _
  $region31: #{discriminator_forward.1} parent=0 // pred_check_branch
    %41 = sbr.rel (0) target = $region33
  $region32: #{discriminator_forward.1} parent=0 // pred_region
    _
  $region33: #{discriminator_forward.1} parent=0 // pred_fallthru
    _
  // Predicated region
  $region34: #{discriminator_forward.1} parent=0 // pred_check
    _
  $region35: #{discriminator_forward.1} parent=0 // pred_check_branch
    %43 = sbr.rel (0) target = $region37
  $region36: #{discriminator_forward.1} parent=0 // pred_region
    _
  $region37: #{discriminator_forward.1} parent=0 // pred_fallthru
    _
  // Predicated region
  $region38: #{discriminator_forward.1} parent=0 // pred_check
    _
  $region39: #{discriminator_forward.1} parent=0 // pred_check_branch
    %45 = sbr.rel (0) target = $region41
  $region40: #{discriminator_forward.1} parent=0 // pred_region
    _
  $region41: #{discriminator_forward.1} parent=0 // pred_fallthru
    _
  // Predicated region
  $region42: #{discriminator_forward.1} parent=0 // pred_check
    _
  $region43: #{discriminator_forward.1} parent=0 // pred_check_branch
    %47 = sbr.rel (0) target = $region45
  $region44: #{discriminator_forward.1} parent=0 // pred_region
    _
  $region45: #{discriminator_forward.1} parent=0 // pred_fallthru
    _
  // Predicated region
  $region46: #{discriminator_forward.1} parent=0 // pred_check
    _
  $region47: #{discriminator_forward.1} parent=0 // pred_check_branch
    %49 = sbr.rel (0) target = $region49
  $region48: #{discriminator_forward.1} parent=0 // pred_region
    _
  $region49: #{discriminator_forward.1} parent=0 // pred_fallthru
    _
  // Predicated region
  $region50: #{discriminator_forward.1} parent=0 // pred_check
    _
  $region51: #{discriminator_forward.1} parent=0 // pred_check_branch
    %51 = sbr.rel (0) target = $region53
  $region52: #{discriminator_forward.1} parent=0 // pred_region
    _
  $region53: #{discriminator_forward.1} parent=0 // pred_fallthru
    _
  // Predicated region
  $region54: #{discriminator_forward.1} parent=0 // pred_check
    _
  $region55: #{discriminator_forward.1} parent=0 // pred_check_branch
    %53 = sbr.rel (0) target = $region57
  $region56: #{discriminator_forward.1} parent=0 // pred_region
    _
  $region57: #{discriminator_forward.1} parent=0 // pred_fallthru
    _
  // Predicated region
  $region58: #{discriminator_forward.1} parent=0 // pred_check
    _
  $region59: #{discriminator_forward.1} parent=0 // pred_check_branch
    %55 = sbr.rel (0) target = $region61
  $region60: #{discriminator_forward.1} parent=0 // pred_region
    _
  $region61: #{discriminator_forward.1} parent=0 // pred_fallthru
    _
  // Predicated region
  $region62: #{discriminator_forward.1} parent=0 // pred_check
    _
  $region63: #{discriminator_forward.1} parent=0 // pred_check_branch
    %57 = sbr.rel (0) target = $region65
  $region64: #{discriminator_forward.1} parent=0 // pred_region
    _
  $region65: #{discriminator_forward.1} parent=0 // pred_fallthru
    _
  // Predicated region
  $region66: #{discriminator_forward.1} parent=0 // pred_check
    _
  $region67: #{discriminator_forward.1} parent=0 // pred_check_branch
    %59 = sbr.rel (0) target = $region69
  $region68: #{discriminator_forward.1} parent=0 // pred_region
    _
  $region69: #{discriminator_forward.1} parent=0 // pred_fallthru
    _
  // Predicated region
  $region70: #{discriminator_forward.1} parent=0 // pred_check
    _
  $region71: #{discriminator_forward.1} parent=0 // pred_check_branch
    %61 = sbr.rel (0) target = $region73
  $region72: #{discriminator_forward.1} parent=0 // pred_region
    _
  $region73: #{discriminator_forward.1} parent=0 // pred_fallthru
    _
  // Predicated region
  $region74: #{discriminator_forward.1} parent=0 // pred_check
    _
  $region75: #{discriminator_forward.1} parent=0 // pred_check_branch
    %63 = sbr.rel (0) target = $region77
  $region76: #{discriminator_forward.1} parent=0 // pred_region
    _
  $region77: #{discriminator_forward.1} parent=0 // pred_fallthru
    _
  // Predicated region
  $region78: #{discriminator_forward.1} parent=0 // pred_check
    _
  $region79: #{discriminator_forward.1} parent=0 // pred_check_branch
    %65 = sbr.rel (0) target = $region81
  $region80: #{discriminator_forward.1} parent=0 // pred_region
    _
  $region81: #{discriminator_forward.1} parent=0 // pred_fallthru
    _
  // Predicated region
  $region82: #{discriminator_forward.1} parent=0 // pred_check
    _
  $region83: #{discriminator_forward.1} parent=0 // pred_check_branch
    %67 = sbr.rel (0) target = $region85
  $region84: #{discriminator_forward.1} parent=0 // pred_region
    _
  $region85: #{discriminator_forward.1} parent=0 // pred_fallthru
    _
  %v69 = vld [vmem:[%s0] sm:$0xf]
  %v70 = vld [vmem:[%s0 + $0x4] sm:$0xf]
  %v71 = vld [vmem:[%s0 + $0x8] sm:$0xf]
  %v72 = vld [vmem:[%s0 + $0xc] sm:$0xf]
  %v73 = vld [vmem:[%s0 + $0x10] sm:$0xf]
  %v74 = vld [vmem:[%s0 + $0x14] sm:$0xf]
  %v75 = vld [vmem:[%s0 + $0x18] sm:$0xf]
  %v76 = vld [vmem:[%s0 + $0x1c] sm:$0xf]
  %v77 = vld [vmem:[%s0 + $0x20] sm:$0xf]
  %v78 = vld [vmem:[%s0 + $0x24] sm:$0xf]
  %v79 = vld [vmem:[%s0 + $0x28] sm:$0xf]
  %v80 = vld [vmem:[%s0 + $0x2c] sm:$0xf]
  %v81 = vld [vmem:[%s0 + $0x30] sm:$0xf]
  %v82 = vld [vmem:[%s0 + $0x34] sm:$0xf]
  %v83 = vld [vmem:[%s0 + $0x38] sm:$0xf]
  %v84 = vld [vmem:[%s0 + $0x3c] sm:$0xf]
  %v85 = vld [vmem:[%s1] sm:$0xf]
  %v86 = vld [vmem:[%s1 + $0x4] sm:$0xf]
  %v103 = vunpack.c.l.b16 %v69
  %v104 = vunpack.c.l.b16 %v70
  %v105 = vunpack.c.l.b16 %v71
  %v106 = vunpack.c.l.b16 %v72
  %v107 = vunpack.c.l.b16 %v73
  %v108 = vunpack.c.l.b16 %v74
  %v109 = vunpack.c.l.b16 %v75
  %v110 = vunpack.c.l.b16 %v76
  %v111 = vunpack.c.l.b16 %v77
  %v112 = vunpack.c.l.b16 %v78
  %v113 = vunpack.c.l.b16 %v79
  %v114 = vunpack.c.l.b16 %v80
  %v115 = vunpack.c.l.b16 %v81
  %v116 = vunpack.c.l.b16 %v82
  %v117 = vunpack.c.l.b16 %v83
  %v118 = vunpack.c.l.b16 %v84
  %v119 = vpack.c.b16 %v104, %v103
  %v120 = vpack.c.b16 %v106, %v105
  %v121 = vpack.c.b16 %v108, %v107
  %v122 = vpack.c.b16 %v110, %v109
  %v123 = vpack.c.b16 %v112, %v111
  %v124 = vpack.c.b16 %v114, %v113
  %v125 = vpack.c.b16 %v116, %v115
  %v126 = vpack.c.b16 %v118, %v117
  %v129 = vunpack.c.l.b16 %v85
  %v130 = vunpack.c.l.b16 %v86
  %v131 = vpack.c.b16 %v130, %v129
  %vm133 = vcmask 130048
  %v135 = vsel %vm133, %v119, 0
  %v138 = vsel %vm133, %v120, 0
  %v141 = vsel %vm133, %v121, 0
  %v144 = vsel %vm133, %v122, 0
  %v147 = vsel %vm133, %v123, 0
  %v150 = vsel %vm133, %v124, 0
  %v153 = vsel %vm133, %v125, 0
  %v156 = vsel %vm133, %v126, 0
  %158 = vmatpush.bf16.msra.mxu0 0
  %159 = vmatpush.bf16.msra.mxu0 0
  %160 = vmatpush.bf16.msra.mxu0 0
  %161 = vmatpush.bf16.msra.mxu0 0
  %162 = vmatpush.bf16.msra.mxu0 0
  %163 = vmatpush.bf16.msra.mxu0 0
  %164 = vmatpush.bf16.msra.mxu0 0
  %165 = vmatpush.bf16.msra.mxu0 %v131
  %166 = vmatmul.bf16.gmra.mxu0 %v135
  %v167 = vpop.f32.mrf.mxu0
  %v168 = vadd.f32 0.0, %v167
  %v169 = vpop.f32.mrf.mxu0
  %v170 = vadd.f32 0.0, %v169
  %171 = vmatmul.bf16.gmra.mxu0 %v138
  %v172 = vpop.f32.mrf.mxu0
  %v173 = vadd.f32 0.0, %v172
  %v174 = vpop.f32.mrf.mxu0
  %v175 = vadd.f32 0.0, %v174
  %176 = vmatmul.bf16.gmra.mxu0 %v141
  %v177 = vpop.f32.mrf.mxu0
  %v178 = vadd.f32 0.0, %v177
  %v179 = vpop.f32.mrf.mxu0
  %v180 = vadd.f32 0.0, %v179
  %181 = vmatmul.bf16.gmra.mxu0 %v144
  %v182 = vpop.f32.mrf.mxu0
  %v183 = vadd.f32 0.0, %v182
  %v184 = vpop.f32.mrf.mxu0
  %v185 = vadd.f32 0.0, %v184
  %186 = vmatmul.bf16.gmra.mxu0 %v147
  %v187 = vpop.f32.mrf.mxu0
  %v188 = vadd.f32 0.0, %v187
  %v189 = vpop.f32.mrf.mxu0
  %v190 = vadd.f32 0.0, %v189
  %191 = vmatmul.bf16.gmra.mxu0 %v150
  %v192 = vpop.f32.mrf.mxu0
  %v193 = vadd.f32 0.0, %v192
  %v194 = vpop.f32.mrf.mxu0
  %v195 = vadd.f32 0.0, %v194
  %196 = vmatmul.bf16.gmra.mxu0 %v153
  %v197 = vpop.f32.mrf.mxu0
  %v198 = vadd.f32 0.0, %v197
  %v199 = vpop.f32.mrf.mxu0
  %v200 = vadd.f32 0.0, %v199
  %201 = vmatmul.bf16.gmra.mxu0 %v156
  %v202 = vpop.f32.mrf.mxu0
  %v203 = vadd.f32 0.0, %v202
  %v204 = vpop.f32.mrf.mxu0
  %v205 = vadd.f32 0.0, %v204
  %206 = vdwg.mxu0
  %vm207 = vcmp.ge.f32.partialorder %v168, 0.0
  %vm208 = vcmp.ge.f32.partialorder %v170, 0.0
  %vm209 = vcmp.ge.f32.partialorder %v173, 0.0
  %vm210 = vcmp.ge.f32.partialorder %v175, 0.0
  %vm211 = vcmp.ge.f32.partialorder %v178, 0.0
  %vm212 = vcmp.ge.f32.partialorder %v180, 0.0
  %vm213 = vcmp.ge.f32.partialorder %v183, 0.0
  %vm214 = vcmp.ge.f32.partialorder %v185, 0.0
  %vm215 = vcmp.ge.f32.partialorder %v188, 0.0
  %vm216 = vcmp.ge.f32.partialorder %v190, 0.0
  %vm217 = vcmp.ge.f32.partialorder %v193, 0.0
  %vm218 = vcmp.ge.f32.partialorder %v195, 0.0
  %vm219 = vcmp.ge.f32.partialorder %v198, 0.0
  %vm220 = vcmp.ge.f32.partialorder %v200, 0.0
  %vm221 = vcmp.ge.f32.partialorder %v203, 0.0
  %vm222 = vcmp.ge.f32.partialorder %v205, 0.0
  %v223 = vmul.f32 %v168, 0.1
  %v224 = vmul.f32 %v170, 0.1
  %v225 = vmul.f32 %v173, 0.1
  %v226 = vmul.f32 %v175, 0.1
  %v227 = vmul.f32 %v178, 0.1
  %v228 = vmul.f32 %v180, 0.1
  %v229 = vmul.f32 %v183, 0.1
  %v230 = vmul.f32 %v185, 0.1
  %v231 = vmul.f32 %v188, 0.1
  %v232 = vmul.f32 %v190, 0.1
  %v233 = vmul.f32 %v193, 0.1
  %v234 = vmul.f32 %v195, 0.1
  %v235 = vmul.f32 %v198, 0.1
  %v236 = vmul.f32 %v200, 0.1
  %v237 = vmul.f32 %v203, 0.1
  %v238 = vmul.f32 %v205, 0.1
  %v239 = vsel %vm207, %v168, %v223
  %v240 = vsel %vm208, %v170, %v224
  %v241 = vsel %vm209, %v173, %v225
  %v242 = vsel %vm210, %v175, %v226
  %v243 = vsel %vm211, %v178, %v227
  %v244 = vsel %vm212, %v180, %v228
  %v245 = vsel %vm213, %v183, %v229
  %v246 = vsel %vm214, %v185, %v230
  %v247 = vsel %vm215, %v188, %v231
  %v248 = vsel %vm216, %v190, %v232
  %v249 = vsel %vm217, %v193, %v233
  %v250 = vsel %vm218, %v195, %v234
  %v251 = vsel %vm219, %v198, %v235
  %v252 = vsel %vm220, %v200, %v236
  %v253 = vsel %vm221, %v203, %v237
  %v254 = vsel %vm222, %v205, %v238
  %v255 = vpack.c.bf16 %v240, %v239
  %v256 = vpack.c.bf16 %v242, %v241
  %v257 = vpack.c.bf16 %v244, %v243
  %v258 = vpack.c.bf16 %v246, %v245
  %v259 = vpack.c.bf16 %v248, %v247
  %v260 = vpack.c.bf16 %v250, %v249
  %v261 = vpack.c.bf16 %v252, %v251
  %v262 = vpack.c.bf16 %v254, %v253
  %v263 = vld [vmem:[%s2] sm:$0xf]
  %v264 = vld [vmem:[%s2 + $0x4] sm:$0xf]
  %v265 = vld [vmem:[%s2 + $0x8] sm:$0xf]
  %v266 = vld [vmem:[%s2 + $0xc] sm:$0xf]
  %v271 = vunpack.c.l.b16 %v263
  %v272 = vunpack.c.l.b16 %v264
  %v273 = vunpack.c.l.b16 %v265
  %v274 = vunpack.c.l.b16 %v266
  %v275 = vpack.c.b16 %v272, %v271
  %v276 = vpack.c.b16 %v274, %v273
  %279 = vmatpush.bf16.msra.mxu0 %v262
  %280 = vmatpush.bf16.msra.mxu0 %v261
  %281 = vmatpush.bf16.msra.mxu0 %v260
  %282 = vmatpush.bf16.msra.mxu0 %v259
  %283 = vmatpush.bf16.msra.mxu0 %v258
  %284 = vmatpush.bf16.msra.mxu0 %v257
  %285 = vmatpush.bf16.msra.mxu0 %v256
  %286 = vmatpush.bf16.msra.mxu0 %v255
  %287 = vmatmul.bf16.gmra.mxu0 %v275
  %v288 = vpop.f32.mrf.mxu0
  %v289 = vadd.f32 0.0, %v288
  %v290 = vpop.f32.mrf.mxu0
  %v291 = vadd.f32 0.0, %v290
  %292 = vmatmul.bf16.gmra.mxu0 %v276
  %v293 = vpop.f32.mrf.mxu0
  %v294 = vadd.f32 0.0, %v293
  %v295 = vpop.f32.mrf.mxu0
  %v296 = vadd.f32 0.0, %v295
  %297 = vdwg.mxu0
  %v298 = vpack.c.bf16 %v291, %v289
  %v299 = vpack.c.bf16 %v296, %v294
  %v300 = vld [vmem:[%s3] sm:$0xf]
  %s301 = scalar_lea.vmem %s2, 16
  %v302 = vld [vmem:[%s301] sm:$0xf]
  %v303 = vld [vmem:[%s301 + $0x4] sm:$0xf]
  %v304 = vld [vmem:[%s301 + $0x8] sm:$0xf]
  %v305 = vld [vmem:[%s301 + $0xc] sm:$0xf]
  %v310 = vunpack.c.l.b16 %v302
  %v311 = vunpack.c.l.b16 %v303
  %v312 = vunpack.c.l.b16 %v304
  %v313 = vunpack.c.l.b16 %v305
  %v314 = vpack.c.b16 %v311, %v310
  %v315 = vpack.c.b16 %v313, %v312
  %318 = vmatpush.bf16.msra.mxu0 %v262
  %319 = vmatpush.bf16.msra.mxu0 %v261
  %320 = vmatpush.bf16.msra.mxu0 %v260
  %321 = vmatpush.bf16.msra.mxu0 %v259
  %322 = vmatpush.bf16.msra.mxu0 %v258
  %323 = vmatpush.bf16.msra.mxu0 %v257
  %324 = vmatpush.bf16.msra.mxu0 %v256
  %325 = vmatpush.bf16.msra.mxu0 %v255
  %326 = vmatmul.bf16.gmra.mxu0 %v314
  %v327 = vpop.f32.mrf.mxu0
  %v328 = vadd.f32 0.0, %v327
  %v329 = vpop.f32.mrf.mxu0
  %v330 = vadd.f32 0.0, %v329
  %331 = vmatmul.bf16.gmra.mxu0 %v315
  %v332 = vpop.f32.mrf.mxu0
  %v333 = vadd.f32 0.0, %v332
  %v334 = vpop.f32.mrf.mxu0
  %v335 = vadd.f32 0.0, %v334
  %336 = vdwg.mxu0
  %v337 = vpack.c.bf16 %v330, %v328
  %v338 = vpack.c.bf16 %v335, %v333
  %s339 = scalar_lea.vmem %s3, 4
  %v340 = vld [vmem:[%s339] sm:$0xf]
  %vm341 = vcmask 64512
  %v343 = vsel %vm341, %v337, 0
  %v346 = vsel %vm341, %v338, 0
  %vm348 = vcmask 1043456
  %v350 = vsel %vm348, %v340, 0
  %352 = vmatpush.bf16.msra.mxu0 0
  %353 = vmatpush.bf16.msra.mxu0 0
  %354 = vmatpush.bf16.msra.mxu0 0
  %355 = vmatpush.bf16.msra.mxu0 0
  %356 = vmatpush.bf16.msra.mxu0 0
  %357 = vmatpush.bf16.msra.mxu0 0
  %358 = vmatpush.bf16.msra.mxu0 0
  %359 = vmatpush.bf16.msra.mxu0 %v350
  %360 = vmatmul.bf16.gmra.mxu0 %v343
  %v361 = vpop.f32.mrf.mxu0
  %v362 = vadd.f32 0.0, %v361
  %v363 = vpop.f32.mrf.mxu0
  %v364 = vadd.f32 0.0, %v363
  %365 = vmatmul.bf16.gmra.mxu0 %v346
  %v366 = vpop.f32.mrf.mxu0
  %v367 = vadd.f32 0.0, %v366
  %v368 = vpop.f32.mrf.mxu0
  %v369 = vadd.f32 0.0, %v368
  %370 = vdwg.mxu0
  %v372 = vsel %vm341, %v298, 0
  %v375 = vsel %vm341, %v299, 0
  %v378 = vsel %vm348, %v300, 0
  %380 = vmatpush.bf16.msra.mxu0 0
  %381 = vmatpush.bf16.msra.mxu0 0
  %382 = vmatpush.bf16.msra.mxu0 0
  %383 = vmatpush.bf16.msra.mxu0 0
  %384 = vmatpush.bf16.msra.mxu0 0
  %385 = vmatpush.bf16.msra.mxu0 0
  %386 = vmatpush.bf16.msra.mxu0 0
  %387 = vmatpush.bf16.msra.mxu0 %v378
  %388 = vmatmul.bf16.gmra.mxu0 %v372
  %v389 = vpop.f32.mrf.mxu0
  %v390 = vadd.f32 %v362, %v389
  %v391 = vpop.f32.mrf.mxu0
  %v392 = vadd.f32 %v364, %v391
  %393 = vmatmul.bf16.gmra.mxu0 %v375
  %v394 = vpop.f32.mrf.mxu0
  %v395 = vadd.f32 %v367, %v394
  %v396 = vpop.f32.mrf.mxu0
  %v397 = vadd.f32 %v369, %v396
  %398 = vdwg.mxu0
  %s399 = scalar_lea.vmem %s2, 32
  %v400 = vld [vmem:[%s399] sm:$0xf]
  %v401 = vld [vmem:[%s399 + $0x4] sm:$0xf]
  %v402 = vld [vmem:[%s399 + $0x8] sm:$0xf]
  %v403 = vld [vmem:[%s399 + $0xc] sm:$0xf]
  %v408 = vunpack.c.l.b16 %v400
  %v409 = vunpack.c.l.b16 %v401
  %v410 = vunpack.c.l.b16 %v402
  %v411 = vunpack.c.l.b16 %v403
  %v412 = vpack.c.b16 %v409, %v408
  %v413 = vpack.c.b16 %v411, %v410
  %416 = vmatpush.bf16.msra.mxu0 %v262
  %417 = vmatpush.bf16.msra.mxu0 %v261
  %418 = vmatpush.bf16.msra.mxu0 %v260
  %419 = vmatpush.bf16.msra.mxu0 %v259
  %420 = vmatpush.bf16.msra.mxu0 %v258
  %421 = vmatpush.bf16.msra.mxu0 %v257
  %422 = vmatpush.bf16.msra.mxu0 %v256
  %423 = vmatpush.bf16.msra.mxu0 %v255
  %424 = vmatmul.bf16.gmra.mxu0 %v412
  %v425 = vpop.f32.mrf.mxu0
  %v426 = vadd.f32 0.0, %v425
  %v427 = vpop.f32.mrf.mxu0
  %v428 = vadd.f32 0.0, %v427
  %429 = vmatmul.bf16.gmra.mxu0 %v413
  %v430 = vpop.f32.mrf.mxu0
  %v431 = vadd.f32 0.0, %v430
  %v432 = vpop.f32.mrf.mxu0
  %v433 = vadd.f32 0.0, %v432
  %434 = vdwg.mxu0
  %v435 = vpack.c.bf16 %v428, %v426
  %v436 = vpack.c.bf16 %v433, %v431
  %s437 = scalar_lea.vmem %s3, 8
  %v438 = vld [vmem:[%s437] sm:$0xf]
  %v440 = vsel %vm341, %v435, 0
  %v443 = vsel %vm341, %v436, 0
  %v446 = vsel %vm348, %v438, 0
  %448 = vmatpush.bf16.msra.mxu0 0
  %449 = vmatpush.bf16.msra.mxu0 0
  %450 = vmatpush.bf16.msra.mxu0 0
  %451 = vmatpush.bf16.msra.mxu0 0
  %452 = vmatpush.bf16.msra.mxu0 0
  %453 = vmatpush.bf16.msra.mxu0 0
  %454 = vmatpush.bf16.msra.mxu0 0
  %455 = vmatpush.bf16.msra.mxu0 %v446
  %456 = vmatmul.bf16.gmra.mxu0 %v440
  %v457 = vpop.f32.mrf.mxu0
  %v458 = vadd.f32 0.0, %v457
  %v459 = vpop.f32.mrf.mxu0
  %v460 = vadd.f32 0.0, %v459
  %461 = vmatmul.bf16.gmra.mxu0 %v443
  %v462 = vpop.f32.mrf.mxu0
  %v463 = vadd.f32 0.0, %v462
  %v464 = vpop.f32.mrf.mxu0
  %v465 = vadd.f32 0.0, %v464
  %466 = vdwg.mxu0
  %v467 = vadd.f32 %v390, %v458
  %v468 = vadd.f32 %v392, %v460
  %v469 = vadd.f32 %v395, %v463
  %v470 = vadd.f32 %v397, %v465
  %s471 = scalar_lea.vmem %s2, 48
  %v472 = vld [vmem:[%s471] sm:$0xf]
  %v473 = vld [vmem:[%s471 + $0x4] sm:$0xf]
  %v474 = vld [vmem:[%s471 + $0x8] sm:$0xf]
  %v475 = vld [vmem:[%s471 + $0xc] sm:$0xf]
  %v480 = vunpack.c.l.b16 %v472
  %v481 = vunpack.c.l.b16 %v473
  %v482 = vunpack.c.l.b16 %v474
  %v483 = vunpack.c.l.b16 %v475
  %v484 = vpack.c.b16 %v481, %v480
  %v485 = vpack.c.b16 %v483, %v482
  %488 = vmatpush.bf16.msra.mxu0 %v262
  %489 = vmatpush.bf16.msra.mxu0 %v261
  %490 = vmatpush.bf16.msra.mxu0 %v260
  %491 = vmatpush.bf16.msra.mxu0 %v259
  %492 = vmatpush.bf16.msra.mxu0 %v258
  %493 = vmatpush.bf16.msra.mxu0 %v257
  %494 = vmatpush.bf16.msra.mxu0 %v256
  %495 = vmatpush.bf16.msra.mxu0 %v255
  %496 = vmatmul.bf16.gmra.mxu0 %v484
  %v497 = vpop.f32.mrf.mxu0
  %v498 = vadd.f32 0.0, %v497
  %v499 = vpop.f32.mrf.mxu0
  %v500 = vadd.f32 0.0, %v499
  %501 = vmatmul.bf16.gmra.mxu0 %v485
  %v502 = vpop.f32.mrf.mxu0
  %v503 = vadd.f32 0.0, %v502
  %v504 = vpop.f32.mrf.mxu0
  %v505 = vadd.f32 0.0, %v504
  %506 = vdwg.mxu0
  %v507 = vpack.c.bf16 %v500, %v498
  %v508 = vpack.c.bf16 %v505, %v503
  %s509 = scalar_lea.vmem %s3, 12
  %v510 = vld [vmem:[%s509] sm:$0xf]
  %v512 = vsel %vm341, %v507, 0
  %v515 = vsel %vm341, %v508, 0
  %v518 = vsel %vm348, %v510, 0
  %520 = vmatpush.bf16.msra.mxu0 0
  %521 = vmatpush.bf16.msra.mxu0 0
  %522 = vmatpush.bf16.msra.mxu0 0
  %523 = vmatpush.bf16.msra.mxu0 0
  %524 = vmatpush.bf16.msra.mxu0 0
  %525 = vmatpush.bf16.msra.mxu0 0
  %526 = vmatpush.bf16.msra.mxu0 0
  %527 = vmatpush.bf16.msra.mxu0 %v518
  %528 = vmatmul.bf16.gmra.mxu0 %v512
  %v529 = vpop.f32.mrf.mxu0
  %v530 = vadd.f32 0.0, %v529
  %v531 = vpop.f32.mrf.mxu0
  %v532 = vadd.f32 0.0, %v531
  %533 = vmatmul.bf16.gmra.mxu0 %v515
  %v534 = vpop.f32.mrf.mxu0
  %v535 = vadd.f32 0.0, %v534
  %v536 = vpop.f32.mrf.mxu0
  %v537 = vadd.f32 0.0, %v536
  %538 = vdwg.mxu0
  %v539 = vadd.f32 %v467, %v530
  %v540 = vadd.f32 %v468, %v532
  %v541 = vadd.f32 %v469, %v535
  %v542 = vadd.f32 %v470, %v537
  %s543 = scalar_lea.vmem %s2, 64
  %v544 = vld [vmem:[%s543] sm:$0xf]
  %v545 = vld [vmem:[%s543 + $0x4] sm:$0xf]
  %v546 = vld [vmem:[%s543 + $0x8] sm:$0xf]
  %v547 = vld [vmem:[%s543 + $0xc] sm:$0xf]
  %v552 = vunpack.c.l.b16 %v544
  %v553 = vunpack.c.l.b16 %v545
  %v554 = vunpack.c.l.b16 %v546
  %v555 = vunpack.c.l.b16 %v547
  %v556 = vpack.c.b16 %v553, %v552
  %v557 = vpack.c.b16 %v555, %v554
  %560 = vmatpush.bf16.msra.mxu0 %v262
  %561 = vmatpush.bf16.msra.mxu0 %v261
  %562 = vmatpush.bf16.msra.mxu0 %v260
  %563 = vmatpush.bf16.msra.mxu0 %v259
  %564 = vmatpush.bf16.msra.mxu0 %v258
  %565 = vmatpush.bf16.msra.mxu0 %v257
  %566 = vmatpush.bf16.msra.mxu0 %v256
  %567 = vmatpush.bf16.msra.mxu0 %v255
  %568 = vmatmul.bf16.gmra.mxu0 %v556
  %v569 = vpop.f32.mrf.mxu0
  %v570 = vadd.f32 0.0, %v569
  %v571 = vpop.f32.mrf.mxu0
  %v572 = vadd.f32 0.0, %v571
  %573 = vmatmul.bf16.gmra.mxu0 %v557
  %v574 = vpop.f32.mrf.mxu0
  %v575 = vadd.f32 0.0, %v574
  %v576 = vpop.f32.mrf.mxu0
  %v577 = vadd.f32 0.0, %v576
  %578 = vdwg.mxu0
  %v579 = vpack.c.bf16 %v572, %v570
  %v580 = vpack.c.bf16 %v577, %v575
  %s581 = scalar_lea.vmem %s3, 16
  %v582 = vld [vmem:[%s581] sm:$0xf]
  %v584 = vsel %vm341, %v579, 0
  %v587 = vsel %vm341, %v580, 0
  %v590 = vsel %vm348, %v582, 0
  %592 = vmatpush.bf16.msra.mxu0 0
  %593 = vmatpush.bf16.msra.mxu0 0
  %594 = vmatpush.bf16.msra.mxu0 0
  %595 = vmatpush.bf16.msra.mxu0 0
  %596 = vmatpush.bf16.msra.mxu0 0
  %597 = vmatpush.bf16.msra.mxu0 0
  %598 = vmatpush.bf16.msra.mxu0 0
  %599 = vmatpush.bf16.msra.mxu0 %v590
  %600 = vmatmul.bf16.gmra.mxu0 %v584
  %v601 = vpop.f32.mrf.mxu0
  %v602 = vadd.f32 0.0, %v601
  %v603 = vpop.f32.mrf.mxu0
  %v604 = vadd.f32 0.0, %v603
  %605 = vmatmul.bf16.gmra.mxu0 %v587
  %v606 = vpop.f32.mrf.mxu0
  %v607 = vadd.f32 0.0, %v606
  %v608 = vpop.f32.mrf.mxu0
  %v609 = vadd.f32 0.0, %v608
  %610 = vdwg.mxu0
  %v611 = vadd.f32 %v539, %v602
  %v612 = vadd.f32 %v540, %v604
  %v613 = vadd.f32 %v541, %v607
  %v614 = vadd.f32 %v542, %v609
  %s615 = scalar_lea.vmem %s2, 80
  %v616 = vld [vmem:[%s615] sm:$0xf]
  %v617 = vld [vmem:[%s615 + $0x4] sm:$0xf]
  %v618 = vld [vmem:[%s615 + $0x8] sm:$0xf]
  %v619 = vld [vmem:[%s615 + $0xc] sm:$0xf]
  %v624 = vunpack.c.l.b16 %v616
  %v625 = vunpack.c.l.b16 %v617
  %v626 = vunpack.c.l.b16 %v618
  %v627 = vunpack.c.l.b16 %v619
  %v628 = vpack.c.b16 %v625, %v624
  %v629 = vpack.c.b16 %v627, %v626
  %632 = vmatpush.bf16.msra.mxu0 %v262
  %633 = vmatpush.bf16.msra.mxu0 %v261
  %634 = vmatpush.bf16.msra.mxu0 %v260
  %635 = vmatpush.bf16.msra.mxu0 %v259
  %636 = vmatpush.bf16.msra.mxu0 %v258
  %637 = vmatpush.bf16.msra.mxu0 %v257
  %638 = vmatpush.bf16.msra.mxu0 %v256
  %639 = vmatpush.bf16.msra.mxu0 %v255
  %640 = vmatmul.bf16.gmra.mxu0 %v628
  %v641 = vpop.f32.mrf.mxu0
  %v642 = vadd.f32 0.0, %v641
  %v643 = vpop.f32.mrf.mxu0
  %v644 = vadd.f32 0.0, %v643
  %645 = vmatmul.bf16.gmra.mxu0 %v629
  %v646 = vpop.f32.mrf.mxu0
  %v647 = vadd.f32 0.0, %v646
  %v648 = vpop.f32.mrf.mxu0
  %v649 = vadd.f32 0.0, %v648
  %650 = vdwg.mxu0
  %v651 = vpack.c.bf16 %v644, %v642
  %v652 = vpack.c.bf16 %v649, %v647
  %s653 = scalar_lea.vmem %s3, 20
  %v654 = vld [vmem:[%s653] sm:$0xf]
  %v656 = vsel %vm341, %v651, 0
  %v659 = vsel %vm341, %v652, 0
  %v662 = vsel %vm348, %v654, 0
  %664 = vmatpush.bf16.msra.mxu0 0
  %665 = vmatpush.bf16.msra.mxu0 0
  %666 = vmatpush.bf16.msra.mxu0 0
  %667 = vmatpush.bf16.msra.mxu0 0
  %668 = vmatpush.bf16.msra.mxu0 0
  %669 = vmatpush.bf16.msra.mxu0 0
  %670 = vmatpush.bf16.msra.mxu0 0
  %671 = vmatpush.bf16.msra.mxu0 %v662
  %672 = vmatmul.bf16.gmra.mxu0 %v656
  %v673 = vpop.f32.mrf.mxu0
  %v674 = vadd.f32 0.0, %v673
  %v675 = vpop.f32.mrf.mxu0
  %v676 = vadd.f32 0.0, %v675
  %677 = vmatmul.bf16.gmra.mxu0 %v659
  %v678 = vpop.f32.mrf.mxu0
  %v679 = vadd.f32 0.0, %v678
  %v680 = vpop.f32.mrf.mxu0
  %v681 = vadd.f32 0.0, %v680
  %682 = vdwg.mxu0
  %v683 = vadd.f32 %v611, %v674
  %v684 = vadd.f32 %v612, %v676
  %v685 = vadd.f32 %v613, %v679
  %v686 = vadd.f32 %v614, %v681
  %s687 = scalar_lea.vmem %s2, 96
  %v688 = vld [vmem:[%s687] sm:$0xf]
  %v689 = vld [vmem:[%s687 + $0x4] sm:$0xf]
  %v690 = vld [vmem:[%s687 + $0x8] sm:$0xf]
  %v691 = vld [vmem:[%s687 + $0xc] sm:$0xf]
  %v696 = vunpack.c.l.b16 %v688
  %v697 = vunpack.c.l.b16 %v689
  %v698 = vunpack.c.l.b16 %v690
  %v699 = vunpack.c.l.b16 %v691
  %v700 = vpack.c.b16 %v697, %v696
  %v701 = vpack.c.b16 %v699, %v698
  %704 = vmatpush.bf16.msra.mxu0 %v262
  %705 = vmatpush.bf16.msra.mxu0 %v261
  %706 = vmatpush.bf16.msra.mxu0 %v260
  %707 = vmatpush.bf16.msra.mxu0 %v259
  %708 = vmatpush.bf16.msra.mxu0 %v258
  %709 = vmatpush.bf16.msra.mxu0 %v257
  %710 = vmatpush.bf16.msra.mxu0 %v256
  %711 = vmatpush.bf16.msra.mxu0 %v255
  %712 = vmatmul.bf16.gmra.mxu0 %v700
  %v713 = vpop.f32.mrf.mxu0
  %v714 = vadd.f32 0.0, %v713
  %v715 = vpop.f32.mrf.mxu0
  %v716 = vadd.f32 0.0, %v715
  %717 = vmatmul.bf16.gmra.mxu0 %v701
  %v718 = vpop.f32.mrf.mxu0
  %v719 = vadd.f32 0.0, %v718
  %v720 = vpop.f32.mrf.mxu0
  %v721 = vadd.f32 0.0, %v720
  %722 = vdwg.mxu0
  %v723 = vpack.c.bf16 %v716, %v714
  %v724 = vpack.c.bf16 %v721, %v719
  %s725 = scalar_lea.vmem %s3, 24
  %v726 = vld [vmem:[%s725] sm:$0xf]
  %v728 = vsel %vm341, %v723, 0
  %v731 = vsel %vm341, %v724, 0
  %v734 = vsel %vm348, %v726, 0
  %736 = vmatpush.bf16.msra.mxu0 0
  %737 = vmatpush.bf16.msra.mxu0 0
  %738 = vmatpush.bf16.msra.mxu0 0
  %739 = vmatpush.bf16.msra.mxu0 0
  %740 = vmatpush.bf16.msra.mxu0 0
  %741 = vmatpush.bf16.msra.mxu0 0
  %742 = vmatpush.bf16.msra.mxu0 0
  %743 = vmatpush.bf16.msra.mxu0 %v734
  %744 = vmatmul.bf16.gmra.mxu0 %v728
  %v745 = vpop.f32.mrf.mxu0
  %v746 = vadd.f32 0.0, %v745
  %v747 = vpop.f32.mrf.mxu0
  %v748 = vadd.f32 0.0, %v747
  %749 = vmatmul.bf16.gmra.mxu0 %v731
  %v750 = vpop.f32.mrf.mxu0
  %v751 = vadd.f32 0.0, %v750
  %v752 = vpop.f32.mrf.mxu0
  %v753 = vadd.f32 0.0, %v752
  %754 = vdwg.mxu0
  %v755 = vadd.f32 %v683, %v746
  %v756 = vadd.f32 %v684, %v748
  %v757 = vadd.f32 %v685, %v751
  %v758 = vadd.f32 %v686, %v753
  %s759 = scalar_lea.vmem %s2, 112
  %v760 = vld [vmem:[%s759] sm:$0xf]
  %v761 = vld [vmem:[%s759 + $0x4] sm:$0xf]
  %v762 = vld [vmem:[%s759 + $0x8] sm:$0xf]
  %v763 = vld [vmem:[%s759 + $0xc] sm:$0xf]
  %v768 = vunpack.c.l.b16 %v760
  %v769 = vunpack.c.l.b16 %v761
  %v770 = vunpack.c.l.b16 %v762
  %v771 = vunpack.c.l.b16 %v763
  %v772 = vpack.c.b16 %v769, %v768
  %v773 = vpack.c.b16 %v771, %v770
  %776 = vmatpush.bf16.msra.mxu0 %v262
  %777 = vmatpush.bf16.msra.mxu0 %v261
  %778 = vmatpush.bf16.msra.mxu0 %v260
  %779 = vmatpush.bf16.msra.mxu0 %v259
  %780 = vmatpush.bf16.msra.mxu0 %v258
  %781 = vmatpush.bf16.msra.mxu0 %v257
  %782 = vmatpush.bf16.msra.mxu0 %v256
  %783 = vmatpush.bf16.msra.mxu0 %v255
  %784 = vmatmul.bf16.gmra.mxu0 %v772
  %v785 = vpop.f32.mrf.mxu0
  %v786 = vadd.f32 0.0, %v785
  %v787 = vpop.f32.mrf.mxu0
  %v788 = vadd.f32 0.0, %v787
  %789 = vmatmul.bf16.gmra.mxu0 %v773
  %v790 = vpop.f32.mrf.mxu0
  %v791 = vadd.f32 0.0, %v790
  %v792 = vpop.f32.mrf.mxu0
  %v793 = vadd.f32 0.0, %v792
  %794 = vdwg.mxu0
  %v795 = vpack.c.bf16 %v788, %v786
  %v796 = vpack.c.bf16 %v793, %v791
  %s797 = scalar_lea.vmem %s3, 28
  %v798 = vld [vmem:[%s797] sm:$0xf]
  %v800 = vsel %vm341, %v795, 0
  %v803 = vsel %vm341, %v796, 0
  %v806 = vsel %vm348, %v798, 0
  %808 = vmatpush.bf16.msra.mxu0 0
  %809 = vmatpush.bf16.msra.mxu0 0
  %810 = vmatpush.bf16.msra.mxu0 0
  %811 = vmatpush.bf16.msra.mxu0 0
  %812 = vmatpush.bf16.msra.mxu0 0
  %813 = vmatpush.bf16.msra.mxu0 0
  %814 = vmatpush.bf16.msra.mxu0 0
  %815 = vmatpush.bf16.msra.mxu0 %v806
  %816 = vmatmul.bf16.gmra.mxu0 %v800
  %v817 = vpop.f32.mrf.mxu0
  %v818 = vadd.f32 0.0, %v817
  %v819 = vpop.f32.mrf.mxu0
  %v820 = vadd.f32 0.0, %v819
  %821 = vmatmul.bf16.gmra.mxu0 %v803
  %v822 = vpop.f32.mrf.mxu0
  %v823 = vadd.f32 0.0, %v822
  %v824 = vpop.f32.mrf.mxu0
  %v825 = vadd.f32 0.0, %v824
  %826 = vdwg.mxu0
  %v827 = vadd.f32 %v755, %v818
  %v828 = vadd.f32 %v756, %v820
  %v829 = vadd.f32 %v757, %v823
  %v830 = vadd.f32 %v758, %v825
  %s831 = scalar_lea.vmem %s2, 128
  %v832 = vld [vmem:[%s831] sm:$0xf]
  %v833 = vld [vmem:[%s831 + $0x4] sm:$0xf]
  %v834 = vld [vmem:[%s831 + $0x8] sm:$0xf]
  %v835 = vld [vmem:[%s831 + $0xc] sm:$0xf]
  %v840 = vunpack.c.l.b16 %v832
  %v841 = vunpack.c.l.b16 %v833
  %v842 = vunpack.c.l.b16 %v834
  %v843 = vunpack.c.l.b16 %v835
  %v844 = vpack.c.b16 %v841, %v840
  %v845 = vpack.c.b16 %v843, %v842
  %848 = vmatpush.bf16.msra.mxu0 %v262
  %849 = vmatpush.bf16.msra.mxu0 %v261
  %850 = vmatpush.bf16.msra.mxu0 %v260
  %851 = vmatpush.bf16.msra.mxu0 %v259
  %852 = vmatpush.bf16.msra.mxu0 %v258
  %853 = vmatpush.bf16.msra.mxu0 %v257
  %854 = vmatpush.bf16.msra.mxu0 %v256
  %855 = vmatpush.bf16.msra.mxu0 %v255
  %856 = vmatmul.bf16.gmra.mxu0 %v844
  %v857 = vpop.f32.mrf.mxu0
  %v858 = vadd.f32 0.0, %v857
  %v859 = vpop.f32.mrf.mxu0
  %v860 = vadd.f32 0.0, %v859
  %861 = vmatmul.bf16.gmra.mxu0 %v845
  %v862 = vpop.f32.mrf.mxu0
  %v863 = vadd.f32 0.0, %v862
  %v864 = vpop.f32.mrf.mxu0
  %v865 = vadd.f32 0.0, %v864
  %866 = vdwg.mxu0
  %v867 = vpack.c.bf16 %v860, %v858
  %v868 = vpack.c.bf16 %v865, %v863
  %s869 = scalar_lea.vmem %s3, 32
  %v870 = vld [vmem:[%s869] sm:$0xf]
  %v872 = vsel %vm341, %v867, 0
  %v875 = vsel %vm341, %v868, 0
  %v878 = vsel %vm348, %v870, 0
  %880 = vmatpush.bf16.msra.mxu0 0
  %881 = vmatpush.bf16.msra.mxu0 0
  %882 = vmatpush.bf16.msra.mxu0 0
  %883 = vmatpush.bf16.msra.mxu0 0
  %884 = vmatpush.bf16.msra.mxu0 0
  %885 = vmatpush.bf16.msra.mxu0 0
  %886 = vmatpush.bf16.msra.mxu0 0
  %887 = vmatpush.bf16.msra.mxu0 %v878
  %888 = vmatmul.bf16.gmra.mxu0 %v872
  %v889 = vpop.f32.mrf.mxu0
  %v890 = vadd.f32 0.0, %v889
  %v891 = vpop.f32.mrf.mxu0
  %v892 = vadd.f32 0.0, %v891
  %893 = vmatmul.bf16.gmra.mxu0 %v875
  %v894 = vpop.f32.mrf.mxu0
  %v895 = vadd.f32 0.0, %v894
  %v896 = vpop.f32.mrf.mxu0
  %v897 = vadd.f32 0.0, %v896
  %898 = vdwg.mxu0
  %v899 = vadd.f32 %v827, %v890
  %v900 = vadd.f32 %v828, %v892
  %v901 = vadd.f32 %v829, %v895
  %v902 = vadd.f32 %v830, %v897
  %s903 = scalar_lea.vmem %s2, 144
  %v904 = vld [vmem:[%s903] sm:$0xf]
  %v905 = vld [vmem:[%s903 + $0x4] sm:$0xf]
  %v906 = vld [vmem:[%s903 + $0x8] sm:$0xf]
  %v907 = vld [vmem:[%s903 + $0xc] sm:$0xf]
  %v912 = vunpack.c.l.b16 %v904
  %v913 = vunpack.c.l.b16 %v905
  %v914 = vunpack.c.l.b16 %v906
  %v915 = vunpack.c.l.b16 %v907
  %v916 = vpack.c.b16 %v913, %v912
  %v917 = vpack.c.b16 %v915, %v914
  %920 = vmatpush.bf16.msra.mxu0 %v262
  %921 = vmatpush.bf16.msra.mxu0 %v261
  %922 = vmatpush.bf16.msra.mxu0 %v260
  %923 = vmatpush.bf16.msra.mxu0 %v259
  %924 = vmatpush.bf16.msra.mxu0 %v258
  %925 = vmatpush.bf16.msra.mxu0 %v257
  %926 = vmatpush.bf16.msra.mxu0 %v256
  %927 = vmatpush.bf16.msra.mxu0 %v255
  %928 = vmatmul.bf16.gmra.mxu0 %v916
  %v929 = vpop.f32.mrf.mxu0
  %v930 = vadd.f32 0.0, %v929
  %v931 = vpop.f32.mrf.mxu0
  %v932 = vadd.f32 0.0, %v931
  %933 = vmatmul.bf16.gmra.mxu0 %v917
  %v934 = vpop.f32.mrf.mxu0
  %v935 = vadd.f32 0.0, %v934
  %v936 = vpop.f32.mrf.mxu0
  %v937 = vadd.f32 0.0, %v936
  %938 = vdwg.mxu0
  %v939 = vpack.c.bf16 %v932, %v930
  %v940 = vpack.c.bf16 %v937, %v935
  %s941 = scalar_lea.vmem %s3, 36
  %v942 = vld [vmem:[%s941] sm:$0xf]
  %v944 = vsel %vm341, %v939, 0
  %v947 = vsel %vm341, %v940, 0
  %v950 = vsel %vm348, %v942, 0
  %952 = vmatpush.bf16.msra.mxu0 0
  %953 = vmatpush.bf16.msra.mxu0 0
  %954 = vmatpush.bf16.msra.mxu0 0
  %955 = vmatpush.bf16.msra.mxu0 0
  %956 = vmatpush.bf16.msra.mxu0 0
  %957 = vmatpush.bf16.msra.mxu0 0
  %958 = vmatpush.bf16.msra.mxu0 0
  %959 = vmatpush.bf16.msra.mxu0 %v950
  %960 = vmatmul.bf16.gmra.mxu0 %v944
  %v961 = vpop.f32.mrf.mxu0
  %v962 = vadd.f32 0.0, %v961
  %v963 = vpop.f32.mrf.mxu0
  %v964 = vadd.f32 0.0, %v963
  %965 = vmatmul.bf16.gmra.mxu0 %v947
  %v966 = vpop.f32.mrf.mxu0
  %v967 = vadd.f32 0.0, %v966
  %v968 = vpop.f32.mrf.mxu0
  %v969 = vadd.f32 0.0, %v968
  %970 = vdwg.mxu0
  %v971 = vadd.f32 %v899, %v962
  %v972 = vadd.f32 %v900, %v964
  %v973 = vadd.f32 %v901, %v967
  %v974 = vadd.f32 %v902, %v969
  %s975 = scalar_lea.vmem %s2, 160
  %v976 = vld [vmem:[%s975] sm:$0xf]
  %v977 = vld [vmem:[%s975 + $0x4] sm:$0xf]
  %v978 = vld [vmem:[%s975 + $0x8] sm:$0xf]
  %v979 = vld [vmem:[%s975 + $0xc] sm:$0xf]
  %v984 = vunpack.c.l.b16 %v976
  %v985 = vunpack.c.l.b16 %v977
  %v986 = vunpack.c.l.b16 %v978
  %v987 = vunpack.c.l.b16 %v979
  %v988 = vpack.c.b16 %v985, %v984
  %v989 = vpack.c.b16 %v987, %v986
  %992 = vmatpush.bf16.msra.mxu0 %v262
  %993 = vmatpush.bf16.msra.mxu0 %v261
  %994 = vmatpush.bf16.msra.mxu0 %v260
  %995 = vmatpush.bf16.msra.mxu0 %v259
  %996 = vmatpush.bf16.msra.mxu0 %v258
  %997 = vmatpush.bf16.msra.mxu0 %v257
  %998 = vmatpush.bf16.msra.mxu0 %v256
  %999 = vmatpush.bf16.msra.mxu0 %v255
  %1000 = vmatmul.bf16.gmra.mxu0 %v988
  %v1001 = vpop.f32.mrf.mxu0
  %v1002 = vadd.f32 0.0, %v1001
  %v1003 = vpop.f32.mrf.mxu0
  %v1004 = vadd.f32 0.0, %v1003
  %1005 = vmatmul.bf16.gmra.mxu0 %v989
  %v1006 = vpop.f32.mrf.mxu0
  %v1007 = vadd.f32 0.0, %v1006
  %v1008 = vpop.f32.mrf.mxu0
  %v1009 = vadd.f32 0.0, %v1008
  %1010 = vdwg.mxu0
  %v1011 = vpack.c.bf16 %v1004, %v1002
  %v1012 = vpack.c.bf16 %v1009, %v1007
  %s1013 = scalar_lea.vmem %s3, 40
  %v1014 = vld [vmem:[%s1013] sm:$0xf]
  %v1016 = vsel %vm341, %v1011, 0
  %v1019 = vsel %vm341, %v1012, 0
  %v1022 = vsel %vm348, %v1014, 0
  %1024 = vmatpush.bf16.msra.mxu0 0
  %1025 = vmatpush.bf16.msra.mxu0 0
  %1026 = vmatpush.bf16.msra.mxu0 0
  %1027 = vmatpush.bf16.msra.mxu0 0
  %1028 = vmatpush.bf16.msra.mxu0 0
  %1029 = vmatpush.bf16.msra.mxu0 0
  %1030 = vmatpush.bf16.msra.mxu0 0
  %1031 = vmatpush.bf16.msra.mxu0 %v1022
  %1032 = vmatmul.bf16.gmra.mxu0 %v1016
  %v1033 = vpop.f32.mrf.mxu0
  %v1034 = vadd.f32 0.0, %v1033
  %v1035 = vpop.f32.mrf.mxu0
  %v1036 = vadd.f32 0.0, %v1035
  %1037 = vmatmul.bf16.gmra.mxu0 %v1019
  %v1038 = vpop.f32.mrf.mxu0
  %v1039 = vadd.f32 0.0, %v1038
  %v1040 = vpop.f32.mrf.mxu0
  %v1041 = vadd.f32 0.0, %v1040
  %1042 = vdwg.mxu0
  %v1043 = vadd.f32 %v971, %v1034
  %v1044 = vadd.f32 %v972, %v1036
  %v1045 = vadd.f32 %v973, %v1039
  %v1046 = vadd.f32 %v974, %v1041
  %s1047 = scalar_lea.vmem %s2, 176
  %v1048 = vld [vmem:[%s1047] sm:$0xf]
  %v1049 = vld [vmem:[%s1047 + $0x4] sm:$0xf]
  %v1050 = vld [vmem:[%s1047 + $0x8] sm:$0xf]
  %v1051 = vld [vmem:[%s1047 + $0xc] sm:$0xf]
  %v1056 = vunpack.c.l.b16 %v1048
  %v1057 = vunpack.c.l.b16 %v1049
  %v1058 = vunpack.c.l.b16 %v1050
  %v1059 = vunpack.c.l.b16 %v1051
  %v1060 = vpack.c.b16 %v1057, %v1056
  %v1061 = vpack.c.b16 %v1059, %v1058
  %1064 = vmatpush.bf16.msra.mxu0 %v262
  %1065 = vmatpush.bf16.msra.mxu0 %v261
  %1066 = vmatpush.bf16.msra.mxu0 %v260
  %1067 = vmatpush.bf16.msra.mxu0 %v259
  %1068 = vmatpush.bf16.msra.mxu0 %v258
  %1069 = vmatpush.bf16.msra.mxu0 %v257
  %1070 = vmatpush.bf16.msra.mxu0 %v256
  %1071 = vmatpush.bf16.msra.mxu0 %v255
  %1072 = vmatmul.bf16.gmra.mxu0 %v1060
  %v1073 = vpop.f32.mrf.mxu0
  %v1074 = vadd.f32 0.0, %v1073
  %v1075 = vpop.f32.mrf.mxu0
  %v1076 = vadd.f32 0.0, %v1075
  %1077 = vmatmul.bf16.gmra.mxu0 %v1061
  %v1078 = vpop.f32.mrf.mxu0
  %v1079 = vadd.f32 0.0, %v1078
  %v1080 = vpop.f32.mrf.mxu0
  %v1081 = vadd.f32 0.0, %v1080
  %1082 = vdwg.mxu0
  %v1083 = vpack.c.bf16 %v1076, %v1074
  %v1084 = vpack.c.bf16 %v1081, %v1079
  %s1085 = scalar_lea.vmem %s3, 44
  %v1086 = vld [vmem:[%s1085] sm:$0xf]
  %v1088 = vsel %vm341, %v1083, 0
  %v1091 = vsel %vm341, %v1084, 0
  %v1094 = vsel %vm348, %v1086, 0
  %1096 = vmatpush.bf16.msra.mxu0 0
  %1097 = vmatpush.bf16.msra.mxu0 0
  %1098 = vmatpush.bf16.msra.mxu0 0
  %1099 = vmatpush.bf16.msra.mxu0 0
  %1100 = vmatpush.bf16.msra.mxu0 0
  %1101 = vmatpush.bf16.msra.mxu0 0
  %1102 = vmatpush.bf16.msra.mxu0 0
  %1103 = vmatpush.bf16.msra.mxu0 %v1094
  %1104 = vmatmul.bf16.gmra.mxu0 %v1088
  %v1105 = vpop.f32.mrf.mxu0
  %v1106 = vadd.f32 0.0, %v1105
  %v1107 = vpop.f32.mrf.mxu0
  %v1108 = vadd.f32 0.0, %v1107
  %1109 = vmatmul.bf16.gmra.mxu0 %v1091
  %v1110 = vpop.f32.mrf.mxu0
  %v1111 = vadd.f32 0.0, %v1110
  %v1112 = vpop.f32.mrf.mxu0
  %v1113 = vadd.f32 0.0, %v1112
  %1114 = vdwg.mxu0
  %v1115 = vadd.f32 %v1043, %v1106
  %v1116 = vadd.f32 %v1044, %v1108
  %v1117 = vadd.f32 %v1045, %v1111
  %v1118 = vadd.f32 %v1046, %v1113
  %s1119 = scalar_lea.vmem %s2, 192
  %v1120 = vld [vmem:[%s1119] sm:$0xf]
  %v1121 = vld [vmem:[%s1119 + $0x4] sm:$0xf]
  %v1122 = vld [vmem:[%s1119 + $0x8] sm:$0xf]
  %v1123 = vld [vmem:[%s1119 + $0xc] sm:$0xf]
  %v1128 = vunpack.c.l.b16 %v1120
  %v1129 = vunpack.c.l.b16 %v1121
  %v1130 = vunpack.c.l.b16 %v1122
  %v1131 = vunpack.c.l.b16 %v1123
  %v1132 = vpack.c.b16 %v1129, %v1128
  %v1133 = vpack.c.b16 %v1131, %v1130
  %1136 = vmatpush.bf16.msra.mxu0 %v262
  %1137 = vmatpush.bf16.msra.mxu0 %v261
  %1138 = vmatpush.bf16.msra.mxu0 %v260
  %1139 = vmatpush.bf16.msra.mxu0 %v259
  %1140 = vmatpush.bf16.msra.mxu0 %v258
  %1141 = vmatpush.bf16.msra.mxu0 %v257
  %1142 = vmatpush.bf16.msra.mxu0 %v256
  %1143 = vmatpush.bf16.msra.mxu0 %v255
  %1144 = vmatmul.bf16.gmra.mxu0 %v1132
  %v1145 = vpop.f32.mrf.mxu0
  %v1146 = vadd.f32 0.0, %v1145
  %v1147 = vpop.f32.mrf.mxu0
  %v1148 = vadd.f32 0.0, %v1147
  %1149 = vmatmul.bf16.gmra.mxu0 %v1133
  %v1150 = vpop.f32.mrf.mxu0
  %v1151 = vadd.f32 0.0, %v1150
  %v1152 = vpop.f32.mrf.mxu0
  %v1153 = vadd.f32 0.0, %v1152
  %1154 = vdwg.mxu0
  %v1155 = vpack.c.bf16 %v1148, %v1146
  %v1156 = vpack.c.bf16 %v1153, %v1151
  %s1157 = scalar_lea.vmem %s3, 48
  %v1158 = vld [vmem:[%s1157] sm:$0xf]
  %v1160 = vsel %vm341, %v1155, 0
  %v1163 = vsel %vm341, %v1156, 0
  %v1166 = vsel %vm348, %v1158, 0
  %1168 = vmatpush.bf16.msra.mxu0 0
  %1169 = vmatpush.bf16.msra.mxu0 0
  %1170 = vmatpush.bf16.msra.mxu0 0
  %1171 = vmatpush.bf16.msra.mxu0 0
  %1172 = vmatpush.bf16.msra.mxu0 0
  %1173 = vmatpush.bf16.msra.mxu0 0
  %1174 = vmatpush.bf16.msra.mxu0 0
  %1175 = vmatpush.bf16.msra.mxu0 %v1166
  %1176 = vmatmul.bf16.gmra.mxu0 %v1160
  %v1177 = vpop.f32.mrf.mxu0
  %v1178 = vadd.f32 0.0, %v1177
  %v1179 = vpop.f32.mrf.mxu0
  %v1180 = vadd.f32 0.0, %v1179
  %1181 = vmatmul.bf16.gmra.mxu0 %v1163
  %v1182 = vpop.f32.mrf.mxu0
  %v1183 = vadd.f32 0.0, %v1182
  %v1184 = vpop.f32.mrf.mxu0
  %v1185 = vadd.f32 0.0, %v1184
  %1186 = vdwg.mxu0
  %v1187 = vadd.f32 %v1115, %v1178
  %v1188 = vadd.f32 %v1116, %v1180
  %v1189 = vadd.f32 %v1117, %v1183
  %v1190 = vadd.f32 %v1118, %v1185
  %s1191 = scalar_lea.vmem %s2, 208
  %v1192 = vld [vmem:[%s1191] sm:$0xf]
  %v1193 = vld [vmem:[%s1191 + $0x4] sm:$0xf]
  %v1194 = vld [vmem:[%s1191 + $0x8] sm:$0xf]
  %v1195 = vld [vmem:[%s1191 + $0xc] sm:$0xf]
  %v1200 = vunpack.c.l.b16 %v1192
  %v1201 = vunpack.c.l.b16 %v1193
  %v1202 = vunpack.c.l.b16 %v1194
  %v1203 = vunpack.c.l.b16 %v1195
  %v1204 = vpack.c.b16 %v1201, %v1200
  %v1205 = vpack.c.b16 %v1203, %v1202
  %1208 = vmatpush.bf16.msra.mxu0 %v262
  %1209 = vmatpush.bf16.msra.mxu0 %v261
  %1210 = vmatpush.bf16.msra.mxu0 %v260
  %1211 = vmatpush.bf16.msra.mxu0 %v259
  %1212 = vmatpush.bf16.msra.mxu0 %v258
  %1213 = vmatpush.bf16.msra.mxu0 %v257
  %1214 = vmatpush.bf16.msra.mxu0 %v256
  %1215 = vmatpush.bf16.msra.mxu0 %v255
  %1216 = vmatmul.bf16.gmra.mxu0 %v1204
  %v1217 = vpop.f32.mrf.mxu0
  %v1218 = vadd.f32 0.0, %v1217
  %v1219 = vpop.f32.mrf.mxu0
  %v1220 = vadd.f32 0.0, %v1219
  %1221 = vmatmul.bf16.gmra.mxu0 %v1205
  %v1222 = vpop.f32.mrf.mxu0
  %v1223 = vadd.f32 0.0, %v1222
  %v1224 = vpop.f32.mrf.mxu0
  %v1225 = vadd.f32 0.0, %v1224
  %1226 = vdwg.mxu0
  %v1227 = vpack.c.bf16 %v1220, %v1218
  %v1228 = vpack.c.bf16 %v1225, %v1223
  %s1229 = scalar_lea.vmem %s3, 52
  %v1230 = vld [vmem:[%s1229] sm:$0xf]
  %v1232 = vsel %vm341, %v1227, 0
  %v1235 = vsel %vm341, %v1228, 0
  %v1238 = vsel %vm348, %v1230, 0
  %1240 = vmatpush.bf16.msra.mxu0 0
  %1241 = vmatpush.bf16.msra.mxu0 0
  %1242 = vmatpush.bf16.msra.mxu0 0
  %1243 = vmatpush.bf16.msra.mxu0 0
  %1244 = vmatpush.bf16.msra.mxu0 0
  %1245 = vmatpush.bf16.msra.mxu0 0
  %1246 = vmatpush.bf16.msra.mxu0 0
  %1247 = vmatpush.bf16.msra.mxu0 %v1238
  %1248 = vmatmul.bf16.gmra.mxu0 %v1232
  %v1249 = vpop.f32.mrf.mxu0
  %v1250 = vadd.f32 0.0, %v1249
  %v1251 = vpop.f32.mrf.mxu0
  %v1252 = vadd.f32 0.0, %v1251
  %1253 = vmatmul.bf16.gmra.mxu0 %v1235
  %v1254 = vpop.f32.mrf.mxu0
  %v1255 = vadd.f32 0.0, %v1254
  %v1256 = vpop.f32.mrf.mxu0
  %v1257 = vadd.f32 0.0, %v1256
  %1258 = vdwg.mxu0
  %v1259 = vadd.f32 %v1187, %v1250
  %v1260 = vadd.f32 %v1188, %v1252
  %v1261 = vadd.f32 %v1189, %v1255
  %v1262 = vadd.f32 %v1190, %v1257
  %s1263 = scalar_lea.vmem %s2, 224
  %v1264 = vld [vmem:[%s1263] sm:$0xf]
  %v1265 = vld [vmem:[%s1263 + $0x4] sm:$0xf]
  %v1266 = vld [vmem:[%s1263 + $0x8] sm:$0xf]
  %v1267 = vld [vmem:[%s1263 + $0xc] sm:$0xf]
  %v1272 = vunpack.c.l.b16 %v1264
  %v1273 = vunpack.c.l.b16 %v1265
  %v1274 = vunpack.c.l.b16 %v1266
  %v1275 = vunpack.c.l.b16 %v1267
  %v1276 = vpack.c.b16 %v1273, %v1272
  %v1277 = vpack.c.b16 %v1275, %v1274
  %1280 = vmatpush.bf16.msra.mxu0 %v262
  %1281 = vmatpush.bf16.msra.mxu0 %v261
  %1282 = vmatpush.bf16.msra.mxu0 %v260
  %1283 = vmatpush.bf16.msra.mxu0 %v259
  %1284 = vmatpush.bf16.msra.mxu0 %v258
  %1285 = vmatpush.bf16.msra.mxu0 %v257
  %1286 = vmatpush.bf16.msra.mxu0 %v256
  %1287 = vmatpush.bf16.msra.mxu0 %v255
  %1288 = vmatmul.bf16.gmra.mxu0 %v1276
  %v1289 = vpop.f32.mrf.mxu0
  %v1290 = vadd.f32 0.0, %v1289
  %v1291 = vpop.f32.mrf.mxu0
  %v1292 = vadd.f32 0.0, %v1291
  %1293 = vmatmul.bf16.gmra.mxu0 %v1277
  %v1294 = vpop.f32.mrf.mxu0
  %v1295 = vadd.f32 0.0, %v1294
  %v1296 = vpop.f32.mrf.mxu0
  %v1297 = vadd.f32 0.0, %v1296
  %1298 = vdwg.mxu0
  %v1299 = vpack.c.bf16 %v1292, %v1290
  %v1300 = vpack.c.bf16 %v1297, %v1295
  %s1301 = scalar_lea.vmem %s3, 56
  %v1302 = vld [vmem:[%s1301] sm:$0xf]
  %v1304 = vsel %vm341, %v1299, 0
  %v1307 = vsel %vm341, %v1300, 0
  %v1310 = vsel %vm348, %v1302, 0
  %1312 = vmatpush.bf16.msra.mxu0 0
  %1313 = vmatpush.bf16.msra.mxu0 0
  %1314 = vmatpush.bf16.msra.mxu0 0
  %1315 = vmatpush.bf16.msra.mxu0 0
  %1316 = vmatpush.bf16.msra.mxu0 0
  %1317 = vmatpush.bf16.msra.mxu0 0
  %1318 = vmatpush.bf16.msra.mxu0 0
  %1319 = vmatpush.bf16.msra.mxu0 %v1310
  %1320 = vmatmul.bf16.gmra.mxu0 %v1304
  %v1321 = vpop.f32.mrf.mxu0
  %v1322 = vadd.f32 0.0, %v1321
  %v1323 = vpop.f32.mrf.mxu0
  %v1324 = vadd.f32 0.0, %v1323
  %1325 = vmatmul.bf16.gmra.mxu0 %v1307
  %v1326 = vpop.f32.mrf.mxu0
  %v1327 = vadd.f32 0.0, %v1326
  %v1328 = vpop.f32.mrf.mxu0
  %v1329 = vadd.f32 0.0, %v1328
  %1330 = vdwg.mxu0
  %v1331 = vadd.f32 %v1259, %v1322
  %v1332 = vadd.f32 %v1260, %v1324
  %v1333 = vadd.f32 %v1261, %v1327
  %v1334 = vadd.f32 %v1262, %v1329
  %s1335 = scalar_lea.vmem %s2, 240
  %v1336 = vld [vmem:[%s1335] sm:$0xf]
  %v1337 = vld [vmem:[%s1335 + $0x4] sm:$0xf]
  %v1338 = vld [vmem:[%s1335 + $0x8] sm:$0xf]
  %v1339 = vld [vmem:[%s1335 + $0xc] sm:$0xf]
  %v1344 = vunpack.c.l.b16 %v1336
  %v1345 = vunpack.c.l.b16 %v1337
  %v1346 = vunpack.c.l.b16 %v1338
  %v1347 = vunpack.c.l.b16 %v1339
  %v1348 = vpack.c.b16 %v1345, %v1344
  %v1349 = vpack.c.b16 %v1347, %v1346
  %1352 = vmatpush.bf16.msra.mxu0 %v262
  %1353 = vmatpush.bf16.msra.mxu0 %v261
  %1354 = vmatpush.bf16.msra.mxu0 %v260
  %1355 = vmatpush.bf16.msra.mxu0 %v259
  %1356 = vmatpush.bf16.msra.mxu0 %v258
  %1357 = vmatpush.bf16.msra.mxu0 %v257
  %1358 = vmatpush.bf16.msra.mxu0 %v256
  %1359 = vmatpush.bf16.msra.mxu0 %v255
  %1360 = vmatmul.bf16.gmra.mxu0 %v1348
  %v1361 = vpop.f32.mrf.mxu0
  %v1362 = vadd.f32 0.0, %v1361
  %v1363 = vpop.f32.mrf.mxu0
  %v1364 = vadd.f32 0.0, %v1363
  %1365 = vmatmul.bf16.gmra.mxu0 %v1349
  %v1366 = vpop.f32.mrf.mxu0
  %v1367 = vadd.f32 0.0, %v1366
  %v1368 = vpop.f32.mrf.mxu0
  %v1369 = vadd.f32 0.0, %v1368
  %1370 = vdwg.mxu0
  %v1371 = vpack.c.bf16 %v1364, %v1362
  %v1372 = vpack.c.bf16 %v1369, %v1367
  %s1373 = scalar_lea.vmem %s3, 60
  %v1374 = vld [vmem:[%s1373] sm:$0xf]
  %v1376 = vsel %vm341, %v1371, 0
  %v1379 = vsel %vm341, %v1372, 0
  %v1382 = vsel %vm348, %v1374, 0
  %1384 = vmatpush.bf16.msra.mxu0 0
  %1385 = vmatpush.bf16.msra.mxu0 0
  %1386 = vmatpush.bf16.msra.mxu0 0
  %1387 = vmatpush.bf16.msra.mxu0 0
  %1388 = vmatpush.bf16.msra.mxu0 0
  %1389 = vmatpush.bf16.msra.mxu0 0
  %1390 = vmatpush.bf16.msra.mxu0 0
  %1391 = vmatpush.bf16.msra.mxu0 %v1382
  %1392 = vmatmul.bf16.gmra.mxu0 %v1376
  %v1393 = vpop.f32.mrf.mxu0
  %v1394 = vadd.f32 0.0, %v1393
  %v1395 = vpop.f32.mrf.mxu0
  %v1396 = vadd.f32 0.0, %v1395
  %1397 = vmatmul.bf16.gmra.mxu0 %v1379
  %v1398 = vpop.f32.mrf.mxu0
  %v1399 = vadd.f32 0.0, %v1398
  %v1400 = vpop.f32.mrf.mxu0
  %v1401 = vadd.f32 0.0, %v1400
  %1402 = vdwg.mxu0
  %v1403 = vadd.f32 %v1331, %v1394
  %v1404 = vadd.f32 %v1332, %v1396
  %v1405 = vadd.f32 %v1333, %v1399
  %v1406 = vadd.f32 %v1334, %v1401
  %v1407 = vld [vmem:[%s4] sm:$0x1]
  %v1409 = vperm.slane %v1407, 0
  %v1411 = vadd.f32 %v1403, %v1409
  %v1412 = vadd.f32 %v1404, %v1409
  %v1413 = vadd.f32 %v1405, %v1409
  %v1414 = vadd.f32 %v1406, %v1409
  %v1415 = vsel %vm133, %v1411, 0.0
  %v1416 = vsel %vm133, %v1412, 0.0
  %v1417 = vadd.f32 %v1415, %v1416
  %v1418 = vsel %vm133, %v1413, 0.0
  %v1419 = vadd.f32 %v1417, %v1418
  %v1420 = vsel %vm133, %v1414, 0.0
  %v1421 = vadd.f32 %v1419, %v1420
  %v1422 = vrot.slane %v1421, 4
  %v1423 = vadd.f32 %v1421, %v1422
  %v1424 = vrot.slane %v1423, 2
  %v1425 = vadd.f32 %v1423, %v1424
  %v1426 = vrot.slane %v1425, 1
  %v1427 = vadd.f32 %v1425, %v1426
  %v1428 = vrcp.pop 32.0
  %v1429 = vmul.f32 32.0, %v1428
  %v1430 = vsub.f32 1.0, %v1429
  %v1431 = vmul.f32 %v1428, %v1430
  %v1432 = vadd.f32 %v1428, %v1431
  %vm1433 = vweird.f32 %v1428
  %v1434 = vsel %vm1433, %v1428, %v1432
  %v1435 = vmul.f32 %v1427, %v1434
  %v1436 = vsub.f32 %v1411, %v1435
  %v1437 = vsub.f32 %v1412, %v1435
  %v1438 = vsub.f32 %v1413, %v1435
  %v1439 = vsub.f32 %v1414, %v1435
  %v1440 = vmul.f32 %v1436, %v1436
  %v1441 = vmul.f32 %v1437, %v1437
  %v1442 = vmul.f32 %v1438, %v1438
  %v1443 = vmul.f32 %v1439, %v1439
  %v1444 = vsel %vm133, %v1440, 0.0
  %v1445 = vsel %vm133, %v1441, 0.0
  %v1446 = vadd.f32 %v1444, %v1445
  %v1447 = vsel %vm133, %v1442, 0.0
  %v1448 = vadd.f32 %v1446, %v1447
  %v1449 = vsel %vm133, %v1443, 0.0
  %v1450 = vadd.f32 %v1448, %v1449
  %v1451 = vrot.slane %v1450, 4
  %v1452 = vadd.f32 %v1450, %v1451
  %v1453 = vrot.slane %v1452, 2
  %v1454 = vadd.f32 %v1452, %v1453
  %v1455 = vrot.slane %v1454, 1
  %v1456 = vadd.f32 %v1454, %v1455
  %v1457 = vmul.f32 %v1456, %v1434
  %v1458 = vadd.f32 %v1457, 0.8
  %v1459 = vrsqrt.pop %v1458
  %v1460 = vmul.f32 %v1459, %v1458
  %v1461 = vmul.f32 %v1460, %v1459
  %v1462 = vmul.f32 0.5, %v1461
  %v1463 = vsub.f32 1.5, %v1462
  %v1464 = vmul.f32 %v1459, %v1463
  %vm1465 = vweird.f32 %v1458
  %vm1466 = vweird.f32 %v1459
  %vm1467 = vmor %vm1465, %vm1466
  %v1468 = vsel %vm1467, %v1459, %v1464
  %v1469 = vmul.f32 %v1436, %v1468
  %v1470 = vmul.f32 %v1437, %v1468
  %v1471 = vmul.f32 %v1438, %v1468
  %v1472 = vmul.f32 %v1439, %v1468
  %v1473 = vld [vmem:[%s5] sm:$0x1]
  %v1475 = vperm.slane %v1473, 0
  %v1477 = vmul.f32 %v1469, %v1475
  %v1478 = vmul.f32 %v1470, %v1475
  %v1479 = vmul.f32 %v1471, %v1475
  %v1480 = vmul.f32 %v1472, %v1475
  %v1481 = vld [vmem:[%s6] sm:$0x1]
  %v1483 = vperm.slane %v1481, 0
  %v1485 = vadd.f32 %v1477, %v1483
  %v1486 = vadd.f32 %v1478, %v1483
  %v1487 = vadd.f32 %v1479, %v1483
  %v1488 = vadd.f32 %v1480, %v1483
  %vm1489 = vcmp.ge.f32.partialorder %v1485, 0.0
  %vm1490 = vcmp.ge.f32.partialorder %v1486, 0.0
  %vm1491 = vcmp.ge.f32.partialorder %v1487, 0.0
  %vm1492 = vcmp.ge.f32.partialorder %v1488, 0.0
  %v1493 = vmul.f32 %v1485, 0.1
  %v1494 = vmul.f32 %v1486, 0.1
  %v1495 = vmul.f32 %v1487, 0.1
  %v1496 = vmul.f32 %v1488, 0.1
  %v1497 = vsel %vm1489, %v1485, %v1493
  %v1498 = vsel %vm1490, %v1486, %v1494
  %v1499 = vsel %vm1491, %v1487, %v1495
  %v1500 = vsel %vm1492, %v1488, %v1496
  %v1501 = vpack.c.bf16 %v1498, %v1497
  %v1502 = vpack.c.bf16 %v1500, %v1499
  %v1503 = vld [vmem:[%s7] sm:$0xf]
  %vm1504 = vcmask 261120
  %v1506 = vsel %vm1504, %v1503, 0
  %1508 = vmatpush.bf16.msra.mxu0 0
  %1509 = vmatpush.bf16.msra.mxu0 0
  %1510 = vmatpush.bf16.msra.mxu0 0
  %1511 = vmatpush.bf16.msra.mxu0 0
  %1512 = vmatpush.bf16.msra.mxu0 0
  %1513 = vmatpush.bf16.msra.mxu0 0
  %1514 = vmatpush.bf16.msra.mxu0 %v1502
  %1515 = vmatpush.bf16.msra.mxu0 %v1501
  %1516 = vmatmul.bf16.gmra.mxu0 %v1506
  %v1517 = vpop.f32.mrf.mxu0
  %v1518 = vadd.f32 0.0, %v1517
  %v1519 = vpop.f32.mrf.mxu0
  %1520 = vdwg.mxu0
  %v1521 = vpack.c.bf16 %v1518, %v1518
  %v1522 = vld [vmem:[%s8] sm:$0xf]
  %v1523 = vld [vmem:[%s8 + $0x4] sm:$0xf]
  %s1524 = scalar_lea.vmem %s7, 4
  %v1525 = vld [vmem:[%s1524] sm:$0xf]
  %v1527 = vsel %vm1504, %v1525, 0
  %1529 = vmatpush.bf16.msra.mxu0 0
  %1530 = vmatpush.bf16.msra.mxu0 0
  %1531 = vmatpush.bf16.msra.mxu0 0
  %1532 = vmatpush.bf16.msra.mxu0 0
  %1533 = vmatpush.bf16.msra.mxu0 0
  %1534 = vmatpush.bf16.msra.mxu0 0
  %1535 = vmatpush.bf16.msra.mxu0 %v1502
  %1536 = vmatpush.bf16.msra.mxu0 %v1501
  %1537 = vmatmul.bf16.gmra.mxu0 %v1527
  %v1538 = vpop.f32.mrf.mxu0
  %v1539 = vadd.f32 0.0, %v1538
  %v1540 = vpop.f32.mrf.mxu0
  %1541 = vdwg.mxu0
  %v1542 = vpack.c.bf16 %v1539, %v1539
  %s1543 = scalar_lea.vmem %s8, 8
  %v1544 = vld [vmem:[%s1543] sm:$0xf]
  %v1545 = vld [vmem:[%s1543 + $0x4] sm:$0xf]
  %v1548 = vunpack.c.l.b16 %v1544
  %v1549 = vunpack.c.l.b16 %v1545
  %v1550 = vpack.c.b16 %v1549, %v1548
  %v1553 = vsel %vm133, %v1542, 0
  %1555 = vmatpush.bf16.msra.mxu0 0
  %1556 = vmatpush.bf16.msra.mxu0 0
  %1557 = vmatpush.bf16.msra.mxu0 0
  %1558 = vmatpush.bf16.msra.mxu0 0
  %1559 = vmatpush.bf16.msra.mxu0 0
  %1560 = vmatpush.bf16.msra.mxu0 0
  %1561 = vmatpush.bf16.msra.mxu0 0
  %1562 = vmatpush.bf16.msra.mxu0 %v1550
  %1563 = vmatmul.bf16.gmra.mxu0 %v1553
  %v1564 = vpop.f32.mrf.mxu0
  %v1565 = vadd.f32 0.0, %v1564
  %v1566 = vpop.f32.mrf.mxu0
  %1567 = vdwg.mxu0
  %v1570 = vunpack.c.l.b16 %v1522
  %v1571 = vunpack.c.l.b16 %v1523
  %v1572 = vpack.c.b16 %v1571, %v1570
  %v1575 = vsel %vm133, %v1521, 0
  %1577 = vmatpush.bf16.msra.mxu0 0
  %1578 = vmatpush.bf16.msra.mxu0 0
  %1579 = vmatpush.bf16.msra.mxu0 0
  %1580 = vmatpush.bf16.msra.mxu0 0
  %1581 = vmatpush.bf16.msra.mxu0 0
  %1582 = vmatpush.bf16.msra.mxu0 0
  %1583 = vmatpush.bf16.msra.mxu0 0
  %1584 = vmatpush.bf16.msra.mxu0 %v1572
  %1585 = vmatmul.bf16.gmra.mxu0 %v1575
  %v1586 = vpop.f32.mrf.mxu0
  %v1587 = vadd.f32 %v1565, %v1586
  %v1588 = vpop.f32.mrf.mxu0
  %1589 = vdwg.mxu0
  %s1590 = scalar_lea.vmem %s7, 8
  %v1591 = vld [vmem:[%s1590] sm:$0xf]
  %v1593 = vsel %vm1504, %v1591, 0
  %1595 = vmatpush.bf16.msra.mxu0 0
  %1596 = vmatpush.bf16.msra.mxu0 0
  %1597 = vmatpush.bf16.msra.mxu0 0
  %1598 = vmatpush.bf16.msra.mxu0 0
  %1599 = vmatpush.bf16.msra.mxu0 0
  %1600 = vmatpush.bf16.msra.mxu0 0
  %1601 = vmatpush.bf16.msra.mxu0 %v1502
  %1602 = vmatpush.bf16.msra.mxu0 %v1501
  %1603 = vmatmul.bf16.gmra.mxu0 %v1593
  %v1604 = vpop.f32.mrf.mxu0
  %v1605 = vadd.f32 0.0, %v1604
  %v1606 = vpop.f32.mrf.mxu0
  %1607 = vdwg.mxu0
  %v1608 = vpack.c.bf16 %v1605, %v1605
  %s1609 = scalar_lea.vmem %s8, 16
  %v1610 = vld [vmem:[%s1609] sm:$0xf]
  %v1611 = vld [vmem:[%s1609 + $0x4] sm:$0xf]
  %v1614 = vunpack.c.l.b16 %v1610
  %v1615 = vunpack.c.l.b16 %v1611
  %v1616 = vpack.c.b16 %v1615, %v1614
  %v1619 = vsel %vm133, %v1608, 0
  %1621 = vmatpush.bf16.msra.mxu0 0
  %1622 = vmatpush.bf16.msra.mxu0 0
  %1623 = vmatpush.bf16.msra.mxu0 0
  %1624 = vmatpush.bf16.msra.mxu0 0
  %1625 = vmatpush.bf16.msra.mxu0 0
  %1626 = vmatpush.bf16.msra.mxu0 0
  %1627 = vmatpush.bf16.msra.mxu0 0
  %1628 = vmatpush.bf16.msra.mxu0 %v1616
  %1629 = vmatmul.bf16.gmra.mxu0 %v1619
  %v1630 = vpop.f32.mrf.mxu0
  %v1631 = vadd.f32 0.0, %v1630
  %v1632 = vpop.f32.mrf.mxu0
  %1633 = vdwg.mxu0
  %v1634 = vadd.f32 %v1587, %v1631
  %s1635 = scalar_lea.vmem %s7, 12
  %v1636 = vld [vmem:[%s1635] sm:$0xf]
  %v1638 = vsel %vm1504, %v1636, 0
  %1640 = vmatpush.bf16.msra.mxu0 0
  %1641 = vmatpush.bf16.msra.mxu0 0
  %1642 = vmatpush.bf16.msra.mxu0 0
  %1643 = vmatpush.bf16.msra.mxu0 0
  %1644 = vmatpush.bf16.msra.mxu0 0
  %1645 = vmatpush.bf16.msra.mxu0 0
  %1646 = vmatpush.bf16.msra.mxu0 %v1502
  %1647 = vmatpush.bf16.msra.mxu0 %v1501
  %1648 = vmatmul.bf16.gmra.mxu0 %v1638
  %v1649 = vpop.f32.mrf.mxu0
  %v1650 = vadd.f32 0.0, %v1649
  %v1651 = vpop.f32.mrf.mxu0
  %1652 = vdwg.mxu0
  %v1653 = vpack.c.bf16 %v1650, %v1650
  %s1654 = scalar_lea.vmem %s8, 24
  %v1655 = vld [vmem:[%s1654] sm:$0xf]
  %v1656 = vld [vmem:[%s1654 + $0x4] sm:$0xf]
  %v1659 = vunpack.c.l.b16 %v1655
  %v1660 = vunpack.c.l.b16 %v1656
  %v1661 = vpack.c.b16 %v1660, %v1659
  %v1664 = vsel %vm133, %v1653, 0
  %1666 = vmatpush.bf16.msra.mxu0 0
  %1667 = vmatpush.bf16.msra.mxu0 0
  %1668 = vmatpush.bf16.msra.mxu0 0
  %1669 = vmatpush.bf16.msra.mxu0 0
  %1670 = vmatpush.bf16.msra.mxu0 0
  %1671 = vmatpush.bf16.msra.mxu0 0
  %1672 = vmatpush.bf16.msra.mxu0 0
  %1673 = vmatpush.bf16.msra.mxu0 %v1661
  %1674 = vmatmul.bf16.gmra.mxu0 %v1664
  %v1675 = vpop.f32.mrf.mxu0
  %v1676 = vadd.f32 0.0, %v1675
  %v1677 = vpop.f32.mrf.mxu0
  %1678 = vdwg.mxu0
  %v1679 = vadd.f32 %v1634, %v1676
  %s1680 = scalar_lea.vmem %s7, 16
  %v1681 = vld [vmem:[%s1680] sm:$0xf]
  %v1683 = vsel %vm1504, %v1681, 0
  %1685 = vmatpush.bf16.msra.mxu0 0
  %1686 = vmatpush.bf16.msra.mxu0 0
  %1687 = vmatpush.bf16.msra.mxu0 0
  %1688 = vmatpush.bf16.msra.mxu0 0
  %1689 = vmatpush.bf16.msra.mxu0 0
  %1690 = vmatpush.bf16.msra.mxu0 0
  %1691 = vmatpush.bf16.msra.mxu0 %v1502
  %1692 = vmatpush.bf16.msra.mxu0 %v1501
  %1693 = vmatmul.bf16.gmra.mxu0 %v1683
  %v1694 = vpop.f32.mrf.mxu0
  %v1695 = vadd.f32 0.0, %v1694
  %v1696 = vpop.f32.mrf.mxu0
  %1697 = vdwg.mxu0
  %v1698 = vpack.c.bf16 %v1695, %v1695
  %s1699 = scalar_lea.vmem %s8, 32
  %v1700 = vld [vmem:[%s1699] sm:$0xf]
  %v1701 = vld [vmem:[%s1699 + $0x4] sm:$0xf]
  %v1704 = vunpack.c.l.b16 %v1700
  %v1705 = vunpack.c.l.b16 %v1701
  %v1706 = vpack.c.b16 %v1705, %v1704
  %v1709 = vsel %vm133, %v1698, 0
  %1711 = vmatpush.bf16.msra.mxu0 0
  %1712 = vmatpush.bf16.msra.mxu0 0
  %1713 = vmatpush.bf16.msra.mxu0 0
  %1714 = vmatpush.bf16.msra.mxu0 0
  %1715 = vmatpush.bf16.msra.mxu0 0
  %1716 = vmatpush.bf16.msra.mxu0 0
  %1717 = vmatpush.bf16.msra.mxu0 0
  %1718 = vmatpush.bf16.msra.mxu0 %v1706
  %1719 = vmatmul.bf16.gmra.mxu0 %v1709
  %v1720 = vpop.f32.mrf.mxu0
  %v1721 = vadd.f32 0.0, %v1720
  %v1722 = vpop.f32.mrf.mxu0
  %1723 = vdwg.mxu0
  %v1724 = vadd.f32 %v1679, %v1721
  %s1725 = scalar_lea.vmem %s7, 20
  %v1726 = vld [vmem:[%s1725] sm:$0xf]
  %v1728 = vsel %vm1504, %v1726, 0
  %1730 = vmatpush.bf16.msra.mxu0 0
  %1731 = vmatpush.bf16.msra.mxu0 0
  %1732 = vmatpush.bf16.msra.mxu0 0
  %1733 = vmatpush.bf16.msra.mxu0 0
  %1734 = vmatpush.bf16.msra.mxu0 0
  %1735 = vmatpush.bf16.msra.mxu0 0
  %1736 = vmatpush.bf16.msra.mxu0 %v1502
  %1737 = vmatpush.bf16.msra.mxu0 %v1501
  %1738 = vmatmul.bf16.gmra.mxu0 %v1728
  %v1739 = vpop.f32.mrf.mxu0
  %v1740 = vadd.f32 0.0, %v1739
  %v1741 = vpop.f32.mrf.mxu0
  %1742 = vdwg.mxu0
  %v1743 = vpack.c.bf16 %v1740, %v1740
  %s1744 = scalar_lea.vmem %s8, 40
  %v1745 = vld [vmem:[%s1744] sm:$0xf]
  %v1746 = vld [vmem:[%s1744 + $0x4] sm:$0xf]
  %v1749 = vunpack.c.l.b16 %v1745
  %v1750 = vunpack.c.l.b16 %v1746
  %v1751 = vpack.c.b16 %v1750, %v1749
  %v1754 = vsel %vm133, %v1743, 0
  %1756 = vmatpush.bf16.msra.mxu0 0
  %1757 = vmatpush.bf16.msra.mxu0 0
  %1758 = vmatpush.bf16.msra.mxu0 0
  %1759 = vmatpush.bf16.msra.mxu0 0
  %1760 = vmatpush.bf16.msra.mxu0 0
  %1761 = vmatpush.bf16.msra.mxu0 0
  %1762 = vmatpush.bf16.msra.mxu0 0
  %1763 = vmatpush.bf16.msra.mxu0 %v1751
  %1764 = vmatmul.bf16.gmra.mxu0 %v1754
  %v1765 = vpop.f32.mrf.mxu0
  %v1766 = vadd.f32 0.0, %v1765
  %v1767 = vpop.f32.mrf.mxu0
  %1768 = vdwg.mxu0
  %v1769 = vadd.f32 %v1724, %v1766
  %s1770 = scalar_lea.vmem %s7, 24
  %v1771 = vld [vmem:[%s1770] sm:$0xf]
  %v1773 = vsel %vm1504, %v1771, 0
  %1775 = vmatpush.bf16.msra.mxu0 0
  %1776 = vmatpush.bf16.msra.mxu0 0
  %1777 = vmatpush.bf16.msra.mxu0 0
  %1778 = vmatpush.bf16.msra.mxu0 0
  %1779 = vmatpush.bf16.msra.mxu0 0
  %1780 = vmatpush.bf16.msra.mxu0 0
  %1781 = vmatpush.bf16.msra.mxu0 %v1502
  %1782 = vmatpush.bf16.msra.mxu0 %v1501
  %1783 = vmatmul.bf16.gmra.mxu0 %v1773
  %v1784 = vpop.f32.mrf.mxu0
  %v1785 = vadd.f32 0.0, %v1784
  %v1786 = vpop.f32.mrf.mxu0
  %1787 = vdwg.mxu0
  %v1788 = vpack.c.bf16 %v1785, %v1785
  %s1789 = scalar_lea.vmem %s8, 48
  %v1790 = vld [vmem:[%s1789] sm:$0xf]
  %v1791 = vld [vmem:[%s1789 + $0x4] sm:$0xf]
  %v1794 = vunpack.c.l.b16 %v1790
  %v1795 = vunpack.c.l.b16 %v1791
  %v1796 = vpack.c.b16 %v1795, %v1794
  %v1799 = vsel %vm133, %v1788, 0
  %1801 = vmatpush.bf16.msra.mxu0 0
  %1802 = vmatpush.bf16.msra.mxu0 0
  %1803 = vmatpush.bf16.msra.mxu0 0
  %1804 = vmatpush.bf16.msra.mxu0 0
  %1805 = vmatpush.bf16.msra.mxu0 0
  %1806 = vmatpush.bf16.msra.mxu0 0
  %1807 = vmatpush.bf16.msra.mxu0 0
  %1808 = vmatpush.bf16.msra.mxu0 %v1796
  %1809 = vmatmul.bf16.gmra.mxu0 %v1799
  %v1810 = vpop.f32.mrf.mxu0
  %v1811 = vadd.f32 0.0, %v1810
  %v1812 = vpop.f32.mrf.mxu0
  %1813 = vdwg.mxu0
  %v1814 = vadd.f32 %v1769, %v1811
  %s1815 = scalar_lea.vmem %s7, 28
  %v1816 = vld [vmem:[%s1815] sm:$0xf]
  %v1818 = vsel %vm1504, %v1816, 0
  %1820 = vmatpush.bf16.msra.mxu0 0
  %1821 = vmatpush.bf16.msra.mxu0 0
  %1822 = vmatpush.bf16.msra.mxu0 0
  %1823 = vmatpush.bf16.msra.mxu0 0
  %1824 = vmatpush.bf16.msra.mxu0 0
  %1825 = vmatpush.bf16.msra.mxu0 0
  %1826 = vmatpush.bf16.msra.mxu0 %v1502
  %1827 = vmatpush.bf16.msra.mxu0 %v1501
  %1828 = vmatmul.bf16.gmra.mxu0 %v1818
  %v1829 = vpop.f32.mrf.mxu0
  %v1830 = vadd.f32 0.0, %v1829
  %v1831 = vpop.f32.mrf.mxu0
  %1832 = vdwg.mxu0
  %v1833 = vpack.c.bf16 %v1830, %v1830
  %s1834 = scalar_lea.vmem %s8, 56
  %v1835 = vld [vmem:[%s1834] sm:$0xf]
  %v1836 = vld [vmem:[%s1834 + $0x4] sm:$0xf]
  %v1839 = vunpack.c.l.b16 %v1835
  %v1840 = vunpack.c.l.b16 %v1836
  %v1841 = vpack.c.b16 %v1840, %v1839
  %v1844 = vsel %vm133, %v1833, 0
  %1846 = vmatpush.bf16.msra.mxu0 0
  %1847 = vmatpush.bf16.msra.mxu0 0
  %1848 = vmatpush.bf16.msra.mxu0 0
  %1849 = vmatpush.bf16.msra.mxu0 0
  %1850 = vmatpush.bf16.msra.mxu0 0
  %1851 = vmatpush.bf16.msra.mxu0 0
  %1852 = vmatpush.bf16.msra.mxu0 0
  %1853 = vmatpush.bf16.msra.mxu0 %v1841
  %1854 = vmatmul.bf16.gmra.mxu0 %v1844
  %v1855 = vpop.f32.mrf.mxu0
  %v1856 = vadd.f32 0.0, %v1855
  %v1857 = vpop.f32.mrf.mxu0
  %1858 = vdwg.mxu0
  %v1859 = vadd.f32 %v1814, %v1856
  %s1860 = scalar_lea.vmem %s7, 32
  %v1861 = vld [vmem:[%s1860] sm:$0xf]
  %v1863 = vsel %vm1504, %v1861, 0
  %1865 = vmatpush.bf16.msra.mxu0 0
  %1866 = vmatpush.bf16.msra.mxu0 0
  %1867 = vmatpush.bf16.msra.mxu0 0
  %1868 = vmatpush.bf16.msra.mxu0 0
  %1869 = vmatpush.bf16.msra.mxu0 0
  %1870 = vmatpush.bf16.msra.mxu0 0
  %1871 = vmatpush.bf16.msra.mxu0 %v1502
  %1872 = vmatpush.bf16.msra.mxu0 %v1501
  %1873 = vmatmul.bf16.gmra.mxu0 %v1863
  %v1874 = vpop.f32.mrf.mxu0
  %v1875 = vadd.f32 0.0, %v1874
  %v1876 = vpop.f32.mrf.mxu0
  %1877 = vdwg.mxu0
  %v1878 = vpack.c.bf16 %v1875, %v1875
  %s1879 = scalar_lea.vmem %s8, 64
  %v1880 = vld [vmem:[%s1879] sm:$0xf]
  %v1881 = vld [vmem:[%s1879 + $0x4] sm:$0xf]
  %v1884 = vunpack.c.l.b16 %v1880
  %v1885 = vunpack.c.l.b16 %v1881
  %v1886 = vpack.c.b16 %v1885, %v1884
  %v1889 = vsel %vm133, %v1878, 0
  %1891 = vmatpush.bf16.msra.mxu0 0
  %1892 = vmatpush.bf16.msra.mxu0 0
  %1893 = vmatpush.bf16.msra.mxu0 0
  %1894 = vmatpush.bf16.msra.mxu0 0
  %1895 = vmatpush.bf16.msra.mxu0 0
  %1896 = vmatpush.bf16.msra.mxu0 0
  %1897 = vmatpush.bf16.msra.mxu0 0
  %1898 = vmatpush.bf16.msra.mxu0 %v1886
  %1899 = vmatmul.bf16.gmra.mxu0 %v1889
  %v1900 = vpop.f32.mrf.mxu0
  %v1901 = vadd.f32 0.0, %v1900
  %v1902 = vpop.f32.mrf.mxu0
  %1903 = vdwg.mxu0
  %v1904 = vadd.f32 %v1859, %v1901
  %s1905 = scalar_lea.vmem %s7, 36
  %v1906 = vld [vmem:[%s1905] sm:$0xf]
  %v1908 = vsel %vm1504, %v1906, 0
  %1910 = vmatpush.bf16.msra.mxu0 0
  %1911 = vmatpush.bf16.msra.mxu0 0
  %1912 = vmatpush.bf16.msra.mxu0 0
  %1913 = vmatpush.bf16.msra.mxu0 0
  %1914 = vmatpush.bf16.msra.mxu0 0
  %1915 = vmatpush.bf16.msra.mxu0 0
  %1916 = vmatpush.bf16.msra.mxu0 %v1502
  %1917 = vmatpush.bf16.msra.mxu0 %v1501
  %1918 = vmatmul.bf16.gmra.mxu0 %v1908
  %v1919 = vpop.f32.mrf.mxu0
  %v1920 = vadd.f32 0.0, %v1919
  %v1921 = vpop.f32.mrf.mxu0
  %1922 = vdwg.mxu0
  %v1923 = vpack.c.bf16 %v1920, %v1920
  %s1924 = scalar_lea.vmem %s8, 72
  %v1925 = vld [vmem:[%s1924] sm:$0xf]
  %v1926 = vld [vmem:[%s1924 + $0x4] sm:$0xf]
  %v1929 = vunpack.c.l.b16 %v1925
  %v1930 = vunpack.c.l.b16 %v1926
  %v1931 = vpack.c.b16 %v1930, %v1929
  %v1934 = vsel %vm133, %v1923, 0
  %1936 = vmatpush.bf16.msra.mxu0 0
  %1937 = vmatpush.bf16.msra.mxu0 0
  %1938 = vmatpush.bf16.msra.mxu0 0
  %1939 = vmatpush.bf16.msra.mxu0 0
  %1940 = vmatpush.bf16.msra.mxu0 0
  %1941 = vmatpush.bf16.msra.mxu0 0
  %1942 = vmatpush.bf16.msra.mxu0 0
  %1943 = vmatpush.bf16.msra.mxu0 %v1931
  %1944 = vmatmul.bf16.gmra.mxu0 %v1934
  %v1945 = vpop.f32.mrf.mxu0
  %v1946 = vadd.f32 0.0, %v1945
  %v1947 = vpop.f32.mrf.mxu0
  %1948 = vdwg.mxu0
  %v1949 = vadd.f32 %v1904, %v1946
  %s1950 = scalar_lea.vmem %s7, 40
  %v1951 = vld [vmem:[%s1950] sm:$0xf]
  %v1953 = vsel %vm1504, %v1951, 0
  %1955 = vmatpush.bf16.msra.mxu0 0
  %1956 = vmatpush.bf16.msra.mxu0 0
  %1957 = vmatpush.bf16.msra.mxu0 0
  %1958 = vmatpush.bf16.msra.mxu0 0
  %1959 = vmatpush.bf16.msra.mxu0 0
  %1960 = vmatpush.bf16.msra.mxu0 0
  %1961 = vmatpush.bf16.msra.mxu0 %v1502
  %1962 = vmatpush.bf16.msra.mxu0 %v1501
  %1963 = vmatmul.bf16.gmra.mxu0 %v1953
  %v1964 = vpop.f32.mrf.mxu0
  %v1965 = vadd.f32 0.0, %v1964
  %v1966 = vpop.f32.mrf.mxu0
  %1967 = vdwg.mxu0
  %v1968 = vpack.c.bf16 %v1965, %v1965
  %s1969 = scalar_lea.vmem %s8, 80
  %v1970 = vld [vmem:[%s1969] sm:$0xf]
  %v1971 = vld [vmem:[%s1969 + $0x4] sm:$0xf]
  %v1974 = vunpack.c.l.b16 %v1970
  %v1975 = vunpack.c.l.b16 %v1971
  %v1976 = vpack.c.b16 %v1975, %v1974
  %v1979 = vsel %vm133, %v1968, 0
  %1981 = vmatpush.bf16.msra.mxu0 0
  %1982 = vmatpush.bf16.msra.mxu0 0
  %1983 = vmatpush.bf16.msra.mxu0 0
  %1984 = vmatpush.bf16.msra.mxu0 0
  %1985 = vmatpush.bf16.msra.mxu0 0
  %1986 = vmatpush.bf16.msra.mxu0 0
  %1987 = vmatpush.bf16.msra.mxu0 0
  %1988 = vmatpush.bf16.msra.mxu0 %v1976
  %1989 = vmatmul.bf16.gmra.mxu0 %v1979
  %v1990 = vpop.f32.mrf.mxu0
  %v1991 = vadd.f32 0.0, %v1990
  %v1992 = vpop.f32.mrf.mxu0
  %1993 = vdwg.mxu0
  %v1994 = vadd.f32 %v1949, %v1991
  %s1995 = scalar_lea.vmem %s7, 44
  %v1996 = vld [vmem:[%s1995] sm:$0xf]
  %v1998 = vsel %vm1504, %v1996, 0
  %2000 = vmatpush.bf16.msra.mxu0 0
  %2001 = vmatpush.bf16.msra.mxu0 0
  %2002 = vmatpush.bf16.msra.mxu0 0
  %2003 = vmatpush.bf16.msra.mxu0 0
  %2004 = vmatpush.bf16.msra.mxu0 0
  %2005 = vmatpush.bf16.msra.mxu0 0
  %2006 = vmatpush.bf16.msra.mxu0 %v1502
  %2007 = vmatpush.bf16.msra.mxu0 %v1501
  %2008 = vmatmul.bf16.gmra.mxu0 %v1998
  %v2009 = vpop.f32.mrf.mxu0
  %v2010 = vadd.f32 0.0, %v2009
  %v2011 = vpop.f32.mrf.mxu0
  %2012 = vdwg.mxu0
  %v2013 = vpack.c.bf16 %v2010, %v2010
  %s2014 = scalar_lea.vmem %s8, 88
  %v2015 = vld [vmem:[%s2014] sm:$0xf]
  %v2016 = vld [vmem:[%s2014 + $0x4] sm:$0xf]
  %v2019 = vunpack.c.l.b16 %v2015
  %v2020 = vunpack.c.l.b16 %v2016
  %v2021 = vpack.c.b16 %v2020, %v2019
  %v2024 = vsel %vm133, %v2013, 0
  %2026 = vmatpush.bf16.msra.mxu0 0
  %2027 = vmatpush.bf16.msra.mxu0 0
  %2028 = vmatpush.bf16.msra.mxu0 0
  %2029 = vmatpush.bf16.msra.mxu0 0
  %2030 = vmatpush.bf16.msra.mxu0 0
  %2031 = vmatpush.bf16.msra.mxu0 0
  %2032 = vmatpush.bf16.msra.mxu0 0
  %2033 = vmatpush.bf16.msra.mxu0 %v2021
  %2034 = vmatmul.bf16.gmra.mxu0 %v2024
  %v2035 = vpop.f32.mrf.mxu0
  %v2036 = vadd.f32 0.0, %v2035
  %v2037 = vpop.f32.mrf.mxu0
  %2038 = vdwg.mxu0
  %v2039 = vadd.f32 %v1994, %v2036
  %s2040 = scalar_lea.vmem %s7, 48
  %v2041 = vld [vmem:[%s2040] sm:$0xf]
  %v2043 = vsel %vm1504, %v2041, 0
  %2045 = vmatpush.bf16.msra.mxu0 0
  %2046 = vmatpush.bf16.msra.mxu0 0
  %2047 = vmatpush.bf16.msra.mxu0 0
  %2048 = vmatpush.bf16.msra.mxu0 0
  %2049 = vmatpush.bf16.msra.mxu0 0
  %2050 = vmatpush.bf16.msra.mxu0 0
  %2051 = vmatpush.bf16.msra.mxu0 %v1502
  %2052 = vmatpush.bf16.msra.mxu0 %v1501
  %2053 = vmatmul.bf16.gmra.mxu0 %v2043
  %v2054 = vpop.f32.mrf.mxu0
  %v2055 = vadd.f32 0.0, %v2054
  %v2056 = vpop.f32.mrf.mxu0
  %2057 = vdwg.mxu0
  %v2058 = vpack.c.bf16 %v2055, %v2055
  %s2059 = scalar_lea.vmem %s8, 96
  %v2060 = vld [vmem:[%s2059] sm:$0xf]
  %v2061 = vld [vmem:[%s2059 + $0x4] sm:$0xf]
  %v2064 = vunpack.c.l.b16 %v2060
  %v2065 = vunpack.c.l.b16 %v2061
  %v2066 = vpack.c.b16 %v2065, %v2064
  %v2069 = vsel %vm133, %v2058, 0
  %2071 = vmatpush.bf16.msra.mxu0 0
  %2072 = vmatpush.bf16.msra.mxu0 0
  %2073 = vmatpush.bf16.msra.mxu0 0
  %2074 = vmatpush.bf16.msra.mxu0 0
  %2075 = vmatpush.bf16.msra.mxu0 0
  %2076 = vmatpush.bf16.msra.mxu0 0
  %2077 = vmatpush.bf16.msra.mxu0 0
  %2078 = vmatpush.bf16.msra.mxu0 %v2066
  %2079 = vmatmul.bf16.gmra.mxu0 %v2069
  %v2080 = vpop.f32.mrf.mxu0
  %v2081 = vadd.f32 0.0, %v2080
  %v2082 = vpop.f32.mrf.mxu0
  %2083 = vdwg.mxu0
  %v2084 = vadd.f32 %v2039, %v2081
  %s2085 = scalar_lea.vmem %s7, 52
  %v2086 = vld [vmem:[%s2085] sm:$0xf]
  %v2088 = vsel %vm1504, %v2086, 0
  %2090 = vmatpush.bf16.msra.mxu0 0
  %2091 = vmatpush.bf16.msra.mxu0 0
  %2092 = vmatpush.bf16.msra.mxu0 0
  %2093 = vmatpush.bf16.msra.mxu0 0
  %2094 = vmatpush.bf16.msra.mxu0 0
  %2095 = vmatpush.bf16.msra.mxu0 0
  %2096 = vmatpush.bf16.msra.mxu0 %v1502
  %2097 = vmatpush.bf16.msra.mxu0 %v1501
  %2098 = vmatmul.bf16.gmra.mxu0 %v2088
  %v2099 = vpop.f32.mrf.mxu0
  %v2100 = vadd.f32 0.0, %v2099
  %v2101 = vpop.f32.mrf.mxu0
  %2102 = vdwg.mxu0
  %v2103 = vpack.c.bf16 %v2100, %v2100
  %s2104 = scalar_lea.vmem %s8, 104
  %v2105 = vld [vmem:[%s2104] sm:$0xf]
  %v2106 = vld [vmem:[%s2104 + $0x4] sm:$0xf]
  %v2109 = vunpack.c.l.b16 %v2105
  %v2110 = vunpack.c.l.b16 %v2106
  %v2111 = vpack.c.b16 %v2110, %v2109
  %v2114 = vsel %vm133, %v2103, 0
  %2116 = vmatpush.bf16.msra.mxu0 0
  %2117 = vmatpush.bf16.msra.mxu0 0
  %2118 = vmatpush.bf16.msra.mxu0 0
  %2119 = vmatpush.bf16.msra.mxu0 0
  %2120 = vmatpush.bf16.msra.mxu0 0
  %2121 = vmatpush.bf16.msra.mxu0 0
  %2122 = vmatpush.bf16.msra.mxu0 0
  %2123 = vmatpush.bf16.msra.mxu0 %v2111
  %2124 = vmatmul.bf16.gmra.mxu0 %v2114
  %v2125 = vpop.f32.mrf.mxu0
  %v2126 = vadd.f32 0.0, %v2125
  %v2127 = vpop.f32.mrf.mxu0
  %2128 = vdwg.mxu0
  %v2129 = vadd.f32 %v2084, %v2126
  %s2130 = scalar_lea.vmem %s7, 56
  %v2131 = vld [vmem:[%s2130] sm:$0xf]
  %v2133 = vsel %vm1504, %v2131, 0
  %2135 = vmatpush.bf16.msra.mxu0 0
  %2136 = vmatpush.bf16.msra.mxu0 0
  %2137 = vmatpush.bf16.msra.mxu0 0
  %2138 = vmatpush.bf16.msra.mxu0 0
  %2139 = vmatpush.bf16.msra.mxu0 0
  %2140 = vmatpush.bf16.msra.mxu0 0
  %2141 = vmatpush.bf16.msra.mxu0 %v1502
  %2142 = vmatpush.bf16.msra.mxu0 %v1501
  %2143 = vmatmul.bf16.gmra.mxu0 %v2133
  %v2144 = vpop.f32.mrf.mxu0
  %v2145 = vadd.f32 0.0, %v2144
  %v2146 = vpop.f32.mrf.mxu0
  %2147 = vdwg.mxu0
  %v2148 = vpack.c.bf16 %v2145, %v2145
  %s2149 = scalar_lea.vmem %s8, 112
  %v2150 = vld [vmem:[%s2149] sm:$0xf]
  %v2151 = vld [vmem:[%s2149 + $0x4] sm:$0xf]
  %v2154 = vunpack.c.l.b16 %v2150
  %v2155 = vunpack.c.l.b16 %v2151
  %v2156 = vpack.c.b16 %v2155, %v2154
  %v2159 = vsel %vm133, %v2148, 0
  %2161 = vmatpush.bf16.msra.mxu0 0
  %2162 = vmatpush.bf16.msra.mxu0 0
  %2163 = vmatpush.bf16.msra.mxu0 0
  %2164 = vmatpush.bf16.msra.mxu0 0
  %2165 = vmatpush.bf16.msra.mxu0 0
  %2166 = vmatpush.bf16.msra.mxu0 0
  %2167 = vmatpush.bf16.msra.mxu0 0
  %2168 = vmatpush.bf16.msra.mxu0 %v2156
  %2169 = vmatmul.bf16.gmra.mxu0 %v2159
  %v2170 = vpop.f32.mrf.mxu0
  %v2171 = vadd.f32 0.0, %v2170
  %v2172 = vpop.f32.mrf.mxu0
  %2173 = vdwg.mxu0
  %v2174 = vadd.f32 %v2129, %v2171
  %s2175 = scalar_lea.vmem %s7, 60
  %v2176 = vld [vmem:[%s2175] sm:$0xf]
  %v2178 = vsel %vm1504, %v2176, 0
  %2180 = vmatpush.bf16.msra.mxu0 0
  %2181 = vmatpush.bf16.msra.mxu0 0
  %2182 = vmatpush.bf16.msra.mxu0 0
  %2183 = vmatpush.bf16.msra.mxu0 0
  %2184 = vmatpush.bf16.msra.mxu0 0
  %2185 = vmatpush.bf16.msra.mxu0 0
  %2186 = vmatpush.bf16.msra.mxu0 %v1502
  %2187 = vmatpush.bf16.msra.mxu0 %v1501
  %2188 = vmatmul.bf16.gmra.mxu0 %v2178
  %v2189 = vpop.f32.mrf.mxu0
  %v2190 = vadd.f32 0.0, %v2189
  %v2191 = vpop.f32.mrf.mxu0
  %2192 = vdwg.mxu0
  %v2193 = vpack.c.bf16 %v2190, %v2190
  %s2194 = scalar_lea.vmem %s8, 120
  %v2195 = vld [vmem:[%s2194] sm:$0xf]
  %v2196 = vld [vmem:[%s2194 + $0x4] sm:$0xf]
  %v2199 = vunpack.c.l.b16 %v2195
  %v2200 = vunpack.c.l.b16 %v2196
  %v2201 = vpack.c.b16 %v2200, %v2199
  %v2204 = vsel %vm133, %v2193, 0
  %2206 = vmatpush.bf16.msra.mxu0 0
  %2207 = vmatpush.bf16.msra.mxu0 0
  %2208 = vmatpush.bf16.msra.mxu0 0
  %2209 = vmatpush.bf16.msra.mxu0 0
  %2210 = vmatpush.bf16.msra.mxu0 0
  %2211 = vmatpush.bf16.msra.mxu0 0
  %2212 = vmatpush.bf16.msra.mxu0 0
  %2213 = vmatpush.bf16.msra.mxu0 %v2201
  %2214 = vmatmul.bf16.gmra.mxu0 %v2204
  %v2215 = vpop.f32.mrf.mxu0
  %v2216 = vadd.f32 0.0, %v2215
  %v2217 = vpop.f32.mrf.mxu0
  %2218 = vdwg.mxu0
  %v2219 = vadd.f32 %v2174, %v2216
  %v2220 = vld [vmem:[%s9] sm:$0x1]
  %v2222 = vperm.slane %v2220, 0
  %v2224 = vadd.f32 %v2219, %v2222
  %v2225 = vsel %vm1504, %v2224, 0.0
  %v2226 = vrot.slane %v2225, 4
  %v2227 = vadd.f32 %v2225, %v2226
  %v2228 = vrot.slane %v2227, 2
  %v2229 = vadd.f32 %v2227, %v2228
  %v2230 = vrot.slane %v2229, 1
  %v2231 = vadd.f32 %v2229, %v2230
  %v2232 = vrcp.pop 8.0
  %v2233 = vmul.f32 8.0, %v2232
  %v2234 = vsub.f32 1.0, %v2233
  %v2235 = vmul.f32 %v2232, %v2234
  %v2236 = vadd.f32 %v2232, %v2235
  %vm2237 = vweird.f32 %v2232
  %v2238 = vsel %vm2237, %v2232, %v2236
  %v2239 = vmul.f32 %v2231, %v2238
  %v2240 = vsub.f32 %v2224, %v2239
  %v2241 = vmul.f32 %v2240, %v2240
  %v2242 = vsel %vm1504, %v2241, 0.0
  %v2243 = vrot.slane %v2242, 4
  %v2244 = vadd.f32 %v2242, %v2243
  %v2245 = vrot.slane %v2244, 2
  %v2246 = vadd.f32 %v2244, %v2245
  %v2247 = vrot.slane %v2246, 1
  %v2248 = vadd.f32 %v2246, %v2247
  %v2249 = vmul.f32 %v2248, %v2238
  %v2250 = vadd.f32 %v2249, 0.8
  %v2251 = vrsqrt.pop %v2250
  %v2252 = vmul.f32 %v2251, %v2250
  %v2253 = vmul.f32 %v2252, %v2251
  %v2254 = vmul.f32 0.5, %v2253
  %v2255 = vsub.f32 1.5, %v2254
  %v2256 = vmul.f32 %v2251, %v2255
  %vm2257 = vweird.f32 %v2250
  %vm2258 = vweird.f32 %v2251
  %vm2259 = vmor %vm2257, %vm2258
  %v2260 = vsel %vm2259, %v2251, %v2256
  %v2261 = vmul.f32 %v2240, %v2260
  %v2262 = vld [vmem:[%s10] sm:$0x1]
  %v2264 = vperm.slane %v2262, 0
  %v2266 = vmul.f32 %v2261, %v2264
  %v2267 = vld [vmem:[%s11] sm:$0x1]
  %v2269 = vperm.slane %v2267, 0
  %v2271 = vadd.f32 %v2266, %v2269
  %vm2272 = vcmp.ge.f32.partialorder %v2271, 0.0
  %v2273 = vmul.f32 %v2271, 0.1
  %v2274 = vsel %vm2272, %v2271, %v2273
  %v2275 = vpack.c.bf16 %v2274, %v2274
  %v2276 = vld [vmem:[%s12] sm:$0x1]
  %v2278 = vsel %vm341, %v2276, 0
  %v2281 = vsel %vm348, %v2275, 0
  %2283 = vmatpush.bf16.msra.mxu0 0
  %2284 = vmatpush.bf16.msra.mxu0 0
  %2285 = vmatpush.bf16.msra.mxu0 0
  %2286 = vmatpush.bf16.msra.mxu0 0
  %2287 = vmatpush.bf16.msra.mxu0 0
  %2288 = vmatpush.bf16.msra.mxu0 0
  %2289 = vmatpush.bf16.msra.mxu0 0
  %2290 = vmatpush.bf16.msra.mxu0 %v2281
  %2291 = vmatmul.bf16.gmra.mxu0 %v2278
  %v2292 = vpop.f32.mrf.mxu0
  %v2293 = vadd.f32 0.0, %v2292
  %v2294 = vpop.f32.mrf.mxu0
  %2295 = vdwg.mxu0
  %v2296 = vpack.c.bf16 %v2293, %v2293
  %v2297 = vld [vmem:[%s13] sm:$0xf]
  %v2298 = vld [vmem:[%s13 + $0x4] sm:$0xf]
  %v2299 = vld [vmem:[%s13 + $0x8] sm:$0xf]
  %v2300 = vld [vmem:[%s13 + $0xc] sm:$0xf]
  %s2301 = scalar_lea.vmem %s12, 1
  %v2302 = vld [vmem:[%s2301] sm:$0x1]
  %v2304 = vsel %vm341, %v2302, 0
  %2306 = vmatpush.bf16.msra.mxu0 0
  %2307 = vmatpush.bf16.msra.mxu0 0
  %2308 = vmatpush.bf16.msra.mxu0 0
  %2309 = vmatpush.bf16.msra.mxu0 0
  %2310 = vmatpush.bf16.msra.mxu0 0
  %2311 = vmatpush.bf16.msra.mxu0 0
  %2312 = vmatpush.bf16.msra.mxu0 0
  %2313 = vmatpush.bf16.msra.mxu0 %v2281
  %2314 = vmatmul.bf16.gmra.mxu0 %v2304
  %v2315 = vpop.f32.mrf.mxu0
  %v2316 = vadd.f32 0.0, %v2315
  %v2317 = vpop.f32.mrf.mxu0
  %2318 = vdwg.mxu0
  %v2319 = vpack.c.bf16 %v2316, %v2316
  %s2320 = scalar_lea.vmem %s13, 16
  %v2321 = vld [vmem:[%s2320] sm:$0xf]
  %v2322 = vld [vmem:[%s2320 + $0x4] sm:$0xf]
  %v2323 = vld [vmem:[%s2320 + $0x8] sm:$0xf]
  %v2324 = vld [vmem:[%s2320 + $0xc] sm:$0xf]
  %v2329 = vunpack.c.l.b16 %v2321
  %v2330 = vunpack.c.l.b16 %v2322
  %v2331 = vunpack.c.l.b16 %v2323
  %v2332 = vunpack.c.l.b16 %v2324
  %v2333 = vpack.c.b16 %v2330, %v2329
  %v2334 = vpack.c.b16 %v2332, %v2331
  %v2338 = vsel %vm1504, %v2319, 0
  %2340 = vmatpush.bf16.msra.mxu0 0
  %2341 = vmatpush.bf16.msra.mxu0 0
  %2342 = vmatpush.bf16.msra.mxu0 0
  %2343 = vmatpush.bf16.msra.mxu0 0
  %2344 = vmatpush.bf16.msra.mxu0 0
  %2345 = vmatpush.bf16.msra.mxu0 0
  %2346 = vmatpush.bf16.msra.mxu0 %v2334
  %2347 = vmatpush.bf16.msra.mxu0 %v2333
  %2348 = vmatmul.bf16.gmra.mxu0 %v2338
  %v2349 = vpop.f32.mrf.mxu0
  %v2350 = vadd.f32 0.0, %v2349
  %v2351 = vpop.f32.mrf.mxu0
  %2352 = vdwg.mxu0
  %v2357 = vunpack.c.l.b16 %v2297
  %v2358 = vunpack.c.l.b16 %v2298
  %v2359 = vunpack.c.l.b16 %v2299
  %v2360 = vunpack.c.l.b16 %v2300
  %v2361 = vpack.c.b16 %v2358, %v2357
  %v2362 = vpack.c.b16 %v2360, %v2359
  %v2366 = vsel %vm1504, %v2296, 0
  %2368 = vmatpush.bf16.msra.mxu0 0
  %2369 = vmatpush.bf16.msra.mxu0 0
  %2370 = vmatpush.bf16.msra.mxu0 0
  %2371 = vmatpush.bf16.msra.mxu0 0
  %2372 = vmatpush.bf16.msra.mxu0 0
  %2373 = vmatpush.bf16.msra.mxu0 0
  %2374 = vmatpush.bf16.msra.mxu0 %v2362
  %2375 = vmatpush.bf16.msra.mxu0 %v2361
  %2376 = vmatmul.bf16.gmra.mxu0 %v2366
  %v2377 = vpop.f32.mrf.mxu0
  %v2378 = vadd.f32 %v2350, %v2377
  %v2379 = vpop.f32.mrf.mxu0
  %2380 = vdwg.mxu0
  %s2381 = scalar_lea.vmem %s12, 2
  %v2382 = vld [vmem:[%s2381] sm:$0x1]
  %v2384 = vsel %vm341, %v2382, 0
  %2386 = vmatpush.bf16.msra.mxu0 0
  %2387 = vmatpush.bf16.msra.mxu0 0
  %2388 = vmatpush.bf16.msra.mxu0 0
  %2389 = vmatpush.bf16.msra.mxu0 0
  %2390 = vmatpush.bf16.msra.mxu0 0
  %2391 = vmatpush.bf16.msra.mxu0 0
  %2392 = vmatpush.bf16.msra.mxu0 0
  %2393 = vmatpush.bf16.msra.mxu0 %v2281
  %2394 = vmatmul.bf16.gmra.mxu0 %v2384
  %v2395 = vpop.f32.mrf.mxu0
  %v2396 = vadd.f32 0.0, %v2395
  %v2397 = vpop.f32.mrf.mxu0
  %2398 = vdwg.mxu0
  %v2399 = vpack.c.bf16 %v2396, %v2396
  %s2400 = scalar_lea.vmem %s13, 32
  %v2401 = vld [vmem:[%s2400] sm:$0xf]
  %v2402 = vld [vmem:[%s2400 + $0x4] sm:$0xf]
  %v2403 = vld [vmem:[%s2400 + $0x8] sm:$0xf]
  %v2404 = vld [vmem:[%s2400 + $0xc] sm:$0xf]
  %v2409 = vunpack.c.l.b16 %v2401
  %v2410 = vunpack.c.l.b16 %v2402
  %v2411 = vunpack.c.l.b16 %v2403
  %v2412 = vunpack.c.l.b16 %v2404
  %v2413 = vpack.c.b16 %v2410, %v2409
  %v2414 = vpack.c.b16 %v2412, %v2411
  %v2418 = vsel %vm1504, %v2399, 0
  %2420 = vmatpush.bf16.msra.mxu0 0
  %2421 = vmatpush.bf16.msra.mxu0 0
  %2422 = vmatpush.bf16.msra.mxu0 0
  %2423 = vmatpush.bf16.msra.mxu0 0
  %2424 = vmatpush.bf16.msra.mxu0 0
  %2425 = vmatpush.bf16.msra.mxu0 0
  %2426 = vmatpush.bf16.msra.mxu0 %v2414
  %2427 = vmatpush.bf16.msra.mxu0 %v2413
  %2428 = vmatmul.bf16.gmra.mxu0 %v2418
  %v2429 = vpop.f32.mrf.mxu0
  %v2430 = vadd.f32 0.0, %v2429
  %v2431 = vpop.f32.mrf.mxu0
  %2432 = vdwg.mxu0
  %v2433 = vadd.f32 %v2378, %v2430
  %s2434 = scalar_lea.vmem %s12, 3
  %v2435 = vld [vmem:[%s2434] sm:$0x1]
  %v2437 = vsel %vm341, %v2435, 0
  %2439 = vmatpush.bf16.msra.mxu0 0
  %2440 = vmatpush.bf16.msra.mxu0 0
  %2441 = vmatpush.bf16.msra.mxu0 0
  %2442 = vmatpush.bf16.msra.mxu0 0
  %2443 = vmatpush.bf16.msra.mxu0 0
  %2444 = vmatpush.bf16.msra.mxu0 0
  %2445 = vmatpush.bf16.msra.mxu0 0
  %2446 = vmatpush.bf16.msra.mxu0 %v2281
  %2447 = vmatmul.bf16.gmra.mxu0 %v2437
  %v2448 = vpop.f32.mrf.mxu0
  %v2449 = vadd.f32 0.0, %v2448
  %v2450 = vpop.f32.mrf.mxu0
  %2451 = vdwg.mxu0
  %v2452 = vpack.c.bf16 %v2449, %v2449
  %s2453 = scalar_lea.vmem %s13, 48
  %v2454 = vld [vmem:[%s2453] sm:$0xf]
  %v2455 = vld [vmem:[%s2453 + $0x4] sm:$0xf]
  %v2456 = vld [vmem:[%s2453 + $0x8] sm:$0xf]
  %v2457 = vld [vmem:[%s2453 + $0xc] sm:$0xf]
  %v2462 = vunpack.c.l.b16 %v2454
  %v2463 = vunpack.c.l.b16 %v2455
  %v2464 = vunpack.c.l.b16 %v2456
  %v2465 = vunpack.c.l.b16 %v2457
  %v2466 = vpack.c.b16 %v2463, %v2462
  %v2467 = vpack.c.b16 %v2465, %v2464
  %v2471 = vsel %vm1504, %v2452, 0
  %2473 = vmatpush.bf16.msra.mxu0 0
  %2474 = vmatpush.bf16.msra.mxu0 0
  %2475 = vmatpush.bf16.msra.mxu0 0
  %2476 = vmatpush.bf16.msra.mxu0 0
  %2477 = vmatpush.bf16.msra.mxu0 0
  %2478 = vmatpush.bf16.msra.mxu0 0
  %2479 = vmatpush.bf16.msra.mxu0 %v2467
  %2480 = vmatpush.bf16.msra.mxu0 %v2466
  %2481 = vmatmul.bf16.gmra.mxu0 %v2471
  %v2482 = vpop.f32.mrf.mxu0
  %v2483 = vadd.f32 0.0, %v2482
  %v2484 = vpop.f32.mrf.mxu0
  %2485 = vdwg.mxu0
  %v2486 = vadd.f32 %v2433, %v2483
  %s2487 = scalar_lea.vmem %s12, 4
  %v2488 = vld [vmem:[%s2487] sm:$0x1]
  %v2490 = vsel %vm341, %v2488, 0
  %2492 = vmatpush.bf16.msra.mxu0 0
  %2493 = vmatpush.bf16.msra.mxu0 0
  %2494 = vmatpush.bf16.msra.mxu0 0
  %2495 = vmatpush.bf16.msra.mxu0 0
  %2496 = vmatpush.bf16.msra.mxu0 0
  %2497 = vmatpush.bf16.msra.mxu0 0
  %2498 = vmatpush.bf16.msra.mxu0 0
  %2499 = vmatpush.bf16.msra.mxu0 %v2281
  %2500 = vmatmul.bf16.gmra.mxu0 %v2490
  %v2501 = vpop.f32.mrf.mxu0
  %v2502 = vadd.f32 0.0, %v2501
  %v2503 = vpop.f32.mrf.mxu0
  %2504 = vdwg.mxu0
  %v2505 = vpack.c.bf16 %v2502, %v2502
  %s2506 = scalar_lea.vmem %s13, 64
  %v2507 = vld [vmem:[%s2506] sm:$0xf]
  %v2508 = vld [vmem:[%s2506 + $0x4] sm:$0xf]
  %v2509 = vld [vmem:[%s2506 + $0x8] sm:$0xf]
  %v2510 = vld [vmem:[%s2506 + $0xc] sm:$0xf]
  %v2515 = vunpack.c.l.b16 %v2507
  %v2516 = vunpack.c.l.b16 %v2508
  %v2517 = vunpack.c.l.b16 %v2509
  %v2518 = vunpack.c.l.b16 %v2510
  %v2519 = vpack.c.b16 %v2516, %v2515
  %v2520 = vpack.c.b16 %v2518, %v2517
  %v2524 = vsel %vm1504, %v2505, 0
  %2526 = vmatpush.bf16.msra.mxu0 0
  %2527 = vmatpush.bf16.msra.mxu0 0
  %2528 = vmatpush.bf16.msra.mxu0 0
  %2529 = vmatpush.bf16.msra.mxu0 0
  %2530 = vmatpush.bf16.msra.mxu0 0
  %2531 = vmatpush.bf16.msra.mxu0 0
  %2532 = vmatpush.bf16.msra.mxu0 %v2520
  %2533 = vmatpush.bf16.msra.mxu0 %v2519
  %2534 = vmatmul.bf16.gmra.mxu0 %v2524
  %v2535 = vpop.f32.mrf.mxu0
  %v2536 = vadd.f32 0.0, %v2535
  %v2537 = vpop.f32.mrf.mxu0
  %2538 = vdwg.mxu0
  %v2539 = vadd.f32 %v2486, %v2536
  %s2540 = scalar_lea.vmem %s12, 5
  %v2541 = vld [vmem:[%s2540] sm:$0x1]
  %v2543 = vsel %vm341, %v2541, 0
  %2545 = vmatpush.bf16.msra.mxu0 0
  %2546 = vmatpush.bf16.msra.mxu0 0
  %2547 = vmatpush.bf16.msra.mxu0 0
  %2548 = vmatpush.bf16.msra.mxu0 0
  %2549 = vmatpush.bf16.msra.mxu0 0
  %2550 = vmatpush.bf16.msra.mxu0 0
  %2551 = vmatpush.bf16.msra.mxu0 0
  %2552 = vmatpush.bf16.msra.mxu0 %v2281
  %2553 = vmatmul.bf16.gmra.mxu0 %v2543
  %v2554 = vpop.f32.mrf.mxu0
  %v2555 = vadd.f32 0.0, %v2554
  %v2556 = vpop.f32.mrf.mxu0
  %2557 = vdwg.mxu0
  %v2558 = vpack.c.bf16 %v2555, %v2555
  %s2559 = scalar_lea.vmem %s13, 80
  %v2560 = vld [vmem:[%s2559] sm:$0xf]
  %v2561 = vld [vmem:[%s2559 + $0x4] sm:$0xf]
  %v2562 = vld [vmem:[%s2559 + $0x8] sm:$0xf]
  %v2563 = vld [vmem:[%s2559 + $0xc] sm:$0xf]
  %v2568 = vunpack.c.l.b16 %v2560
  %v2569 = vunpack.c.l.b16 %v2561
  %v2570 = vunpack.c.l.b16 %v2562
  %v2571 = vunpack.c.l.b16 %v2563
  %v2572 = vpack.c.b16 %v2569, %v2568
  %v2573 = vpack.c.b16 %v2571, %v2570
  %v2577 = vsel %vm1504, %v2558, 0
  %2579 = vmatpush.bf16.msra.mxu0 0
  %2580 = vmatpush.bf16.msra.mxu0 0
  %2581 = vmatpush.bf16.msra.mxu0 0
  %2582 = vmatpush.bf16.msra.mxu0 0
  %2583 = vmatpush.bf16.msra.mxu0 0
  %2584 = vmatpush.bf16.msra.mxu0 0
  %2585 = vmatpush.bf16.msra.mxu0 %v2573
  %2586 = vmatpush.bf16.msra.mxu0 %v2572
  %2587 = vmatmul.bf16.gmra.mxu0 %v2577
  %v2588 = vpop.f32.mrf.mxu0
  %v2589 = vadd.f32 0.0, %v2588
  %v2590 = vpop.f32.mrf.mxu0
  %2591 = vdwg.mxu0
  %v2592 = vadd.f32 %v2539, %v2589
  %s2593 = scalar_lea.vmem %s12, 6
  %v2594 = vld [vmem:[%s2593] sm:$0x1]
  %v2596 = vsel %vm341, %v2594, 0
  %2598 = vmatpush.bf16.msra.mxu0 0
  %2599 = vmatpush.bf16.msra.mxu0 0
  %2600 = vmatpush.bf16.msra.mxu0 0
  %2601 = vmatpush.bf16.msra.mxu0 0
  %2602 = vmatpush.bf16.msra.mxu0 0
  %2603 = vmatpush.bf16.msra.mxu0 0
  %2604 = vmatpush.bf16.msra.mxu0 0
  %2605 = vmatpush.bf16.msra.mxu0 %v2281
  %2606 = vmatmul.bf16.gmra.mxu0 %v2596
  %v2607 = vpop.f32.mrf.mxu0
  %v2608 = vadd.f32 0.0, %v2607
  %v2609 = vpop.f32.mrf.mxu0
  %2610 = vdwg.mxu0
  %v2611 = vpack.c.bf16 %v2608, %v2608
  %s2612 = scalar_lea.vmem %s13, 96
  %v2613 = vld [vmem:[%s2612] sm:$0xf]
  %v2614 = vld [vmem:[%s2612 + $0x4] sm:$0xf]
  %v2615 = vld [vmem:[%s2612 + $0x8] sm:$0xf]
  %v2616 = vld [vmem:[%s2612 + $0xc] sm:$0xf]
  %v2621 = vunpack.c.l.b16 %v2613
  %v2622 = vunpack.c.l.b16 %v2614
  %v2623 = vunpack.c.l.b16 %v2615
  %v2624 = vunpack.c.l.b16 %v2616
  %v2625 = vpack.c.b16 %v2622, %v2621
  %v2626 = vpack.c.b16 %v2624, %v2623
  %v2630 = vsel %vm1504, %v2611, 0
  %2632 = vmatpush.bf16.msra.mxu0 0
  %2633 = vmatpush.bf16.msra.mxu0 0
  %2634 = vmatpush.bf16.msra.mxu0 0
  %2635 = vmatpush.bf16.msra.mxu0 0
  %2636 = vmatpush.bf16.msra.mxu0 0
  %2637 = vmatpush.bf16.msra.mxu0 0
  %2638 = vmatpush.bf16.msra.mxu0 %v2626
  %2639 = vmatpush.bf16.msra.mxu0 %v2625
  %2640 = vmatmul.bf16.gmra.mxu0 %v2630
  %v2641 = vpop.f32.mrf.mxu0
  %v2642 = vadd.f32 0.0, %v2641
  %v2643 = vpop.f32.mrf.mxu0
  %2644 = vdwg.mxu0
  %v2645 = vadd.f32 %v2592, %v2642
  %s2646 = scalar_lea.vmem %s12, 7
  %v2647 = vld [vmem:[%s2646] sm:$0x1]
  %v2649 = vsel %vm341, %v2647, 0
  %2651 = vmatpush.bf16.msra.mxu0 0
  %2652 = vmatpush.bf16.msra.mxu0 0
  %2653 = vmatpush.bf16.msra.mxu0 0
  %2654 = vmatpush.bf16.msra.mxu0 0
  %2655 = vmatpush.bf16.msra.mxu0 0
  %2656 = vmatpush.bf16.msra.mxu0 0
  %2657 = vmatpush.bf16.msra.mxu0 0
  %2658 = vmatpush.bf16.msra.mxu0 %v2281
  %2659 = vmatmul.bf16.gmra.mxu0 %v2649
  %v2660 = vpop.f32.mrf.mxu0
  %v2661 = vadd.f32 0.0, %v2660
  %v2662 = vpop.f32.mrf.mxu0
  %2663 = vdwg.mxu0
  %v2664 = vpack.c.bf16 %v2661, %v2661
  %s2665 = scalar_lea.vmem %s13, 112
  %v2666 = vld [vmem:[%s2665] sm:$0xf]
  %v2667 = vld [vmem:[%s2665 + $0x4] sm:$0xf]
  %v2668 = vld [vmem:[%s2665 + $0x8] sm:$0xf]
  %v2669 = vld [vmem:[%s2665 + $0xc] sm:$0xf]
  %v2674 = vunpack.c.l.b16 %v2666
  %v2675 = vunpack.c.l.b16 %v2667
  %v2676 = vunpack.c.l.b16 %v2668
  %v2677 = vunpack.c.l.b16 %v2669
  %v2678 = vpack.c.b16 %v2675, %v2674
  %v2679 = vpack.c.b16 %v2677, %v2676
  %v2683 = vsel %vm1504, %v2664, 0
  %2685 = vmatpush.bf16.msra.mxu0 0
  %2686 = vmatpush.bf16.msra.mxu0 0
  %2687 = vmatpush.bf16.msra.mxu0 0
  %2688 = vmatpush.bf16.msra.mxu0 0
  %2689 = vmatpush.bf16.msra.mxu0 0
  %2690 = vmatpush.bf16.msra.mxu0 0
  %2691 = vmatpush.bf16.msra.mxu0 %v2679
  %2692 = vmatpush.bf16.msra.mxu0 %v2678
  %2693 = vmatmul.bf16.gmra.mxu0 %v2683
  %v2694 = vpop.f32.mrf.mxu0
  %v2695 = vadd.f32 0.0, %v2694
  %v2696 = vpop.f32.mrf.mxu0
  %2697 = vdwg.mxu0
  %v2698 = vadd.f32 %v2645, %v2695
  %s2699 = scalar_lea.vmem %s12, 8
  %v2700 = vld [vmem:[%s2699] sm:$0x1]
  %v2702 = vsel %vm341, %v2700, 0
  %2704 = vmatpush.bf16.msra.mxu0 0
  %2705 = vmatpush.bf16.msra.mxu0 0
  %2706 = vmatpush.bf16.msra.mxu0 0
  %2707 = vmatpush.bf16.msra.mxu0 0
  %2708 = vmatpush.bf16.msra.mxu0 0
  %2709 = vmatpush.bf16.msra.mxu0 0
  %2710 = vmatpush.bf16.msra.mxu0 0
  %2711 = vmatpush.bf16.msra.mxu0 %v2281
  %2712 = vmatmul.bf16.gmra.mxu0 %v2702
  %v2713 = vpop.f32.mrf.mxu0
  %v2714 = vadd.f32 0.0, %v2713
  %v2715 = vpop.f32.mrf.mxu0
  %2716 = vdwg.mxu0
  %v2717 = vpack.c.bf16 %v2714, %v2714
  %s2718 = scalar_lea.vmem %s13, 128
  %v2719 = vld [vmem:[%s2718] sm:$0xf]
  %v2720 = vld [vmem:[%s2718 + $0x4] sm:$0xf]
  %v2721 = vld [vmem:[%s2718 + $0x8] sm:$0xf]
  %v2722 = vld [vmem:[%s2718 + $0xc] sm:$0xf]
  %v2727 = vunpack.c.l.b16 %v2719
  %v2728 = vunpack.c.l.b16 %v2720
  %v2729 = vunpack.c.l.b16 %v2721
  %v2730 = vunpack.c.l.b16 %v2722
  %v2731 = vpack.c.b16 %v2728, %v2727
  %v2732 = vpack.c.b16 %v2730, %v2729
  %v2736 = vsel %vm1504, %v2717, 0
  %2738 = vmatpush.bf16.msra.mxu0 0
  %2739 = vmatpush.bf16.msra.mxu0 0
  %2740 = vmatpush.bf16.msra.mxu0 0
  %2741 = vmatpush.bf16.msra.mxu0 0
  %2742 = vmatpush.bf16.msra.mxu0 0
  %2743 = vmatpush.bf16.msra.mxu0 0
  %2744 = vmatpush.bf16.msra.mxu0 %v2732
  %2745 = vmatpush.bf16.msra.mxu0 %v2731
  %2746 = vmatmul.bf16.gmra.mxu0 %v2736
  %v2747 = vpop.f32.mrf.mxu0
  %v2748 = vadd.f32 0.0, %v2747
  %v2749 = vpop.f32.mrf.mxu0
  %2750 = vdwg.mxu0
  %v2751 = vadd.f32 %v2698, %v2748
  %s2752 = scalar_lea.vmem %s12, 9
  %v2753 = vld [vmem:[%s2752] sm:$0x1]
  %v2755 = vsel %vm341, %v2753, 0
  %2757 = vmatpush.bf16.msra.mxu0 0
  %2758 = vmatpush.bf16.msra.mxu0 0
  %2759 = vmatpush.bf16.msra.mxu0 0
  %2760 = vmatpush.bf16.msra.mxu0 0
  %2761 = vmatpush.bf16.msra.mxu0 0
  %2762 = vmatpush.bf16.msra.mxu0 0
  %2763 = vmatpush.bf16.msra.mxu0 0
  %2764 = vmatpush.bf16.msra.mxu0 %v2281
  %2765 = vmatmul.bf16.gmra.mxu0 %v2755
  %v2766 = vpop.f32.mrf.mxu0
  %v2767 = vadd.f32 0.0, %v2766
  %v2768 = vpop.f32.mrf.mxu0
  %2769 = vdwg.mxu0
  %v2770 = vpack.c.bf16 %v2767, %v2767
  %s2771 = scalar_lea.vmem %s13, 144
  %v2772 = vld [vmem:[%s2771] sm:$0xf]
  %v2773 = vld [vmem:[%s2771 + $0x4] sm:$0xf]
  %v2774 = vld [vmem:[%s2771 + $0x8] sm:$0xf]
  %v2775 = vld [vmem:[%s2771 + $0xc] sm:$0xf]
  %v2780 = vunpack.c.l.b16 %v2772
  %v2781 = vunpack.c.l.b16 %v2773
  %v2782 = vunpack.c.l.b16 %v2774
  %v2783 = vunpack.c.l.b16 %v2775
  %v2784 = vpack.c.b16 %v2781, %v2780
  %v2785 = vpack.c.b16 %v2783, %v2782
  %v2789 = vsel %vm1504, %v2770, 0
  %2791 = vmatpush.bf16.msra.mxu0 0
  %2792 = vmatpush.bf16.msra.mxu0 0
  %2793 = vmatpush.bf16.msra.mxu0 0
  %2794 = vmatpush.bf16.msra.mxu0 0
  %2795 = vmatpush.bf16.msra.mxu0 0
  %2796 = vmatpush.bf16.msra.mxu0 0
  %2797 = vmatpush.bf16.msra.mxu0 %v2785
  %2798 = vmatpush.bf16.msra.mxu0 %v2784
  %2799 = vmatmul.bf16.gmra.mxu0 %v2789
  %v2800 = vpop.f32.mrf.mxu0
  %v2801 = vadd.f32 0.0, %v2800
  %v2802 = vpop.f32.mrf.mxu0
  %2803 = vdwg.mxu0
  %v2804 = vadd.f32 %v2751, %v2801
  %s2805 = scalar_lea.vmem %s12, 10
  %v2806 = vld [vmem:[%s2805] sm:$0x1]
  %v2808 = vsel %vm341, %v2806, 0
  %2810 = vmatpush.bf16.msra.mxu0 0
  %2811 = vmatpush.bf16.msra.mxu0 0
  %2812 = vmatpush.bf16.msra.mxu0 0
  %2813 = vmatpush.bf16.msra.mxu0 0
  %2814 = vmatpush.bf16.msra.mxu0 0
  %2815 = vmatpush.bf16.msra.mxu0 0
  %2816 = vmatpush.bf16.msra.mxu0 0
  %2817 = vmatpush.bf16.msra.mxu0 %v2281
  %2818 = vmatmul.bf16.gmra.mxu0 %v2808
  %v2819 = vpop.f32.mrf.mxu0
  %v2820 = vadd.f32 0.0, %v2819
  %v2821 = vpop.f32.mrf.mxu0
  %2822 = vdwg.mxu0
  %v2823 = vpack.c.bf16 %v2820, %v2820
  %s2824 = scalar_lea.vmem %s13, 160
  %v2825 = vld [vmem:[%s2824] sm:$0xf]
  %v2826 = vld [vmem:[%s2824 + $0x4] sm:$0xf]
  %v2827 = vld [vmem:[%s2824 + $0x8] sm:$0xf]
  %v2828 = vld [vmem:[%s2824 + $0xc] sm:$0xf]
  %v2833 = vunpack.c.l.b16 %v2825
  %v2834 = vunpack.c.l.b16 %v2826
  %v2835 = vunpack.c.l.b16 %v2827
  %v2836 = vunpack.c.l.b16 %v2828
  %v2837 = vpack.c.b16 %v2834, %v2833
  %v2838 = vpack.c.b16 %v2836, %v2835
  %v2842 = vsel %vm1504, %v2823, 0
  %2844 = vmatpush.bf16.msra.mxu0 0
  %2845 = vmatpush.bf16.msra.mxu0 0
  %2846 = vmatpush.bf16.msra.mxu0 0
  %2847 = vmatpush.bf16.msra.mxu0 0
  %2848 = vmatpush.bf16.msra.mxu0 0
  %2849 = vmatpush.bf16.msra.mxu0 0
  %2850 = vmatpush.bf16.msra.mxu0 %v2838
  %2851 = vmatpush.bf16.msra.mxu0 %v2837
  %2852 = vmatmul.bf16.gmra.mxu0 %v2842
  %v2853 = vpop.f32.mrf.mxu0
  %v2854 = vadd.f32 0.0, %v2853
  %v2855 = vpop.f32.mrf.mxu0
  %2856 = vdwg.mxu0
  %v2857 = vadd.f32 %v2804, %v2854
  %s2858 = scalar_lea.vmem %s12, 11
  %v2859 = vld [vmem:[%s2858] sm:$0x1]
  %v2861 = vsel %vm341, %v2859, 0
  %2863 = vmatpush.bf16.msra.mxu0 0
  %2864 = vmatpush.bf16.msra.mxu0 0
  %2865 = vmatpush.bf16.msra.mxu0 0
  %2866 = vmatpush.bf16.msra.mxu0 0
  %2867 = vmatpush.bf16.msra.mxu0 0
  %2868 = vmatpush.bf16.msra.mxu0 0
  %2869 = vmatpush.bf16.msra.mxu0 0
  %2870 = vmatpush.bf16.msra.mxu0 %v2281
  %2871 = vmatmul.bf16.gmra.mxu0 %v2861
  %v2872 = vpop.f32.mrf.mxu0
  %v2873 = vadd.f32 0.0, %v2872
  %v2874 = vpop.f32.mrf.mxu0
  %2875 = vdwg.mxu0
  %v2876 = vpack.c.bf16 %v2873, %v2873
  %s2877 = scalar_lea.vmem %s13, 176
  %v2878 = vld [vmem:[%s2877] sm:$0xf]
  %v2879 = vld [vmem:[%s2877 + $0x4] sm:$0xf]
  %v2880 = vld [vmem:[%s2877 + $0x8] sm:$0xf]
  %v2881 = vld [vmem:[%s2877 + $0xc] sm:$0xf]
  %v2886 = vunpack.c.l.b16 %v2878
  %v2887 = vunpack.c.l.b16 %v2879
  %v2888 = vunpack.c.l.b16 %v2880
  %v2889 = vunpack.c.l.b16 %v2881
  %v2890 = vpack.c.b16 %v2887, %v2886
  %v2891 = vpack.c.b16 %v2889, %v2888
  %v2895 = vsel %vm1504, %v2876, 0
  %2897 = vmatpush.bf16.msra.mxu0 0
  %2898 = vmatpush.bf16.msra.mxu0 0
  %2899 = vmatpush.bf16.msra.mxu0 0
  %2900 = vmatpush.bf16.msra.mxu0 0
  %2901 = vmatpush.bf16.msra.mxu0 0
  %2902 = vmatpush.bf16.msra.mxu0 0
  %2903 = vmatpush.bf16.msra.mxu0 %v2891
  %2904 = vmatpush.bf16.msra.mxu0 %v2890
  %2905 = vmatmul.bf16.gmra.mxu0 %v2895
  %v2906 = vpop.f32.mrf.mxu0
  %v2907 = vadd.f32 0.0, %v2906
  %v2908 = vpop.f32.mrf.mxu0
  %2909 = vdwg.mxu0
  %v2910 = vadd.f32 %v2857, %v2907
  %s2911 = scalar_lea.vmem %s12, 12
  %v2912 = vld [vmem:[%s2911] sm:$0x1]
  %v2914 = vsel %vm341, %v2912, 0
  %2916 = vmatpush.bf16.msra.mxu0 0
  %2917 = vmatpush.bf16.msra.mxu0 0
  %2918 = vmatpush.bf16.msra.mxu0 0
  %2919 = vmatpush.bf16.msra.mxu0 0
  %2920 = vmatpush.bf16.msra.mxu0 0
  %2921 = vmatpush.bf16.msra.mxu0 0
  %2922 = vmatpush.bf16.msra.mxu0 0
  %2923 = vmatpush.bf16.msra.mxu0 %v2281
  %2924 = vmatmul.bf16.gmra.mxu0 %v2914
  %v2925 = vpop.f32.mrf.mxu0
  %v2926 = vadd.f32 0.0, %v2925
  %v2927 = vpop.f32.mrf.mxu0
  %2928 = vdwg.mxu0
  %v2929 = vpack.c.bf16 %v2926, %v2926
  %s2930 = scalar_lea.vmem %s13, 192
  %v2931 = vld [vmem:[%s2930] sm:$0xf]
  %v2932 = vld [vmem:[%s2930 + $0x4] sm:$0xf]
  %v2933 = vld [vmem:[%s2930 + $0x8] sm:$0xf]
  %v2934 = vld [vmem:[%s2930 + $0xc] sm:$0xf]
  %v2939 = vunpack.c.l.b16 %v2931
  %v2940 = vunpack.c.l.b16 %v2932
  %v2941 = vunpack.c.l.b16 %v2933
  %v2942 = vunpack.c.l.b16 %v2934
  %v2943 = vpack.c.b16 %v2940, %v2939
  %v2944 = vpack.c.b16 %v2942, %v2941
  %v2948 = vsel %vm1504, %v2929, 0
  %2950 = vmatpush.bf16.msra.mxu0 0
  %2951 = vmatpush.bf16.msra.mxu0 0
  %2952 = vmatpush.bf16.msra.mxu0 0
  %2953 = vmatpush.bf16.msra.mxu0 0
  %2954 = vmatpush.bf16.msra.mxu0 0
  %2955 = vmatpush.bf16.msra.mxu0 0
  %2956 = vmatpush.bf16.msra.mxu0 %v2944
  %2957 = vmatpush.bf16.msra.mxu0 %v2943
  %2958 = vmatmul.bf16.gmra.mxu0 %v2948
  %v2959 = vpop.f32.mrf.mxu0
  %v2960 = vadd.f32 0.0, %v2959
  %v2961 = vpop.f32.mrf.mxu0
  %2962 = vdwg.mxu0
  %v2963 = vadd.f32 %v2910, %v2960
  %s2964 = scalar_lea.vmem %s12, 13
  %v2965 = vld [vmem:[%s2964] sm:$0x1]
  %v2967 = vsel %vm341, %v2965, 0
  %2969 = vmatpush.bf16.msra.mxu0 0
  %2970 = vmatpush.bf16.msra.mxu0 0
  %2971 = vmatpush.bf16.msra.mxu0 0
  %2972 = vmatpush.bf16.msra.mxu0 0
  %2973 = vmatpush.bf16.msra.mxu0 0
  %2974 = vmatpush.bf16.msra.mxu0 0
  %2975 = vmatpush.bf16.msra.mxu0 0
  %2976 = vmatpush.bf16.msra.mxu0 %v2281
  %2977 = vmatmul.bf16.gmra.mxu0 %v2967
  %v2978 = vpop.f32.mrf.mxu0
  %v2979 = vadd.f32 0.0, %v2978
  %v2980 = vpop.f32.mrf.mxu0
  %2981 = vdwg.mxu0
  %v2982 = vpack.c.bf16 %v2979, %v2979
  %s2983 = scalar_lea.vmem %s13, 208
  %v2984 = vld [vmem:[%s2983] sm:$0xf]
  %v2985 = vld [vmem:[%s2983 + $0x4] sm:$0xf]
  %v2986 = vld [vmem:[%s2983 + $0x8] sm:$0xf]
  %v2987 = vld [vmem:[%s2983 + $0xc] sm:$0xf]
  %v2992 = vunpack.c.l.b16 %v2984
  %v2993 = vunpack.c.l.b16 %v2985
  %v2994 = vunpack.c.l.b16 %v2986
  %v2995 = vunpack.c.l.b16 %v2987
  %v2996 = vpack.c.b16 %v2993, %v2992
  %v2997 = vpack.c.b16 %v2995, %v2994
  %v3001 = vsel %vm1504, %v2982, 0
  %3003 = vmatpush.bf16.msra.mxu0 0
  %3004 = vmatpush.bf16.msra.mxu0 0
  %3005 = vmatpush.bf16.msra.mxu0 0
  %3006 = vmatpush.bf16.msra.mxu0 0
  %3007 = vmatpush.bf16.msra.mxu0 0
  %3008 = vmatpush.bf16.msra.mxu0 0
  %3009 = vmatpush.bf16.msra.mxu0 %v2997
  %3010 = vmatpush.bf16.msra.mxu0 %v2996
  %3011 = vmatmul.bf16.gmra.mxu0 %v3001
  %v3012 = vpop.f32.mrf.mxu0
  %v3013 = vadd.f32 0.0, %v3012
  %v3014 = vpop.f32.mrf.mxu0
  %3015 = vdwg.mxu0
  %v3016 = vadd.f32 %v2963, %v3013
  %s3017 = scalar_lea.vmem %s12, 14
  %v3018 = vld [vmem:[%s3017] sm:$0x1]
  %v3020 = vsel %vm341, %v3018, 0
  %3022 = vmatpush.bf16.msra.mxu0 0
  %3023 = vmatpush.bf16.msra.mxu0 0
  %3024 = vmatpush.bf16.msra.mxu0 0
  %3025 = vmatpush.bf16.msra.mxu0 0
  %3026 = vmatpush.bf16.msra.mxu0 0
  %3027 = vmatpush.bf16.msra.mxu0 0
  %3028 = vmatpush.bf16.msra.mxu0 0
  %3029 = vmatpush.bf16.msra.mxu0 %v2281
  %3030 = vmatmul.bf16.gmra.mxu0 %v3020
  %v3031 = vpop.f32.mrf.mxu0
  %v3032 = vadd.f32 0.0, %v3031
  %v3033 = vpop.f32.mrf.mxu0
  %3034 = vdwg.mxu0
  %v3035 = vpack.c.bf16 %v3032, %v3032
  %s3036 = scalar_lea.vmem %s13, 224
  %v3037 = vld [vmem:[%s3036] sm:$0xf]
  %v3038 = vld [vmem:[%s3036 + $0x4] sm:$0xf]
  %v3039 = vld [vmem:[%s3036 + $0x8] sm:$0xf]
  %v3040 = vld [vmem:[%s3036 + $0xc] sm:$0xf]
  %v3045 = vunpack.c.l.b16 %v3037
  %v3046 = vunpack.c.l.b16 %v3038
  %v3047 = vunpack.c.l.b16 %v3039
  %v3048 = vunpack.c.l.b16 %v3040
  %v3049 = vpack.c.b16 %v3046, %v3045
  %v3050 = vpack.c.b16 %v3048, %v3047
  %v3054 = vsel %vm1504, %v3035, 0
  %3056 = vmatpush.bf16.msra.mxu0 0
  %3057 = vmatpush.bf16.msra.mxu0 0
  %3058 = vmatpush.bf16.msra.mxu0 0
  %3059 = vmatpush.bf16.msra.mxu0 0
  %3060 = vmatpush.bf16.msra.mxu0 0
  %3061 = vmatpush.bf16.msra.mxu0 0
  %3062 = vmatpush.bf16.msra.mxu0 %v3050
  %3063 = vmatpush.bf16.msra.mxu0 %v3049
  %3064 = vmatmul.bf16.gmra.mxu0 %v3054
  %v3065 = vpop.f32.mrf.mxu0
  %v3066 = vadd.f32 0.0, %v3065
  %v3067 = vpop.f32.mrf.mxu0
  %3068 = vdwg.mxu0
  %v3069 = vadd.f32 %v3016, %v3066
  %s3070 = scalar_lea.vmem %s12, 15
  %v3071 = vld [vmem:[%s3070] sm:$0x1]
  %v3073 = vsel %vm341, %v3071, 0
  %3075 = vmatpush.bf16.msra.mxu0 0
  %3076 = vmatpush.bf16.msra.mxu0 0
  %3077 = vmatpush.bf16.msra.mxu0 0
  %3078 = vmatpush.bf16.msra.mxu0 0
  %3079 = vmatpush.bf16.msra.mxu0 0
  %3080 = vmatpush.bf16.msra.mxu0 0
  %3081 = vmatpush.bf16.msra.mxu0 0
  %3082 = vmatpush.bf16.msra.mxu0 %v2281
  %3083 = vmatmul.bf16.gmra.mxu0 %v3073
  %v3084 = vpop.f32.mrf.mxu0
  %v3085 = vadd.f32 0.0, %v3084
  %v3086 = vpop.f32.mrf.mxu0
  %3087 = vdwg.mxu0
  %v3088 = vpack.c.bf16 %v3085, %v3085
  %s3089 = scalar_lea.vmem %s13, 240
  %v3090 = vld [vmem:[%s3089] sm:$0xf]
  %v3091 = vld [vmem:[%s3089 + $0x4] sm:$0xf]
  %v3092 = vld [vmem:[%s3089 + $0x8] sm:$0xf]
  %v3093 = vld [vmem:[%s3089 + $0xc] sm:$0xf]
  %v3098 = vunpack.c.l.b16 %v3090
  %v3099 = vunpack.c.l.b16 %v3091
  %v3100 = vunpack.c.l.b16 %v3092
  %v3101 = vunpack.c.l.b16 %v3093
  %v3102 = vpack.c.b16 %v3099, %v3098
  %v3103 = vpack.c.b16 %v3101, %v3100
  %v3107 = vsel %vm1504, %v3088, 0
  %3109 = vmatpush.bf16.msra.mxu0 0
  %3110 = vmatpush.bf16.msra.mxu0 0
  %3111 = vmatpush.bf16.msra.mxu0 0
  %3112 = vmatpush.bf16.msra.mxu0 0
  %3113 = vmatpush.bf16.msra.mxu0 0
  %3114 = vmatpush.bf16.msra.mxu0 0
  %3115 = vmatpush.bf16.msra.mxu0 %v3103
  %3116 = vmatpush.bf16.msra.mxu0 %v3102
  %3117 = vmatmul.bf16.gmra.mxu0 %v3107
  %v3118 = vpop.f32.mrf.mxu0
  %v3119 = vadd.f32 0.0, %v3118
  %v3120 = vpop.f32.mrf.mxu0
  %3121 = vdwg.mxu0
  %v3122 = vadd.f32 %v3069, %v3119
  %v3123 = vld [vmem:[%s14] sm:$0x1]
  %v3125 = vperm.slane %v3123, 0
  %v3127 = vadd.f32 %v3122, %v3125
  %vm3128 = vcmask 517120
  %v3129 = vsel %vm3128, %v3127, 0.0
  %v3130 = vrot.slane %v3129, 4
  %v3131 = vadd.f32 %v3129, %v3130
  %v3132 = vrot.slane %v3131, 2
  %v3133 = vadd.f32 %v3131, %v3132
  %v3134 = vrot.slane %v3133, 1
  %v3135 = vadd.f32 %v3133, %v3134
  %v3136 = vrcp.pop 2.0
  %v3137 = vmul.f32 2.0, %v3136
  %v3138 = vsub.f32 1.0, %v3137
  %v3139 = vmul.f32 %v3136, %v3138
  %v3140 = vadd.f32 %v3136, %v3139
  %vm3141 = vweird.f32 %v3136
  %v3142 = vsel %vm3141, %v3136, %v3140
  %v3143 = vmul.f32 %v3135, %v3142
  %v3144 = vsub.f32 %v3127, %v3143
  %v3145 = vmul.f32 %v3144, %v3144
  %v3146 = vsel %vm3128, %v3145, 0.0
  %v3147 = vrot.slane %v3146, 4
  %v3148 = vadd.f32 %v3146, %v3147
  %v3149 = vrot.slane %v3148, 2
  %v3150 = vadd.f32 %v3148, %v3149
  %v3151 = vrot.slane %v3150, 1
  %v3152 = vadd.f32 %v3150, %v3151
  %v3153 = vmul.f32 %v3152, %v3142
  %v3154 = vadd.f32 %v3153, 0.8
  %v3155 = vrsqrt.pop %v3154
  %v3156 = vmul.f32 %v3155, %v3154
  %v3157 = vmul.f32 %v3156, %v3155
  %v3158 = vmul.f32 0.5, %v3157
  %v3159 = vsub.f32 1.5, %v3158
  %v3160 = vmul.f32 %v3155, %v3159
  %vm3161 = vweird.f32 %v3154
  %vm3162 = vweird.f32 %v3155
  %vm3163 = vmor %vm3161, %vm3162
  %v3164 = vsel %vm3163, %v3155, %v3160
  %v3165 = vmul.f32 %v3144, %v3164
  %v3166 = vld [vmem:[%s15] sm:$0x1]
  %v3168 = vperm.slane %v3166, 0
  %v3170 = vmul.f32 %v3165, %v3168
  %v3171 = vld [vmem:[%s16] sm:$0x1]
  %v3173 = vperm.slane %v3171, 0
  %v3175 = vadd.f32 %v3170, %v3173
  %vm3176 = vcmp.ge.f32.partialorder %v3175, 0.0
  %v3177 = vmul.f32 %v3175, 0.1
  %v3178 = vsel %vm3176, %v3175, %v3177
  %vm3179 = vcmp.ge.f32.partialorder %v3178, 0.0
  %v3180 = vmul.f32 %v3178, 0.2
  %v3181 = vsel %vm3179, %v3178, %v3180
  %v3182 = vld [vmem:[%s17] sm:$0x3]
  %vm3183 = vcmask 15360
  %v3185 = vsel %vm3183, %v3182, 0
  %vm3187 = vcmask 1041408
  %v3189 = vsel %vm3187, %v3181, 0
  %3191 = vmatpush.msra.mxu0 0.0
  %3192 = vmatpush.msra.mxu0 0.0
  %3193 = vmatpush.msra.mxu0 0.0
  %3194 = vmatpush.msra.mxu0 0.0
  %3195 = vmatpush.msra.mxu0 0.0
  %3196 = vmatpush.msra.mxu0 0.0
  %3197 = vmatpush.msra.mxu0 0.0
  %3198 = vmatpush.msra.mxu0 0.0
  %3199 = vmatpush.msra.mxu0 0.0
  %3200 = vmatpush.msra.mxu0 0.0
  %3201 = vmatpush.msra.mxu0 0.0
  %3202 = vmatpush.msra.mxu0 0.0
  %3203 = vmatpush.msra.mxu0 0.0
  %3204 = vmatpush.msra.mxu0 0.0
  %3205 = vmatpush.msra.mxu0 0.0
  %3206 = vmatpush.msra.mxu0 %v3189
  %3207 = vmatmul.f32.gmra.mxu0 %v3185
  %v3208 = vpop.f32.mrf.mxu0
  %v3209 = vadd.f32 0.0, %v3208
  %3210 = vdwg.mxu0
  %v3211 = vpack.c.bf16 %v3209, %v3209
  %v3212 = vld [vmem:[%s19] sm:$0xf]
  %v3213 = vld [vmem:[%s19 + $0x4] sm:$0xf]
  %v3214 = vld [vmem:[%s19 + $0x8] sm:$0xf]
  %v3215 = vld [vmem:[%s19 + $0xc] sm:$0xf]
  %v3216 = vld [vmem:[%s19 + $0x10] sm:$0xf]
  %v3217 = vld [vmem:[%s19 + $0x14] sm:$0xf]
  %v3218 = vld [vmem:[%s19 + $0x18] sm:$0xf]
  %v3219 = vld [vmem:[%s19 + $0x1c] sm:$0xf]
  %v3220 = vld [vmem:[%s20] sm:$0x1]
  %v3222 = vperm.slane %v3220, 0
  %v3232 = vunpack.c.l.b16 %v3212
  %v3233 = vunpack.c.l.b16 %v3213
  %v3234 = vunpack.c.l.b16 %v3214
  %v3235 = vunpack.c.l.b16 %v3215
  %v3236 = vunpack.c.l.b16 %v3216
  %v3237 = vunpack.c.l.b16 %v3217
  %v3238 = vunpack.c.l.b16 %v3218
  %v3239 = vunpack.c.l.b16 %v3219
  %v3240 = vpack.c.b16 %v3233, %v3232
  %v3241 = vpack.c.b16 %v3235, %v3234
  %v3242 = vpack.c.b16 %v3237, %v3236
  %v3243 = vpack.c.b16 %v3239, %v3238
  %vm3248 = vcmask 523264
  %v3250 = vsel %vm3248, %v3211, 0
  %3252 = vmatpush.bf16.msra.mxu0 0
  %3253 = vmatpush.bf16.msra.mxu0 0
  %3254 = vmatpush.bf16.msra.mxu0 0
  %3255 = vmatpush.bf16.msra.mxu0 0
  %3256 = vmatpush.bf16.msra.mxu0 %v3243
  %3257 = vmatpush.bf16.msra.mxu0 %v3242
  %3258 = vmatpush.bf16.msra.mxu0 %v3241
  %3259 = vmatpush.bf16.msra.mxu0 %v3240
  %3260 = vmatmul.bf16.gmra.mxu0 %v3250
  %v3261 = vpop.f32.mrf.mxu0
  %v3262 = vadd.f32 %v3222, %v3261
  %v3263 = vpop.f32.mrf.mxu0
  %3264 = vdwg.mxu0
  %vm3265 = vcmask 74752
  %v3266 = vsel %vm3265, %v3262, -inf
  %3267 = vmax.xlane.f32.xlu0 %v3266
  %v3268 = vpop.xlane.xlu0 %3267
  %v3269 = vsub.f32 %v3262, %v3268
  %v3270 = vmul.f32 %v3269, 1.442695
  %v3271 = vpow.pop %v3270
  %v3272 = vsel %vm3265, %v3271, 0.0
  %3273 = vadd.xlane.f32.xlu0 %v3272
  %v3274 = vpop.xlane.xlu0 %3273
  %v3275 = vrcp.pop %v3274
  %v3276 = vmul.f32 %v3274, %v3275
  %v3277 = vsub.f32 1.0, %v3276
  %v3278 = vmul.f32 %v3275, %v3277
  %v3279 = vadd.f32 %v3275, %v3278
  %vm3280 = vweird.f32 %v3274
  %vm3281 = vweird.f32 %v3275
  %vm3282 = vmor %vm3280, %vm3281
  %v3283 = vsel %vm3282, %v3275, %v3279
  %v3284 = vand.u32 2147483647, %v3274
  %vm3285 = vcmp.eq.f32.partialorder %v3284, 8.507059e+37
  %v3286 = vand.u32 %v3274, 2147483648
  %v3287 = vor.u32 1.1754944e-38, %v3286
  %v3288 = vsel %vm3285, %v3287, %v3283
  %v3289 = vmul.f32 %v3271, %v3288
  %v3290 = vld [vmem:[%s18] sm:$0x3]
  %v3291 = vmul.f32 %v3290, %v3209
  %v3292 = vsel %vm3128, %v3291, 0.0
  %3293 = vadd.xlane.f32.xlu0 %v3292
  %v3294 = vpop.xlane.xlu0 %3293
  %v3295 = vadd.f32 %v3262, %v3294
  %3296 = vst.msk [vmem:[%s21] sm:$0x3] %vm3265, %v3289
  %vm3297 = vcmask 83024
  %3298 = vst.msk [vmem:[%s21] sm:$0x3] %vm3297, %v3295
  %vm3299 = vcmask 1041496
  %3300 = vst.msk [vmem:[%s21] sm:$0x3] %vm3299, 0.0
  // Predicated region
  $region86: #{discriminator_forward.1} parent=0 // pred_check
    _
  $region87: #{discriminator_forward.1} parent=0 // pred_check_branch
    %3302 = sbr.rel (0) target = $region89
  $region88: #{discriminator_forward.1} parent=0 // pred_region
    _
  $region89: #{discriminator_forward.1} parent=0 // pred_fallthru
    _
  // Predicated region
  $region90: #{discriminator_forward.1} parent=0 // pred_check
    _
  $region91: #{discriminator_forward.1} parent=0 // pred_check_branch
    %3304 = sbr.rel (0) target = $region93
  $region92: #{discriminator_forward.1} parent=0 // pred_region
    _
  $region93: #{discriminator_forward.1} parent=0 // pred_fallthru
    _

</llo_original>
